<compile_context>
chip_gen: v6e
topology: v6e:2x2x1
jax: 0.10.0
libtpu: 0.0.40
codegen_flags: <defaults>
</compile_context>

<pallas_src>
import jax
import jax.numpy as jnp
from jax.experimental import pallas as pl
from jax.experimental.pallas import tpu as pltpu

HIDDEN = 512
NUM_LAYERS = 4


def _mlp4_kernel(x_ref,
                 w1_ref, b1_ref, w2_ref, b2_ref,
                 w3_ref, b3_ref, w4_ref, b4_ref,
                 o_ref):
    """Fused (fc -> dropout(eval) -> relu) x4 on one (TILE_B, 512) batch tile."""
    h = x_ref[...].astype(jnp.float32)
    for w_ref, b_ref in ((w1_ref, b1_ref), (w2_ref, b2_ref),
                         (w3_ref, b3_ref), (w4_ref, b4_ref)):
        # bf16 x bf16 MXU matmul with f32 accumulation.
        acc = jnp.dot(h.astype(jnp.bfloat16), w_ref[...],
                      preferred_element_type=jnp.float32)
        # Single VPU epilogue: bias broadcast + ReLU. Dropout(0.3) is identity
        # in eval mode.
        h = jnp.maximum(acc + b_ref[...], 0.0)
    o_ref[...] = h.astype(o_ref.dtype)


def joint_preprocessing_block(x, weights, biases, *, tile_b=256):
    """x: (B, 512).
    weights: 4 arrays of shape (512, 512), already in (in, out) layout
             (i.e. transposed from PyTorch nn.Linear's (out, in)).
    biases:  4 arrays of shape (512,).
    """
    assert len(weights) == NUM_LAYERS and len(biases) == NUM_LAYERS
    B, D = x.shape
    assert D == HIDDEN
    orig_dtype = x.dtype

    # Batch tile: multiple of 8 (sublane), capped at tile_b; pad B up to it.
    if B >= tile_b:
        tb = tile_b
    else:
        tb = max(8, ((B + 7) // 8) * 8)
    pad = (-B) % tb
    if pad:
        x = jnp.pad(x, ((0, pad), (0, 0)))
    Bp = B + pad
    grid = (Bp // tb,)

    # bf16 weights (dominant DMA), f32 biases reshaped for in-kernel broadcast.
    args = [x]
    in_specs = [pl.BlockSpec((tb, HIDDEN), lambda i: (i, 0))]
    w_spec = pl.BlockSpec((HIDDEN, HIDDEN), lambda i: (0, 0))  # resident
    b_spec = pl.BlockSpec((1, HIDDEN), lambda i: (0, 0))       # resident
    for w, b in zip(weights, biases):
        assert w.shape == (HIDDEN, HIDDEN) and b.shape == (HIDDEN,)
        args.append(w.astype(jnp.bfloat16))
        args.append(b.astype(jnp.float32).reshape(1, HIDDEN))
        in_specs += [w_spec, b_spec]

    out = pl.pallas_call(
        _mlp4_kernel,
        out_shape=jax.ShapeDtypeStruct((Bp, HIDDEN), orig_dtype),
        grid=grid,
        in_specs=in_specs,
        out_specs=pl.BlockSpec((tb, HIDDEN), lambda i: (i, 0)),
        compiler_params=pltpu.CompilerParams(
            dimension_semantics=("parallel",)),  # v7x: shard batch over 2 TCs
    )(*args)

    return out[:B] if pad else out


if __name__ == "__main__":
    key = jax.random.PRNGKey(0)
    keys = jax.random.split(key, 1 + 2 * NUM_LAYERS)

    B = 16  # small batch
    x = jax.random.normal(keys[0], (B, HIDDEN), dtype=jnp.float32)

    # Deterministic parameter init (shapes from nn.Linear(512, 512)), stored
    # as (in_features, out_features) = (512, 512).
    bound = 1.0 / jnp.sqrt(jnp.float32(HIDDEN))
    weights, biases = [], []
    for layer in range(NUM_LAYERS):
        kw, kb = keys[1 + 2 * layer], keys[2 + 2 * layer]
        weights.append(jax.random.uniform(kw, (HIDDEN, HIDDEN),
                                          minval=-bound, maxval=bound,
                                          dtype=jnp.float32))
        biases.append(jax.random.uniform(kb, (HIDDEN,),
                                         minval=-bound, maxval=bound,
                                         dtype=jnp.float32))

    out = joint_preprocessing_block(x, weights, biases)
    out = jax.block_until_ready(out)

    # Reference (pure JAX, eval-mode dropout, same bf16-weight / f32-acc math).
    h = x
    for w, b in zip(weights, biases):
        acc = jnp.dot(h.astype(jnp.bfloat16), w.astype(jnp.bfloat16),
                      preferred_element_type=jnp.float32)
        h = jnp.maximum(acc + b, 0.0)

    assert out.shape == (B, HIDDEN)
    assert jnp.allclose(out, h, atol=1e-2, rtol=1e-2)

    print("KERNEL_OK")
</pallas_src>

<mosaic_0001>
module attributes {stable_mosaic.version = 11 : i64} {
  func.func @_mlp4_kernel(%arg0: i32, %arg1: memref<16x512xf32, #tpu.memory_space<vmem>>, %arg2: memref<512x512xbf16, #tpu.memory_space<vmem>>, %arg3: memref<1x512xf32, #tpu.memory_space<vmem>>, %arg4: memref<512x512xbf16, #tpu.memory_space<vmem>>, %arg5: memref<1x512xf32, #tpu.memory_space<vmem>>, %arg6: memref<512x512xbf16, #tpu.memory_space<vmem>>, %arg7: memref<1x512xf32, #tpu.memory_space<vmem>>, %arg8: memref<512x512xbf16, #tpu.memory_space<vmem>>, %arg9: memref<1x512xf32, #tpu.memory_space<vmem>>, %arg10: memref<16x512xf32, #tpu.memory_space<vmem>>) attributes {dimension_semantics = [#tpu.dimension_semantics<parallel>], iteration_bounds = array<i64: 1>, scalar_prefetch = 0 : i64, scratch_operands = 0 : i64, tpu.core_type = #tpu.core_type<tc>, window_params = [{transform_indices = @transform_0, window_bounds = array<i64: 16, 512>}, {pipeline_mode = #tpu.pipeline_mode<synchronous>, transform_indices = @transform_1, window_bounds = array<i64: 512, 512>}, {pipeline_mode = #tpu.pipeline_mode<synchronous>, transform_indices = @transform_2, window_bounds = array<i64: 1, 512>}, {pipeline_mode = #tpu.pipeline_mode<synchronous>, transform_indices = @transform_3, window_bounds = array<i64: 512, 512>}, {pipeline_mode = #tpu.pipeline_mode<synchronous>, transform_indices = @transform_4, window_bounds = array<i64: 1, 512>}, {pipeline_mode = #tpu.pipeline_mode<synchronous>, transform_indices = @transform_5, window_bounds = array<i64: 512, 512>}, {pipeline_mode = #tpu.pipeline_mode<synchronous>, transform_indices = @transform_6, window_bounds = array<i64: 1, 512>}, {pipeline_mode = #tpu.pipeline_mode<synchronous>, transform_indices = @transform_7, window_bounds = array<i64: 512, 512>}, {pipeline_mode = #tpu.pipeline_mode<synchronous>, transform_indices = @transform_8, window_bounds = array<i64: 1, 512>}, {transform_indices = @transform_9, window_bounds = array<i64: 16, 512>}]} {
    %c0 = arith.constant 0 : index
    %c0_0 = arith.constant 0 : index
    %0 = vector.load %arg1[%c0, %c0_0] : memref<16x512xf32, #tpu.memory_space<vmem>>, vector<16x512xf32>
    %1 = arith.truncf %0 : vector<16x512xf32> to vector<16x512xbf16>
    %c0_1 = arith.constant 0 : index
    %c0_2 = arith.constant 0 : index
    %2 = vector.load %arg2[%c0_1, %c0_2] : memref<512x512xbf16, #tpu.memory_space<vmem>>, vector<512x512xbf16>
    %cst = arith.constant dense<0.000000e+00> : vector<16x512xf32>
    %3 = tpu.matmul %1, %2, %cst {dimension_numbers = #tpu.dot_dimension_numbers<[1], [0], [0], [1], [0, 0, 1, 1], [], []>} : vector<16x512xbf16>, vector<512x512xbf16>, vector<16x512xf32> -> vector<16x512xf32>
    %c0_3 = arith.constant 0 : index
    %c0_4 = arith.constant 0 : index
    %4 = vector.load %arg3[%c0_3, %c0_4] : memref<1x512xf32, #tpu.memory_space<vmem>>, vector<1x512xf32>
    %5 = vector.broadcast %4 : vector<1x512xf32> to vector<16x512xf32>
    %6 = arith.addf %3, %5 : vector<16x512xf32>
    %cst_5 = arith.constant 0.000000e+00 : f32
    %7 = vector.broadcast %cst_5 : f32 to vector<16x512xf32>
    %8 = arith.maximumf %6, %7 : vector<16x512xf32>
    %9 = arith.truncf %8 : vector<16x512xf32> to vector<16x512xbf16>
    %c0_6 = arith.constant 0 : index
    %c0_7 = arith.constant 0 : index
    %10 = vector.load %arg4[%c0_6, %c0_7] : memref<512x512xbf16, #tpu.memory_space<vmem>>, vector<512x512xbf16>
    %cst_8 = arith.constant dense<0.000000e+00> : vector<16x512xf32>
    %11 = tpu.matmul %9, %10, %cst_8 {dimension_numbers = #tpu.dot_dimension_numbers<[1], [0], [0], [1], [0, 0, 1, 1], [], []>} : vector<16x512xbf16>, vector<512x512xbf16>, vector<16x512xf32> -> vector<16x512xf32>
    %c0_9 = arith.constant 0 : index
    %c0_10 = arith.constant 0 : index
    %12 = vector.load %arg5[%c0_9, %c0_10] : memref<1x512xf32, #tpu.memory_space<vmem>>, vector<1x512xf32>
    %13 = vector.broadcast %12 : vector<1x512xf32> to vector<16x512xf32>
    %14 = arith.addf %11, %13 : vector<16x512xf32>
    %cst_11 = arith.constant 0.000000e+00 : f32
    %15 = vector.broadcast %cst_11 : f32 to vector<16x512xf32>
    %16 = arith.maximumf %14, %15 : vector<16x512xf32>
    %17 = arith.truncf %16 : vector<16x512xf32> to vector<16x512xbf16>
    %c0_12 = arith.constant 0 : index
    %c0_13 = arith.constant 0 : index
    %18 = vector.load %arg6[%c0_12, %c0_13] : memref<512x512xbf16, #tpu.memory_space<vmem>>, vector<512x512xbf16>
    %cst_14 = arith.constant dense<0.000000e+00> : vector<16x512xf32>
    %19 = tpu.matmul %17, %18, %cst_14 {dimension_numbers = #tpu.dot_dimension_numbers<[1], [0], [0], [1], [0, 0, 1, 1], [], []>} : vector<16x512xbf16>, vector<512x512xbf16>, vector<16x512xf32> -> vector<16x512xf32>
    %c0_15 = arith.constant 0 : index
    %c0_16 = arith.constant 0 : index
    %20 = vector.load %arg7[%c0_15, %c0_16] : memref<1x512xf32, #tpu.memory_space<vmem>>, vector<1x512xf32>
    %21 = vector.broadcast %20 : vector<1x512xf32> to vector<16x512xf32>
    %22 = arith.addf %19, %21 : vector<16x512xf32>
    %cst_17 = arith.constant 0.000000e+00 : f32
    %23 = vector.broadcast %cst_17 : f32 to vector<16x512xf32>
    %24 = arith.maximumf %22, %23 : vector<16x512xf32>
    %25 = arith.truncf %24 : vector<16x512xf32> to vector<16x512xbf16>
    %c0_18 = arith.constant 0 : index
    %c0_19 = arith.constant 0 : index
    %26 = vector.load %arg8[%c0_18, %c0_19] : memref<512x512xbf16, #tpu.memory_space<vmem>>, vector<512x512xbf16>
    %cst_20 = arith.constant dense<0.000000e+00> : vector<16x512xf32>
    %27 = tpu.matmul %25, %26, %cst_20 {dimension_numbers = #tpu.dot_dimension_numbers<[1], [0], [0], [1], [0, 0, 1, 1], [], []>} : vector<16x512xbf16>, vector<512x512xbf16>, vector<16x512xf32> -> vector<16x512xf32>
    %c0_21 = arith.constant 0 : index
    %c0_22 = arith.constant 0 : index
    %28 = vector.load %arg9[%c0_21, %c0_22] : memref<1x512xf32, #tpu.memory_space<vmem>>, vector<1x512xf32>
    %29 = vector.broadcast %28 : vector<1x512xf32> to vector<16x512xf32>
    %30 = arith.addf %27, %29 : vector<16x512xf32>
    %cst_23 = arith.constant 0.000000e+00 : f32
    %31 = vector.broadcast %cst_23 : f32 to vector<16x512xf32>
    %32 = arith.maximumf %30, %31 : vector<16x512xf32>
    %c0_24 = arith.constant 0 : index
    %c0_25 = arith.constant 0 : index
    %33 = vector.load %arg10[%c0_24, %c0_25] : memref<16x512xf32, #tpu.memory_space<vmem>>, vector<16x512xf32>
    tpu.vector_store %arg10[%c0_24, %c0_25], %32 {strides = array<i32>} : memref<16x512xf32, #tpu.memory_space<vmem>>, vector<16x512xf32>,
    return
  }
  func.func @transform_0(%arg0: i32) -> (i32, i32) {
    %c0_i32 = arith.constant 0 : i32
    %c0_i32_0 = arith.constant 0 : i32
    return %arg0, %c0_i32 : i32, i32
  }
  func.func @transform_1(%arg0: i32) -> (i32, i32) {
    %c0_i32 = arith.constant 0 : i32
    %c0_i32_0 = arith.constant 0 : i32
    %c0_i32_1 = arith.constant 0 : i32
    return %c0_i32, %c0_i32_0 : i32, i32
  }
  func.func @transform_2(%arg0: i32) -> (i32, i32) {
    %c0_i32 = arith.constant 0 : i32
    %c0_i32_0 = arith.constant 0 : i32
    %c0_i32_1 = arith.constant 0 : i32
    return %c0_i32, %c0_i32_0 : i32, i32
  }
  func.func @transform_3(%arg0: i32) -> (i32, i32) {
    %c0_i32 = arith.constant 0 : i32
    %c0_i32_0 = arith.constant 0 : i32
    %c0_i32_1 = arith.constant 0 : i32
    return %c0_i32, %c0_i32_0 : i32, i32
  }
  func.func @transform_4(%arg0: i32) -> (i32, i32) {
    %c0_i32 = arith.constant 0 : i32
    %c0_i32_0 = arith.constant 0 : i32
    %c0_i32_1 = arith.constant 0 : i32
    return %c0_i32, %c0_i32_0 : i32, i32
  }
  func.func @transform_5(%arg0: i32) -> (i32, i32) {
    %c0_i32 = arith.constant 0 : i32
    %c0_i32_0 = arith.constant 0 : i32
    %c0_i32_1 = arith.constant 0 : i32
    return %c0_i32, %c0_i32_0 : i32, i32
  }
  func.func @transform_6(%arg0: i32) -> (i32, i32) {
    %c0_i32 = arith.constant 0 : i32
    %c0_i32_0 = arith.constant 0 : i32
    %c0_i32_1 = arith.constant 0 : i32
    return %c0_i32, %c0_i32_0 : i32, i32
  }
  func.func @transform_7(%arg0: i32) -> (i32, i32) {
    %c0_i32 = arith.constant 0 : i32
    %c0_i32_0 = arith.constant 0 : i32
    %c0_i32_1 = arith.constant 0 : i32
    return %c0_i32, %c0_i32_0 : i32, i32
  }
  func.func @transform_8(%arg0: i32) -> (i32, i32) {
    %c0_i32 = arith.constant 0 : i32
    %c0_i32_0 = arith.constant 0 : i32
    %c0_i32_1 = arith.constant 0 : i32
    return %c0_i32, %c0_i32_0 : i32, i32
  }
  func.func @transform_9(%arg0: i32) -> (i32, i32) {
    %c0_i32 = arith.constant 0 : i32
    %c0_i32_0 = arith.constant 0 : i32
    return %arg0, %c0_i32 : i32, i32
  }
}

</mosaic_0001>

<llo_original>
// kernel: tpu_custom_call.1
$region0: #{tpu_custom_call.1}
  #allocation0 [shape = 'u32[]', space=smem, size = 0x4, offset = 0x4, fixed_abs, tag = 'smem constant byte address 0x4 - core index']
  #allocation1 [shape = 'u32[144,128]{1,0:T(1,128)}', space=vmem, size = 0x12000, scoped, tag = 'internal scratch']
  %s0 = inlined_call_operand.hbm [shape: f32[16,512], index: 0, kind: input, shape index: {}]
  %s1 = inlined_call_operand.hbm [shape: bf16[512,512], index: 1, kind: input, shape index: {}]
  %s2 = inlined_call_operand.hbm [shape: f32[1,512], index: 2, kind: input, shape index: {}]
  %s3 = inlined_call_operand.hbm [shape: bf16[512,512], index: 3, kind: input, shape index: {}]
  %s4 = inlined_call_operand.vmem [shape: f32[1,512], index: 4, kind: input, shape index: {}]
  %s5 = inlined_call_operand.hbm [shape: bf16[512,512], index: 5, kind: input, shape index: {}]
  %s6 = inlined_call_operand.vmem [shape: f32[1,512], index: 6, kind: input, shape index: {}]
  %s7 = inlined_call_operand.hbm [shape: bf16[512,512], index: 7, kind: input, shape index: {}]
  %s8 = inlined_call_operand.vmem [shape: f32[1,512], index: 8, kind: input, shape index: {}]
  %s9 = inlined_call_operand.hbm [shape: f32[16,512], index: 9, kind: output, shape index: {}]
  %s10 = sld [smem:[#allocation0]]
  $region70: #{tpu_custom_call.1} parent=0
    _
  %s12 = ssub.s32 1, %s10
  %s13 = scalar_select 0, %s12, %s10
  $region1: #{tpu_custom_call.1} parent=0
    #allocation2 [shape = 'u8[32768]{0}', space=vmem, size = 0x8000, scoped, tag = 'input window, operand 0, single buffered']
    #allocation3 [shape = 's32[1]{0}', space=sflag, size = 0x4, scoped, tag = 'scoped memory for tpu_custom_call.1']
    #allocation4 [shape = 's32[1]{0}', space=sflag, size = 0x4, scoped, tag = 'scoped memory for tpu_custom_call.1']
    #allocation5 [shape = 'u8[524288]{0}', space=vmem, size = 0x80000, scoped, tag = 'input window, operand 1, single buffered']
    #allocation6 [shape = 's32[1]{0}', space=sflag, size = 0x4, scoped, tag = 'scoped memory for tpu_custom_call.1']
    #allocation7 [shape = 'u8[2048]{0}', space=vmem, size = 0x800, scoped, tag = 'input window, operand 2, single buffered']
    #allocation8 [shape = 'u8[524288]{0}', space=vmem, size = 0x80000, scoped, tag = 'input window, operand 3, single buffered']
    #allocation9 [shape = 's32[1]{0}', space=sflag, size = 0x4, scoped, tag = 'scoped memory for tpu_custom_call.1']
    #allocation10 [shape = 'u8[524288]{0}', space=vmem, size = 0x80000, scoped, tag = 'input window, operand 5, single buffered']
    #allocation11 [shape = 'u8[524288]{0}', space=vmem, size = 0x80000, scoped, tag = 'input window, operand 7, single buffered']
    #allocation12 [shape = 's32[1]{0}', space=sflag, size = 0x4, scoped, tag = 'scoped memory for tpu_custom_call.1']
    #allocation13 [shape = 'u8[32768]{0}', space=vmem, size = 0x8000, scoped, tag = 'output window, operand 0, single buffered']
    %14 = vsyncpa [#allocation3], 0
    %15 = vsyncpa [#allocation6], 0
    %16 = vsyncpa [#allocation9], 0
    %17 = vsyncpa [#allocation12], 0
    %18 = vsyncpa [#allocation4], 0
    // Predicated region
    $region2: #{tpu_custom_call.1} parent=1 // pred_check
      _
    $region3: #{tpu_custom_call.1} parent=1 // pred_check_branch
      %20 = sbr.rel (0) target = $region5
    $region4: #{tpu_custom_call.1} parent=1 // pred_region
      %s22 = ssub.s32 1024, 1024
      %23 = vsyncadd [#allocation3], %s22
      %s24 = sshll.u32 [#allocation2], 4
      %s25 = int_to_ptr.vmem [resolvable:$true] %s24
      %30 = dma.hbm_to_vmem [thread:$0]  %s0, 1024, %s25, [#allocation3], 512, 512, 32
    $region5: #{tpu_custom_call.1} parent=1 // pred_fallthru
      _
    // Predicated region
    $region6: #{tpu_custom_call.1} parent=1 // pred_check
      _
    $region7: #{tpu_custom_call.1} parent=1 // pred_check_branch
      %32 = sbr.rel (0) target = $region9
    $region8: #{tpu_custom_call.1} parent=1 // pred_region
      %s34 = ssub.s32 16384, 16384
      %35 = vsyncadd [#allocation6], %s34
      %s36 = sshll.u32 [#allocation5], 4
      %s37 = int_to_ptr.vmem [resolvable:$true] %s36
      %42 = dma.hbm_to_vmem [thread:$0]  %s1, 16384, %s37, [#allocation6], 256, 256, 16
    $region9: #{tpu_custom_call.1} parent=1 // pred_fallthru
      _
    // Predicated region
    $region10: #{tpu_custom_call.1} parent=1 // pred_check
      _
    $region11: #{tpu_custom_call.1} parent=1 // pred_check_branch
      %44 = sbr.rel (0) target = $region13
    $region12: #{tpu_custom_call.1} parent=1 // pred_region
      %s46 = ssub.s32 64, 64
      %47 = vsyncadd [#allocation6], %s46
      %s49 = sshll.u32 [#allocation7], 4
      %s50 = int_to_ptr.vmem [resolvable:$true] %s49
      %52 = dma.hbm_to_vmem [thread:$0]  %s2, 64, %s50, [#allocation6]
    $region13: #{tpu_custom_call.1} parent=1 // pred_fallthru
      _
    // Predicated region
    $region14: #{tpu_custom_call.1} parent=1 // pred_check
      _
    $region15: #{tpu_custom_call.1} parent=1 // pred_check_branch
      %54 = sbr.rel (0) target = $region17
    $region16: #{tpu_custom_call.1} parent=1 // pred_region
      %s56 = ssub.s32 16384, 16384
      %57 = vsyncadd [#allocation9], %s56
      %s58 = sshll.u32 [#allocation8], 4
      %s59 = int_to_ptr.vmem [resolvable:$true] %s58
      %64 = dma.hbm_to_vmem [thread:$0]  %s3, 16384, %s59, [#allocation9], 256, 256, 16
    $region17: #{tpu_custom_call.1} parent=1 // pred_fallthru
      _
    // Predicated region
    $region18: #{tpu_custom_call.1} parent=1 // pred_check
      _
    $region19: #{tpu_custom_call.1} parent=1 // pred_check_branch
      %66 = sbr.rel (0) target = $region21
    $region20: #{tpu_custom_call.1} parent=1 // pred_region
      _
    $region21: #{tpu_custom_call.1} parent=1 // pred_fallthru
      _
    // Predicated region
    $region22: #{tpu_custom_call.1} parent=1 // pred_check
      _
    $region23: #{tpu_custom_call.1} parent=1 // pred_check_branch
      %68 = sbr.rel (0) target = $region25
    $region24: #{tpu_custom_call.1} parent=1 // pred_region
      %s70 = ssub.s32 16384, 16384
      %71 = vsyncadd [#allocation9], %s70
      %s72 = sshll.u32 [#allocation10], 4
      %s73 = int_to_ptr.vmem [resolvable:$true] %s72
      %78 = dma.hbm_to_vmem [thread:$0]  %s5, 16384, %s73, [#allocation9], 256, 256, 16
    $region25: #{tpu_custom_call.1} parent=1 // pred_fallthru
      _
    // Predicated region
    $region26: #{tpu_custom_call.1} parent=1 // pred_check
      _
    $region27: #{tpu_custom_call.1} parent=1 // pred_check_branch
      %80 = sbr.rel (0) target = $region29
    $region28: #{tpu_custom_call.1} parent=1 // pred_region
      _
    $region29: #{tpu_custom_call.1} parent=1 // pred_fallthru
      _
    // Predicated region
    $region30: #{tpu_custom_call.1} parent=1 // pred_check
      _
    $region31: #{tpu_custom_call.1} parent=1 // pred_check_branch
      %82 = sbr.rel (0) target = $region33
    $region32: #{tpu_custom_call.1} parent=1 // pred_region
      %s84 = ssub.s32 16384, 16384
      %85 = vsyncadd [#allocation12], %s84
      %s86 = sshll.u32 [#allocation11], 4
      %s87 = int_to_ptr.vmem [resolvable:$true] %s86
      %92 = dma.hbm_to_vmem [thread:$0]  %s7, 16384, %s87, [#allocation12], 256, 256, 16
    $region33: #{tpu_custom_call.1} parent=1 // pred_fallthru
      _
    // Predicated region
    $region34: #{tpu_custom_call.1} parent=1 // pred_check
      _
    $region35: #{tpu_custom_call.1} parent=1 // pred_check_branch
      %94 = sbr.rel (0) target = $region37
    $region36: #{tpu_custom_call.1} parent=1 // pred_region
      _
    $region37: #{tpu_custom_call.1} parent=1 // pred_fallthru
      _
    // Predicated region
    $region38: #{tpu_custom_call.1} parent=1 // pred_check
      _
    $region39: #{tpu_custom_call.1} parent=1 // pred_check_branch
      %96 = sbr.rel (0) target = $region41
    $region40: #{tpu_custom_call.1} parent=1 // pred_region
      %97 = dma.done [#allocation3], 1024
    $region41: #{tpu_custom_call.1} parent=1 // pred_fallthru
      _
    // Predicated region
    $region42: #{tpu_custom_call.1} parent=1 // pred_check
      _
    $region43: #{tpu_custom_call.1} parent=1 // pred_check_branch
      %99 = sbr.rel (0) target = $region45
    $region44: #{tpu_custom_call.1} parent=1 // pred_region
      %100 = dma.done [#allocation6], 16384
    $region45: #{tpu_custom_call.1} parent=1 // pred_fallthru
      _
    // Predicated region
    $region46: #{tpu_custom_call.1} parent=1 // pred_check
      _
    $region47: #{tpu_custom_call.1} parent=1 // pred_check_branch
      %102 = sbr.rel (0) target = $region49
    $region48: #{tpu_custom_call.1} parent=1 // pred_region
      %103 = dma.done [#allocation6], 64
    $region49: #{tpu_custom_call.1} parent=1 // pred_fallthru
      _
    // Predicated region
    $region50: #{tpu_custom_call.1} parent=1 // pred_check
      _
    $region51: #{tpu_custom_call.1} parent=1 // pred_check_branch
      %105 = sbr.rel (0) target = $region53
    $region52: #{tpu_custom_call.1} parent=1 // pred_region
      %106 = dma.done [#allocation9], 16384
    $region53: #{tpu_custom_call.1} parent=1 // pred_fallthru
      _
    // Predicated region
    $region54: #{tpu_custom_call.1} parent=1 // pred_check
      _
    $region55: #{tpu_custom_call.1} parent=1 // pred_check_branch
      %108 = sbr.rel (0) target = $region57
    $region56: #{tpu_custom_call.1} parent=1 // pred_region
      %109 = dma.done [#allocation9], 16384
    $region57: #{tpu_custom_call.1} parent=1 // pred_fallthru
      _
    // Predicated region
    $region58: #{tpu_custom_call.1} parent=1 // pred_check
      _
    $region59: #{tpu_custom_call.1} parent=1 // pred_check_branch
      %111 = sbr.rel (0) target = $region61
    $region60: #{tpu_custom_call.1} parent=1 // pred_region
      %112 = dma.done [#allocation12], 16384
    $region61: #{tpu_custom_call.1} parent=1 // pred_fallthru
      _
    %v113 = vld [vmem:[#allocation2] sm:$0xff]
    %v114 = vld [vmem:[#allocation2 + $0x8] sm:$0xff]
    %v115 = vld [vmem:[#allocation2 + $0x10] sm:$0xff]
    %v116 = vld [vmem:[#allocation2 + $0x18] sm:$0xff]
    %v117 = vld [vmem:[#allocation2 + $0x20] sm:$0xff]
    %v118 = vld [vmem:[#allocation2 + $0x28] sm:$0xff]
    %v119 = vld [vmem:[#allocation2 + $0x30] sm:$0xff]
    %v120 = vld [vmem:[#allocation2 + $0x38] sm:$0xff]
    %v121 = vpack.c.bf16 %v117, %v113
    %v122 = vpack.c.bf16 %v118, %v114
    %v123 = vpack.c.bf16 %v119, %v115
    %v124 = vpack.c.bf16 %v120, %v116
    %v125 = vld [vmem:[#allocation5] sm:$0xff]
    %v126 = vld [vmem:[#allocation5 + $0x8] sm:$0xff]
    %v127 = vld [vmem:[#allocation5 + $0x10] sm:$0xff]
    %v128 = vld [vmem:[#allocation5 + $0x18] sm:$0xff]
    %v129 = vld [vmem:[#allocation5 + $0x20] sm:$0xff]
    %v130 = vld [vmem:[#allocation5 + $0x28] sm:$0xff]
    %v131 = vld [vmem:[#allocation5 + $0x30] sm:$0xff]
    %v132 = vld [vmem:[#allocation5 + $0x38] sm:$0xff]
    %v133 = vld [vmem:[#allocation5 + $0x40] sm:$0xff]
    %v134 = vld [vmem:[#allocation5 + $0x48] sm:$0xff]
    %v135 = vld [vmem:[#allocation5 + $0x50] sm:$0xff]
    %v136 = vld [vmem:[#allocation5 + $0x58] sm:$0xff]
    %v137 = vld [vmem:[#allocation5 + $0x60] sm:$0xff]
    %v138 = vld [vmem:[#allocation5 + $0x68] sm:$0xff]
    %v139 = vld [vmem:[#allocation5 + $0x70] sm:$0xff]
    %v140 = vld [vmem:[#allocation5 + $0x78] sm:$0xff]
    %v141 = vld [vmem:[#allocation5 + $0x80] sm:$0xff]
    %v142 = vld [vmem:[#allocation5 + $0x88] sm:$0xff]
    %v143 = vld [vmem:[#allocation5 + $0x90] sm:$0xff]
    %v144 = vld [vmem:[#allocation5 + $0x98] sm:$0xff]
    %v145 = vld [vmem:[#allocation5 + $0xa0] sm:$0xff]
    %v146 = vld [vmem:[#allocation5 + $0xa8] sm:$0xff]
    %v147 = vld [vmem:[#allocation5 + $0xb0] sm:$0xff]
    %v148 = vld [vmem:[#allocation5 + $0xb8] sm:$0xff]
    %v149 = vld [vmem:[#allocation5 + $0xc0] sm:$0xff]
    %v150 = vld [vmem:[#allocation5 + $0xc8] sm:$0xff]
    %v151 = vld [vmem:[#allocation5 + $0xd0] sm:$0xff]
    %v152 = vld [vmem:[#allocation5 + $0xd8] sm:$0xff]
    %v153 = vld [vmem:[#allocation5 + $0xe0] sm:$0xff]
    %v154 = vld [vmem:[#allocation5 + $0xe8] sm:$0xff]
    %v155 = vld [vmem:[#allocation5 + $0xf0] sm:$0xff]
    %v156 = vld [vmem:[#allocation5 + $0xf8] sm:$0xff]
    %v157 = vld [vmem:[#allocation5 + $0x100] sm:$0xff]
    %v158 = vld [vmem:[#allocation5 + $0x108] sm:$0xff]
    %v159 = vld [vmem:[#allocation5 + $0x110] sm:$0xff]
    %v160 = vld [vmem:[#allocation5 + $0x118] sm:$0xff]
    %v161 = vld [vmem:[#allocation5 + $0x120] sm:$0xff]
    %v162 = vld [vmem:[#allocation5 + $0x128] sm:$0xff]
    %v163 = vld [vmem:[#allocation5 + $0x130] sm:$0xff]
    %v164 = vld [vmem:[#allocation5 + $0x138] sm:$0xff]
    %v165 = vld [vmem:[#allocation5 + $0x140] sm:$0xff]
    %v166 = vld [vmem:[#allocation5 + $0x148] sm:$0xff]
    %v167 = vld [vmem:[#allocation5 + $0x150] sm:$0xff]
    %v168 = vld [vmem:[#allocation5 + $0x158] sm:$0xff]
    %v169 = vld [vmem:[#allocation5 + $0x160] sm:$0xff]
    %v170 = vld [vmem:[#allocation5 + $0x168] sm:$0xff]
    %v171 = vld [vmem:[#allocation5 + $0x170] sm:$0xff]
    %v172 = vld [vmem:[#allocation5 + $0x178] sm:$0xff]
    %v173 = vld [vmem:[#allocation5 + $0x180] sm:$0xff]
    %v174 = vld [vmem:[#allocation5 + $0x188] sm:$0xff]
    %v175 = vld [vmem:[#allocation5 + $0x190] sm:$0xff]
    %v176 = vld [vmem:[#allocation5 + $0x198] sm:$0xff]
    %v177 = vld [vmem:[#allocation5 + $0x1a0] sm:$0xff]
    %v178 = vld [vmem:[#allocation5 + $0x1a8] sm:$0xff]
    %v179 = vld [vmem:[#allocation5 + $0x1b0] sm:$0xff]
    %v180 = vld [vmem:[#allocation5 + $0x1b8] sm:$0xff]
    %v181 = vld [vmem:[#allocation5 + $0x1c0] sm:$0xff]
    %v182 = vld [vmem:[#allocation5 + $0x1c8] sm:$0xff]
    %v183 = vld [vmem:[#allocation5 + $0x1d0] sm:$0xff]
    %v184 = vld [vmem:[#allocation5 + $0x1d8] sm:$0xff]
    %v185 = vld [vmem:[#allocation5 + $0x1e0] sm:$0xff]
    %v186 = vld [vmem:[#allocation5 + $0x1e8] sm:$0xff]
    %v187 = vld [vmem:[#allocation5 + $0x1f0] sm:$0xff]
    %v188 = vld [vmem:[#allocation5 + $0x1f8] sm:$0xff]
    %v189 = vld [vmem:[#allocation5 + $0x200] sm:$0xff]
    %v190 = vld [vmem:[#allocation5 + $0x208] sm:$0xff]
    %v191 = vld [vmem:[#allocation5 + $0x210] sm:$0xff]
    %v192 = vld [vmem:[#allocation5 + $0x218] sm:$0xff]
    %v193 = vld [vmem:[#allocation5 + $0x220] sm:$0xff]
    %v194 = vld [vmem:[#allocation5 + $0x228] sm:$0xff]
    %v195 = vld [vmem:[#allocation5 + $0x230] sm:$0xff]
    %v196 = vld [vmem:[#allocation5 + $0x238] sm:$0xff]
    %v197 = vld [vmem:[#allocation5 + $0x240] sm:$0xff]
    %v198 = vld [vmem:[#allocation5 + $0x248] sm:$0xff]
    %v199 = vld [vmem:[#allocation5 + $0x250] sm:$0xff]
    %v200 = vld [vmem:[#allocation5 + $0x258] sm:$0xff]
    %v201 = vld [vmem:[#allocation5 + $0x260] sm:$0xff]
    %v202 = vld [vmem:[#allocation5 + $0x268] sm:$0xff]
    %v203 = vld [vmem:[#allocation5 + $0x270] sm:$0xff]
    %v204 = vld [vmem:[#allocation5 + $0x278] sm:$0xff]
    %v205 = vld [vmem:[#allocation5 + $0x280] sm:$0xff]
    %v206 = vld [vmem:[#allocation5 + $0x288] sm:$0xff]
    %v207 = vld [vmem:[#allocation5 + $0x290] sm:$0xff]
    %v208 = vld [vmem:[#allocation5 + $0x298] sm:$0xff]
    %v209 = vld [vmem:[#allocation5 + $0x2a0] sm:$0xff]
    %v210 = vld [vmem:[#allocation5 + $0x2a8] sm:$0xff]
    %v211 = vld [vmem:[#allocation5 + $0x2b0] sm:$0xff]
    %v212 = vld [vmem:[#allocation5 + $0x2b8] sm:$0xff]
    %v213 = vld [vmem:[#allocation5 + $0x2c0] sm:$0xff]
    %v214 = vld [vmem:[#allocation5 + $0x2c8] sm:$0xff]
    %v215 = vld [vmem:[#allocation5 + $0x2d0] sm:$0xff]
    %v216 = vld [vmem:[#allocation5 + $0x2d8] sm:$0xff]
    %v217 = vld [vmem:[#allocation5 + $0x2e0] sm:$0xff]
    %v218 = vld [vmem:[#allocation5 + $0x2e8] sm:$0xff]
    %v219 = vld [vmem:[#allocation5 + $0x2f0] sm:$0xff]
    %v220 = vld [vmem:[#allocation5 + $0x2f8] sm:$0xff]
    %v221 = vld [vmem:[#allocation5 + $0x300] sm:$0xff]
    %v222 = vld [vmem:[#allocation5 + $0x308] sm:$0xff]
    %v223 = vld [vmem:[#allocation5 + $0x310] sm:$0xff]
    %v224 = vld [vmem:[#allocation5 + $0x318] sm:$0xff]
    %v225 = vld [vmem:[#allocation5 + $0x320] sm:$0xff]
    %v226 = vld [vmem:[#allocation5 + $0x328] sm:$0xff]
    %v227 = vld [vmem:[#allocation5 + $0x330] sm:$0xff]
    %v228 = vld [vmem:[#allocation5 + $0x338] sm:$0xff]
    %v229 = vld [vmem:[#allocation5 + $0x340] sm:$0xff]
    %v230 = vld [vmem:[#allocation5 + $0x348] sm:$0xff]
    %v231 = vld [vmem:[#allocation5 + $0x350] sm:$0xff]
    %v232 = vld [vmem:[#allocation5 + $0x358] sm:$0xff]
    %v233 = vld [vmem:[#allocation5 + $0x360] sm:$0xff]
    %v234 = vld [vmem:[#allocation5 + $0x368] sm:$0xff]
    %v235 = vld [vmem:[#allocation5 + $0x370] sm:$0xff]
    %v236 = vld [vmem:[#allocation5 + $0x378] sm:$0xff]
    %v237 = vld [vmem:[#allocation5 + $0x380] sm:$0xff]
    %v238 = vld [vmem:[#allocation5 + $0x388] sm:$0xff]
    %v239 = vld [vmem:[#allocation5 + $0x390] sm:$0xff]
    %v240 = vld [vmem:[#allocation5 + $0x398] sm:$0xff]
    %v241 = vld [vmem:[#allocation5 + $0x3a0] sm:$0xff]
    %v242 = vld [vmem:[#allocation5 + $0x3a8] sm:$0xff]
    %v243 = vld [vmem:[#allocation5 + $0x3b0] sm:$0xff]
    %v244 = vld [vmem:[#allocation5 + $0x3b8] sm:$0xff]
    %v245 = vld [vmem:[#allocation5 + $0x3c0] sm:$0xff]
    %v246 = vld [vmem:[#allocation5 + $0x3c8] sm:$0xff]
    %v247 = vld [vmem:[#allocation5 + $0x3d0] sm:$0xff]
    %v248 = vld [vmem:[#allocation5 + $0x3d8] sm:$0xff]
    %v249 = vld [vmem:[#allocation5 + $0x3e0] sm:$0xff]
    %v250 = vld [vmem:[#allocation5 + $0x3e8] sm:$0xff]
    %v251 = vld [vmem:[#allocation5 + $0x3f0] sm:$0xff]
    %v252 = vld [vmem:[#allocation5 + $0x3f8] sm:$0xff]
    %v253 = vld [vmem:[#allocation7] sm:$0xf]
    %v255 = vlaneseq
    %v256 = vshrl.u32 %v255, 7
    %v257 = vsub.s32 0, %v256
    %v258 = vrot.slane %v253, %v257
    %v259 = vlaneseq
    %v260 = vshrl.u32 %v259, 7
    %v261 = vsub.s32 1, %v260
    %v262 = vrot.slane %v253, %v261
    %v263 = vlaneseq
    %v264 = vshrl.u32 %v263, 7
    %v265 = vsub.s32 2, %v264
    %v266 = vrot.slane %v253, %v265
    %v267 = vlaneseq
    %v268 = vshrl.u32 %v267, 7
    %v269 = vsub.s32 3, %v268
    %v270 = vrot.slane %v253, %v269
    %v403 = vunpack.c.l.b16 %v125
    %v404 = vunpack.c.h.b16 %v125
    %v405 = vunpack.c.l.b16 %v126
    %v406 = vunpack.c.h.b16 %v126
    %v407 = vunpack.c.l.b16 %v127
    %v408 = vunpack.c.h.b16 %v127
    %v409 = vunpack.c.l.b16 %v128
    %v410 = vunpack.c.h.b16 %v128
    %v411 = vunpack.c.l.b16 %v129
    %v412 = vunpack.c.h.b16 %v129
    %v413 = vunpack.c.l.b16 %v130
    %v414 = vunpack.c.h.b16 %v130
    %v415 = vunpack.c.l.b16 %v131
    %v416 = vunpack.c.h.b16 %v131
    %v417 = vunpack.c.l.b16 %v132
    %v418 = vunpack.c.h.b16 %v132
    %v419 = vunpack.c.l.b16 %v133
    %v420 = vunpack.c.h.b16 %v133
    %v421 = vunpack.c.l.b16 %v134
    %v422 = vunpack.c.h.b16 %v134
    %v423 = vunpack.c.l.b16 %v135
    %v424 = vunpack.c.h.b16 %v135
    %v425 = vunpack.c.l.b16 %v136
    %v426 = vunpack.c.h.b16 %v136
    %v427 = vunpack.c.l.b16 %v137
    %v428 = vunpack.c.h.b16 %v137
    %v429 = vunpack.c.l.b16 %v138
    %v430 = vunpack.c.h.b16 %v138
    %v431 = vunpack.c.l.b16 %v139
    %v432 = vunpack.c.h.b16 %v139
    %v433 = vunpack.c.l.b16 %v140
    %v434 = vunpack.c.h.b16 %v140
    %v435 = vunpack.c.l.b16 %v141
    %v436 = vunpack.c.h.b16 %v141
    %v437 = vunpack.c.l.b16 %v142
    %v438 = vunpack.c.h.b16 %v142
    %v439 = vunpack.c.l.b16 %v143
    %v440 = vunpack.c.h.b16 %v143
    %v441 = vunpack.c.l.b16 %v144
    %v442 = vunpack.c.h.b16 %v144
    %v443 = vunpack.c.l.b16 %v145
    %v444 = vunpack.c.h.b16 %v145
    %v445 = vunpack.c.l.b16 %v146
    %v446 = vunpack.c.h.b16 %v146
    %v447 = vunpack.c.l.b16 %v147
    %v448 = vunpack.c.h.b16 %v147
    %v449 = vunpack.c.l.b16 %v148
    %v450 = vunpack.c.h.b16 %v148
    %v451 = vunpack.c.l.b16 %v149
    %v452 = vunpack.c.h.b16 %v149
    %v453 = vunpack.c.l.b16 %v150
    %v454 = vunpack.c.h.b16 %v150
    %v455 = vunpack.c.l.b16 %v151
    %v456 = vunpack.c.h.b16 %v151
    %v457 = vunpack.c.l.b16 %v152
    %v458 = vunpack.c.h.b16 %v152
    %v459 = vunpack.c.l.b16 %v153
    %v460 = vunpack.c.h.b16 %v153
    %v461 = vunpack.c.l.b16 %v154
    %v462 = vunpack.c.h.b16 %v154
    %v463 = vunpack.c.l.b16 %v155
    %v464 = vunpack.c.h.b16 %v155
    %v465 = vunpack.c.l.b16 %v156
    %v466 = vunpack.c.h.b16 %v156
    %v467 = vunpack.c.l.b16 %v157
    %v468 = vunpack.c.h.b16 %v157
    %v469 = vunpack.c.l.b16 %v158
    %v470 = vunpack.c.h.b16 %v158
    %v471 = vunpack.c.l.b16 %v159
    %v472 = vunpack.c.h.b16 %v159
    %v473 = vunpack.c.l.b16 %v160
    %v474 = vunpack.c.h.b16 %v160
    %v475 = vunpack.c.l.b16 %v161
    %v476 = vunpack.c.h.b16 %v161
    %v477 = vunpack.c.l.b16 %v162
    %v478 = vunpack.c.h.b16 %v162
    %v479 = vunpack.c.l.b16 %v163
    %v480 = vunpack.c.h.b16 %v163
    %v481 = vunpack.c.l.b16 %v164
    %v482 = vunpack.c.h.b16 %v164
    %v483 = vunpack.c.l.b16 %v165
    %v484 = vunpack.c.h.b16 %v165
    %v485 = vunpack.c.l.b16 %v166
    %v486 = vunpack.c.h.b16 %v166
    %v487 = vunpack.c.l.b16 %v167
    %v488 = vunpack.c.h.b16 %v167
    %v489 = vunpack.c.l.b16 %v168
    %v490 = vunpack.c.h.b16 %v168
    %v491 = vunpack.c.l.b16 %v169
    %v492 = vunpack.c.h.b16 %v169
    %v493 = vunpack.c.l.b16 %v170
    %v494 = vunpack.c.h.b16 %v170
    %v495 = vunpack.c.l.b16 %v171
    %v496 = vunpack.c.h.b16 %v171
    %v497 = vunpack.c.l.b16 %v172
    %v498 = vunpack.c.h.b16 %v172
    %v499 = vunpack.c.l.b16 %v173
    %v500 = vunpack.c.h.b16 %v173
    %v501 = vunpack.c.l.b16 %v174
    %v502 = vunpack.c.h.b16 %v174
    %v503 = vunpack.c.l.b16 %v175
    %v504 = vunpack.c.h.b16 %v175
    %v505 = vunpack.c.l.b16 %v176
    %v506 = vunpack.c.h.b16 %v176
    %v507 = vunpack.c.l.b16 %v177
    %v508 = vunpack.c.h.b16 %v177
    %v509 = vunpack.c.l.b16 %v178
    %v510 = vunpack.c.h.b16 %v178
    %v511 = vunpack.c.l.b16 %v179
    %v512 = vunpack.c.h.b16 %v179
    %v513 = vunpack.c.l.b16 %v180
    %v514 = vunpack.c.h.b16 %v180
    %v515 = vunpack.c.l.b16 %v181
    %v516 = vunpack.c.h.b16 %v181
    %v517 = vunpack.c.l.b16 %v182
    %v518 = vunpack.c.h.b16 %v182
    %v519 = vunpack.c.l.b16 %v183
    %v520 = vunpack.c.h.b16 %v183
    %v521 = vunpack.c.l.b16 %v184
    %v522 = vunpack.c.h.b16 %v184
    %v523 = vunpack.c.l.b16 %v185
    %v524 = vunpack.c.h.b16 %v185
    %v525 = vunpack.c.l.b16 %v186
    %v526 = vunpack.c.h.b16 %v186
    %v527 = vunpack.c.l.b16 %v187
    %v528 = vunpack.c.h.b16 %v187
    %v529 = vunpack.c.l.b16 %v188
    %v530 = vunpack.c.h.b16 %v188
    %v531 = vunpack.c.l.b16 %v189
    %v532 = vunpack.c.h.b16 %v189
    %v533 = vunpack.c.l.b16 %v190
    %v534 = vunpack.c.h.b16 %v190
    %v535 = vunpack.c.l.b16 %v191
    %v536 = vunpack.c.h.b16 %v191
    %v537 = vunpack.c.l.b16 %v192
    %v538 = vunpack.c.h.b16 %v192
    %v539 = vunpack.c.l.b16 %v193
    %v540 = vunpack.c.h.b16 %v193
    %v541 = vunpack.c.l.b16 %v194
    %v542 = vunpack.c.h.b16 %v194
    %v543 = vunpack.c.l.b16 %v195
    %v544 = vunpack.c.h.b16 %v195
    %v545 = vunpack.c.l.b16 %v196
    %v546 = vunpack.c.h.b16 %v196
    %v547 = vunpack.c.l.b16 %v197
    %v548 = vunpack.c.h.b16 %v197
    %v549 = vunpack.c.l.b16 %v198
    %v550 = vunpack.c.h.b16 %v198
    %v551 = vunpack.c.l.b16 %v199
    %v552 = vunpack.c.h.b16 %v199
    %v553 = vunpack.c.l.b16 %v200
    %v554 = vunpack.c.h.b16 %v200
    %v555 = vunpack.c.l.b16 %v201
    %v556 = vunpack.c.h.b16 %v201
    %v557 = vunpack.c.l.b16 %v202
    %v558 = vunpack.c.h.b16 %v202
    %v559 = vunpack.c.l.b16 %v203
    %v560 = vunpack.c.h.b16 %v203
    %v561 = vunpack.c.l.b16 %v204
    %v562 = vunpack.c.h.b16 %v204
    %v563 = vunpack.c.l.b16 %v205
    %v564 = vunpack.c.h.b16 %v205
    %v565 = vunpack.c.l.b16 %v206
    %v566 = vunpack.c.h.b16 %v206
    %v567 = vunpack.c.l.b16 %v207
    %v568 = vunpack.c.h.b16 %v207
    %v569 = vunpack.c.l.b16 %v208
    %v570 = vunpack.c.h.b16 %v208
    %v571 = vunpack.c.l.b16 %v209
    %v572 = vunpack.c.h.b16 %v209
    %v573 = vunpack.c.l.b16 %v210
    %v574 = vunpack.c.h.b16 %v210
    %v575 = vunpack.c.l.b16 %v211
    %v576 = vunpack.c.h.b16 %v211
    %v577 = vunpack.c.l.b16 %v212
    %v578 = vunpack.c.h.b16 %v212
    %v579 = vunpack.c.l.b16 %v213
    %v580 = vunpack.c.h.b16 %v213
    %v581 = vunpack.c.l.b16 %v214
    %v582 = vunpack.c.h.b16 %v214
    %v583 = vunpack.c.l.b16 %v215
    %v584 = vunpack.c.h.b16 %v215
    %v585 = vunpack.c.l.b16 %v216
    %v586 = vunpack.c.h.b16 %v216
    %v587 = vunpack.c.l.b16 %v217
    %v588 = vunpack.c.h.b16 %v217
    %v589 = vunpack.c.l.b16 %v218
    %v590 = vunpack.c.h.b16 %v218
    %v591 = vunpack.c.l.b16 %v219
    %v592 = vunpack.c.h.b16 %v219
    %v593 = vunpack.c.l.b16 %v220
    %v594 = vunpack.c.h.b16 %v220
    %v595 = vunpack.c.l.b16 %v221
    %v596 = vunpack.c.h.b16 %v221
    %v597 = vunpack.c.l.b16 %v222
    %v598 = vunpack.c.h.b16 %v222
    %v599 = vunpack.c.l.b16 %v223
    %v600 = vunpack.c.h.b16 %v223
    %v601 = vunpack.c.l.b16 %v224
    %v602 = vunpack.c.h.b16 %v224
    %v603 = vunpack.c.l.b16 %v225
    %v604 = vunpack.c.h.b16 %v225
    %v605 = vunpack.c.l.b16 %v226
    %v606 = vunpack.c.h.b16 %v226
    %v607 = vunpack.c.l.b16 %v227
    %v608 = vunpack.c.h.b16 %v227
    %v609 = vunpack.c.l.b16 %v228
    %v610 = vunpack.c.h.b16 %v228
    %v611 = vunpack.c.l.b16 %v229
    %v612 = vunpack.c.h.b16 %v229
    %v613 = vunpack.c.l.b16 %v230
    %v614 = vunpack.c.h.b16 %v230
    %v615 = vunpack.c.l.b16 %v231
    %v616 = vunpack.c.h.b16 %v231
    %v617 = vunpack.c.l.b16 %v232
    %v618 = vunpack.c.h.b16 %v232
    %v619 = vunpack.c.l.b16 %v233
    %v620 = vunpack.c.h.b16 %v233
    %v621 = vunpack.c.l.b16 %v234
    %v622 = vunpack.c.h.b16 %v234
    %v623 = vunpack.c.l.b16 %v235
    %v624 = vunpack.c.h.b16 %v235
    %v625 = vunpack.c.l.b16 %v236
    %v626 = vunpack.c.h.b16 %v236
    %v627 = vunpack.c.l.b16 %v237
    %v628 = vunpack.c.h.b16 %v237
    %v629 = vunpack.c.l.b16 %v238
    %v630 = vunpack.c.h.b16 %v238
    %v631 = vunpack.c.l.b16 %v239
    %v632 = vunpack.c.h.b16 %v239
    %v633 = vunpack.c.l.b16 %v240
    %v634 = vunpack.c.h.b16 %v240
    %v635 = vunpack.c.l.b16 %v241
    %v636 = vunpack.c.h.b16 %v241
    %v637 = vunpack.c.l.b16 %v242
    %v638 = vunpack.c.h.b16 %v242
    %v639 = vunpack.c.l.b16 %v243
    %v640 = vunpack.c.h.b16 %v243
    %v641 = vunpack.c.l.b16 %v244
    %v642 = vunpack.c.h.b16 %v244
    %v643 = vunpack.c.l.b16 %v245
    %v644 = vunpack.c.h.b16 %v245
    %v645 = vunpack.c.l.b16 %v246
    %v646 = vunpack.c.h.b16 %v246
    %v647 = vunpack.c.l.b16 %v247
    %v648 = vunpack.c.h.b16 %v247
    %v649 = vunpack.c.l.b16 %v248
    %v650 = vunpack.c.h.b16 %v248
    %v651 = vunpack.c.l.b16 %v249
    %v652 = vunpack.c.h.b16 %v249
    %v653 = vunpack.c.l.b16 %v250
    %v654 = vunpack.c.h.b16 %v250
    %v655 = vunpack.c.l.b16 %v251
    %v656 = vunpack.c.h.b16 %v251
    %v657 = vunpack.c.l.b16 %v252
    %v658 = vunpack.c.h.b16 %v252
    %v659 = vpack.c.b16 %v407, %v403
    %v660 = vpack.c.b16 %v408, %v404
    %v661 = vpack.c.b16 %v409, %v405
    %v662 = vpack.c.b16 %v410, %v406
    %v663 = vpack.c.b16 %v415, %v411
    %v664 = vpack.c.b16 %v416, %v412
    %v665 = vpack.c.b16 %v417, %v413
    %v666 = vpack.c.b16 %v418, %v414
    %v667 = vpack.c.b16 %v423, %v419
    %v668 = vpack.c.b16 %v424, %v420
    %v669 = vpack.c.b16 %v425, %v421
    %v670 = vpack.c.b16 %v426, %v422
    %v671 = vpack.c.b16 %v431, %v427
    %v672 = vpack.c.b16 %v432, %v428
    %v673 = vpack.c.b16 %v433, %v429
    %v674 = vpack.c.b16 %v434, %v430
    %v675 = vpack.c.b16 %v439, %v435
    %v676 = vpack.c.b16 %v440, %v436
    %v677 = vpack.c.b16 %v441, %v437
    %v678 = vpack.c.b16 %v442, %v438
    %v679 = vpack.c.b16 %v447, %v443
    %v680 = vpack.c.b16 %v448, %v444
    %v681 = vpack.c.b16 %v449, %v445
    %v682 = vpack.c.b16 %v450, %v446
    %v683 = vpack.c.b16 %v455, %v451
    %v684 = vpack.c.b16 %v456, %v452
    %v685 = vpack.c.b16 %v457, %v453
    %v686 = vpack.c.b16 %v458, %v454
    %v687 = vpack.c.b16 %v463, %v459
    %v688 = vpack.c.b16 %v464, %v460
    %v689 = vpack.c.b16 %v465, %v461
    %v690 = vpack.c.b16 %v466, %v462
    %v691 = vpack.c.b16 %v471, %v467
    %v692 = vpack.c.b16 %v472, %v468
    %v693 = vpack.c.b16 %v473, %v469
    %v694 = vpack.c.b16 %v474, %v470
    %v695 = vpack.c.b16 %v479, %v475
    %v696 = vpack.c.b16 %v480, %v476
    %v697 = vpack.c.b16 %v481, %v477
    %v698 = vpack.c.b16 %v482, %v478
    %v699 = vpack.c.b16 %v487, %v483
    %v700 = vpack.c.b16 %v488, %v484
    %v701 = vpack.c.b16 %v489, %v485
    %v702 = vpack.c.b16 %v490, %v486
    %v703 = vpack.c.b16 %v495, %v491
    %v704 = vpack.c.b16 %v496, %v492
    %v705 = vpack.c.b16 %v497, %v493
    %v706 = vpack.c.b16 %v498, %v494
    %v707 = vpack.c.b16 %v503, %v499
    %v708 = vpack.c.b16 %v504, %v500
    %v709 = vpack.c.b16 %v505, %v501
    %v710 = vpack.c.b16 %v506, %v502
    %v711 = vpack.c.b16 %v511, %v507
    %v712 = vpack.c.b16 %v512, %v508
    %v713 = vpack.c.b16 %v513, %v509
    %v714 = vpack.c.b16 %v514, %v510
    %v715 = vpack.c.b16 %v519, %v515
    %v716 = vpack.c.b16 %v520, %v516
    %v717 = vpack.c.b16 %v521, %v517
    %v718 = vpack.c.b16 %v522, %v518
    %v719 = vpack.c.b16 %v527, %v523
    %v720 = vpack.c.b16 %v528, %v524
    %v721 = vpack.c.b16 %v529, %v525
    %v722 = vpack.c.b16 %v530, %v526
    %v723 = vpack.c.b16 %v535, %v531
    %v724 = vpack.c.b16 %v536, %v532
    %v725 = vpack.c.b16 %v537, %v533
    %v726 = vpack.c.b16 %v538, %v534
    %v727 = vpack.c.b16 %v543, %v539
    %v728 = vpack.c.b16 %v544, %v540
    %v729 = vpack.c.b16 %v545, %v541
    %v730 = vpack.c.b16 %v546, %v542
    %v731 = vpack.c.b16 %v551, %v547
    %v732 = vpack.c.b16 %v552, %v548
    %v733 = vpack.c.b16 %v553, %v549
    %v734 = vpack.c.b16 %v554, %v550
    %v735 = vpack.c.b16 %v559, %v555
    %v736 = vpack.c.b16 %v560, %v556
    %v737 = vpack.c.b16 %v561, %v557
    %v738 = vpack.c.b16 %v562, %v558
    %v739 = vpack.c.b16 %v567, %v563
    %v740 = vpack.c.b16 %v568, %v564
    %v741 = vpack.c.b16 %v569, %v565
    %v742 = vpack.c.b16 %v570, %v566
    %v743 = vpack.c.b16 %v575, %v571
    %v744 = vpack.c.b16 %v576, %v572
    %v745 = vpack.c.b16 %v577, %v573
    %v746 = vpack.c.b16 %v578, %v574
    %v747 = vpack.c.b16 %v583, %v579
    %v748 = vpack.c.b16 %v584, %v580
    %v749 = vpack.c.b16 %v585, %v581
    %v750 = vpack.c.b16 %v586, %v582
    %v751 = vpack.c.b16 %v591, %v587
    %v752 = vpack.c.b16 %v592, %v588
    %v753 = vpack.c.b16 %v593, %v589
    %v754 = vpack.c.b16 %v594, %v590
    %v755 = vpack.c.b16 %v599, %v595
    %v756 = vpack.c.b16 %v600, %v596
    %v757 = vpack.c.b16 %v601, %v597
    %v758 = vpack.c.b16 %v602, %v598
    %v759 = vpack.c.b16 %v607, %v603
    %v760 = vpack.c.b16 %v608, %v604
    %v761 = vpack.c.b16 %v609, %v605
    %v762 = vpack.c.b16 %v610, %v606
    %v763 = vpack.c.b16 %v615, %v611
    %v764 = vpack.c.b16 %v616, %v612
    %v765 = vpack.c.b16 %v617, %v613
    %v766 = vpack.c.b16 %v618, %v614
    %v767 = vpack.c.b16 %v623, %v619
    %v768 = vpack.c.b16 %v624, %v620
    %v769 = vpack.c.b16 %v625, %v621
    %v770 = vpack.c.b16 %v626, %v622
    %v771 = vpack.c.b16 %v631, %v627
    %v772 = vpack.c.b16 %v632, %v628
    %v773 = vpack.c.b16 %v633, %v629
    %v774 = vpack.c.b16 %v634, %v630
    %v775 = vpack.c.b16 %v639, %v635
    %v776 = vpack.c.b16 %v640, %v636
    %v777 = vpack.c.b16 %v641, %v637
    %v778 = vpack.c.b16 %v642, %v638
    %v779 = vpack.c.b16 %v647, %v643
    %v780 = vpack.c.b16 %v648, %v644
    %v781 = vpack.c.b16 %v649, %v645
    %v782 = vpack.c.b16 %v650, %v646
    %v783 = vpack.c.b16 %v655, %v651
    %v784 = vpack.c.b16 %v656, %v652
    %v785 = vpack.c.b16 %v657, %v653
    %v786 = vpack.c.b16 %v658, %v654
    %915 = vmatprep.subr.bf16.mxu0 %v688
    %916 = vmatpush1.bf16.msra.mxu0 %v687
    %917 = vmatprep.subr.bf16.mxu0 %v684
    %918 = vmatpush1.bf16.msra.mxu0 %v683
    %919 = vmatprep.subr.bf16.mxu0 %v680
    %920 = vmatpush1.bf16.msra.mxu0 %v679
    %921 = vmatprep.subr.bf16.mxu0 %v676
    %922 = vmatpush1.bf16.msra.mxu0 %v675
    %923 = vmatprep.subr.bf16.mxu0 %v672
    %924 = vmatpush1.bf16.msra.mxu0 %v671
    %925 = vmatprep.subr.bf16.mxu0 %v668
    %926 = vmatpush1.bf16.msra.mxu0 %v667
    %927 = vmatprep.subr.bf16.mxu0 %v664
    %928 = vmatpush1.bf16.msra.mxu0 %v663
    %929 = vmatprep.subr.bf16.mxu0 %v660
    %930 = vmatpush1.bf16.msra.mxu0 %v659
    %931 = vmatprep.subr.bf16.mxu0 %v720
    %932 = vmatpush2.bf16.msra.mxu0 %v719
    %933 = vmatprep.subr.bf16.mxu0 %v716
    %934 = vmatpush2.bf16.msra.mxu0 %v715
    %935 = vmatprep.subr.bf16.mxu0 %v712
    %936 = vmatpush2.bf16.msra.mxu0 %v711
    %937 = vmatprep.subr.bf16.mxu0 %v708
    %938 = vmatpush2.bf16.msra.mxu0 %v707
    %939 = vmatprep.subr.bf16.mxu0 %v704
    %940 = vmatpush2.bf16.msra.mxu0 %v703
    %941 = vmatprep.subr.bf16.mxu0 %v700
    %942 = vmatpush2.bf16.msra.mxu0 %v699
    %943 = vmatprep.subr.bf16.mxu0 %v696
    %944 = vmatpush2.bf16.msra.mxu0 %v695
    %945 = vmatprep.subr.bf16.mxu0 %v692
    %946 = vmatpush2.bf16.msra.mxu0 %v691
    %947 = vmatprep.mubr.bf16.mxu0 %v122
    %948 = vmatmul.mubr.bf16.gmra.mxu0 %v121
    %v949 = vpop.f32.mrf.mxu0
    %v950 = vadd.f32 %v258, %v949
    %v951 = vpop.f32.mrf.mxu0
    %v952 = vadd.f32 %v262, %v951
    %v953 = vpop.f32.mrf.mxu0
    %v954 = vadd.f32 %v258, %v953
    %v955 = vpop.f32.mrf.mxu0
    %v956 = vadd.f32 %v262, %v955
    %957 = vdwg.mxu0
    %958 = vmatprep.subr.bf16.mxu0 %v752
    %959 = vmatpush1.bf16.msra.mxu0 %v751
    %960 = vmatprep.subr.bf16.mxu0 %v748
    %961 = vmatpush1.bf16.msra.mxu0 %v747
    %962 = vmatprep.subr.bf16.mxu0 %v744
    %963 = vmatpush1.bf16.msra.mxu0 %v743
    %964 = vmatprep.subr.bf16.mxu0 %v740
    %965 = vmatpush1.bf16.msra.mxu0 %v739
    %966 = vmatprep.subr.bf16.mxu0 %v736
    %967 = vmatpush1.bf16.msra.mxu0 %v735
    %968 = vmatprep.subr.bf16.mxu0 %v732
    %969 = vmatpush1.bf16.msra.mxu0 %v731
    %970 = vmatprep.subr.bf16.mxu0 %v728
    %971 = vmatpush1.bf16.msra.mxu0 %v727
    %972 = vmatprep.subr.bf16.mxu0 %v724
    %973 = vmatpush1.bf16.msra.mxu0 %v723
    %974 = vmatprep.subr.bf16.mxu0 %v784
    %975 = vmatpush2.bf16.msra.mxu0 %v783
    %976 = vmatprep.subr.bf16.mxu0 %v780
    %977 = vmatpush2.bf16.msra.mxu0 %v779
    %978 = vmatprep.subr.bf16.mxu0 %v776
    %979 = vmatpush2.bf16.msra.mxu0 %v775
    %980 = vmatprep.subr.bf16.mxu0 %v772
    %981 = vmatpush2.bf16.msra.mxu0 %v771
    %982 = vmatprep.subr.bf16.mxu0 %v768
    %983 = vmatpush2.bf16.msra.mxu0 %v767
    %984 = vmatprep.subr.bf16.mxu0 %v764
    %985 = vmatpush2.bf16.msra.mxu0 %v763
    %986 = vmatprep.subr.bf16.mxu0 %v760
    %987 = vmatpush2.bf16.msra.mxu0 %v759
    %988 = vmatprep.subr.bf16.mxu0 %v756
    %989 = vmatpush2.bf16.msra.mxu0 %v755
    %990 = vmatprep.mubr.bf16.mxu0 %v124
    %991 = vmatmul.mubr.bf16.gmra.mxu0 %v123
    %v992 = vpop.f32.mrf.mxu0
    %v993 = vadd.f32 %v950, %v992
    %v994 = vpop.f32.mrf.mxu0
    %v995 = vadd.f32 %v952, %v994
    %v996 = vpop.f32.mrf.mxu0
    %v997 = vadd.f32 %v954, %v996
    %v998 = vpop.f32.mrf.mxu0
    %v999 = vadd.f32 %v956, %v998
    %1000 = vdwg.mxu0
    %1001 = vmatprep.subr.bf16.mxu0 %v690
    %1002 = vmatpush1.bf16.msra.mxu0 %v689
    %1003 = vmatprep.subr.bf16.mxu0 %v686
    %1004 = vmatpush1.bf16.msra.mxu0 %v685
    %1005 = vmatprep.subr.bf16.mxu0 %v682
    %1006 = vmatpush1.bf16.msra.mxu0 %v681
    %1007 = vmatprep.subr.bf16.mxu0 %v678
    %1008 = vmatpush1.bf16.msra.mxu0 %v677
    %1009 = vmatprep.subr.bf16.mxu0 %v674
    %1010 = vmatpush1.bf16.msra.mxu0 %v673
    %1011 = vmatprep.subr.bf16.mxu0 %v670
    %1012 = vmatpush1.bf16.msra.mxu0 %v669
    %1013 = vmatprep.subr.bf16.mxu0 %v666
    %1014 = vmatpush1.bf16.msra.mxu0 %v665
    %1015 = vmatprep.subr.bf16.mxu0 %v662
    %1016 = vmatpush1.bf16.msra.mxu0 %v661
    %1017 = vmatprep.subr.bf16.mxu0 %v722
    %1018 = vmatpush2.bf16.msra.mxu0 %v721
    %1019 = vmatprep.subr.bf16.mxu0 %v718
    %1020 = vmatpush2.bf16.msra.mxu0 %v717
    %1021 = vmatprep.subr.bf16.mxu0 %v714
    %1022 = vmatpush2.bf16.msra.mxu0 %v713
    %1023 = vmatprep.subr.bf16.mxu0 %v710
    %1024 = vmatpush2.bf16.msra.mxu0 %v709
    %1025 = vmatprep.subr.bf16.mxu0 %v706
    %1026 = vmatpush2.bf16.msra.mxu0 %v705
    %1027 = vmatprep.subr.bf16.mxu0 %v702
    %1028 = vmatpush2.bf16.msra.mxu0 %v701
    %1029 = vmatprep.subr.bf16.mxu0 %v698
    %1030 = vmatpush2.bf16.msra.mxu0 %v697
    %1031 = vmatprep.subr.bf16.mxu0 %v694
    %1032 = vmatpush2.bf16.msra.mxu0 %v693
    %1033 = vmatprep.mubr.bf16.mxu0 %v122
    %1034 = vmatmul.mubr.bf16.gmra.mxu0 %v121
    %v1035 = vpop.f32.mrf.mxu0
    %v1036 = vadd.f32 %v266, %v1035
    %v1037 = vpop.f32.mrf.mxu0
    %v1038 = vadd.f32 %v270, %v1037
    %v1039 = vpop.f32.mrf.mxu0
    %v1040 = vadd.f32 %v266, %v1039
    %v1041 = vpop.f32.mrf.mxu0
    %v1042 = vadd.f32 %v270, %v1041
    %1043 = vdwg.mxu0
    %1044 = vmatprep.subr.bf16.mxu0 %v754
    %1045 = vmatpush1.bf16.msra.mxu0 %v753
    %1046 = vmatprep.subr.bf16.mxu0 %v750
    %1047 = vmatpush1.bf16.msra.mxu0 %v749
    %1048 = vmatprep.subr.bf16.mxu0 %v746
    %1049 = vmatpush1.bf16.msra.mxu0 %v745
    %1050 = vmatprep.subr.bf16.mxu0 %v742
    %1051 = vmatpush1.bf16.msra.mxu0 %v741
    %1052 = vmatprep.subr.bf16.mxu0 %v738
    %1053 = vmatpush1.bf16.msra.mxu0 %v737
    %1054 = vmatprep.subr.bf16.mxu0 %v734
    %1055 = vmatpush1.bf16.msra.mxu0 %v733
    %1056 = vmatprep.subr.bf16.mxu0 %v730
    %1057 = vmatpush1.bf16.msra.mxu0 %v729
    %1058 = vmatprep.subr.bf16.mxu0 %v726
    %1059 = vmatpush1.bf16.msra.mxu0 %v725
    %1060 = vmatprep.subr.bf16.mxu0 %v786
    %1061 = vmatpush2.bf16.msra.mxu0 %v785
    %1062 = vmatprep.subr.bf16.mxu0 %v782
    %1063 = vmatpush2.bf16.msra.mxu0 %v781
    %1064 = vmatprep.subr.bf16.mxu0 %v778
    %1065 = vmatpush2.bf16.msra.mxu0 %v777
    %1066 = vmatprep.subr.bf16.mxu0 %v774
    %1067 = vmatpush2.bf16.msra.mxu0 %v773
    %1068 = vmatprep.subr.bf16.mxu0 %v770
    %1069 = vmatpush2.bf16.msra.mxu0 %v769
    %1070 = vmatprep.subr.bf16.mxu0 %v766
    %1071 = vmatpush2.bf16.msra.mxu0 %v765
    %1072 = vmatprep.subr.bf16.mxu0 %v762
    %1073 = vmatpush2.bf16.msra.mxu0 %v761
    %1074 = vmatprep.subr.bf16.mxu0 %v758
    %1075 = vmatpush2.bf16.msra.mxu0 %v757
    %1076 = vmatprep.mubr.bf16.mxu0 %v124
    %1077 = vmatmul.mubr.bf16.gmra.mxu0 %v123
    %v1078 = vpop.f32.mrf.mxu0
    %v1079 = vadd.f32 %v1036, %v1078
    %v1080 = vpop.f32.mrf.mxu0
    %v1081 = vadd.f32 %v1038, %v1080
    %v1082 = vpop.f32.mrf.mxu0
    %v1083 = vadd.f32 %v1040, %v1082
    %v1084 = vpop.f32.mrf.mxu0
    %v1085 = vadd.f32 %v1042, %v1084
    %1086 = vdwg.mxu0
    %v1087 = vmax.f32 %v993, 0.0
    %v1088 = vmax.f32 %v995, 0.0
    %v1089 = vmax.f32 %v1079, 0.0
    %v1090 = vmax.f32 %v1081, 0.0
    %v1091 = vmax.f32 %v997, 0.0
    %v1092 = vmax.f32 %v999, 0.0
    %v1093 = vmax.f32 %v1083, 0.0
    %v1094 = vmax.f32 %v1085, 0.0
    %v1095 = vpack.c.bf16 %v1091, %v1087
    %v1096 = vpack.c.bf16 %v1092, %v1088
    %v1097 = vpack.c.bf16 %v1093, %v1089
    %v1098 = vpack.c.bf16 %v1094, %v1090
    %v1099 = vld [vmem:[#allocation8] sm:$0xff]
    %v1100 = vld [vmem:[#allocation8 + $0x8] sm:$0xff]
    %v1101 = vld [vmem:[#allocation8 + $0x10] sm:$0xff]
    %v1102 = vld [vmem:[#allocation8 + $0x18] sm:$0xff]
    %v1103 = vld [vmem:[#allocation8 + $0x20] sm:$0xff]
    %v1104 = vld [vmem:[#allocation8 + $0x28] sm:$0xff]
    %v1105 = vld [vmem:[#allocation8 + $0x30] sm:$0xff]
    %v1106 = vld [vmem:[#allocation8 + $0x38] sm:$0xff]
    %v1107 = vld [vmem:[#allocation8 + $0x40] sm:$0xff]
    %v1108 = vld [vmem:[#allocation8 + $0x48] sm:$0xff]
    %v1109 = vld [vmem:[#allocation8 + $0x50] sm:$0xff]
    %v1110 = vld [vmem:[#allocation8 + $0x58] sm:$0xff]
    %v1111 = vld [vmem:[#allocation8 + $0x60] sm:$0xff]
    %v1112 = vld [vmem:[#allocation8 + $0x68] sm:$0xff]
    %v1113 = vld [vmem:[#allocation8 + $0x70] sm:$0xff]
    %v1114 = vld [vmem:[#allocation8 + $0x78] sm:$0xff]
    %v1115 = vld [vmem:[#allocation8 + $0x80] sm:$0xff]
    %v1116 = vld [vmem:[#allocation8 + $0x88] sm:$0xff]
    %v1117 = vld [vmem:[#allocation8 + $0x90] sm:$0xff]
    %v1118 = vld [vmem:[#allocation8 + $0x98] sm:$0xff]
    %v1119 = vld [vmem:[#allocation8 + $0xa0] sm:$0xff]
    %v1120 = vld [vmem:[#allocation8 + $0xa8] sm:$0xff]
    %v1121 = vld [vmem:[#allocation8 + $0xb0] sm:$0xff]
    %v1122 = vld [vmem:[#allocation8 + $0xb8] sm:$0xff]
    %v1123 = vld [vmem:[#allocation8 + $0xc0] sm:$0xff]
    %v1124 = vld [vmem:[#allocation8 + $0xc8] sm:$0xff]
    %v1125 = vld [vmem:[#allocation8 + $0xd0] sm:$0xff]
    %v1126 = vld [vmem:[#allocation8 + $0xd8] sm:$0xff]
    %v1127 = vld [vmem:[#allocation8 + $0xe0] sm:$0xff]
    %v1128 = vld [vmem:[#allocation8 + $0xe8] sm:$0xff]
    %v1129 = vld [vmem:[#allocation8 + $0xf0] sm:$0xff]
    %v1130 = vld [vmem:[#allocation8 + $0xf8] sm:$0xff]
    %v1131 = vld [vmem:[#allocation8 + $0x100] sm:$0xff]
    %v1132 = vld [vmem:[#allocation8 + $0x108] sm:$0xff]
    %v1133 = vld [vmem:[#allocation8 + $0x110] sm:$0xff]
    %v1134 = vld [vmem:[#allocation8 + $0x118] sm:$0xff]
    %v1135 = vld [vmem:[#allocation8 + $0x120] sm:$0xff]
    %v1136 = vld [vmem:[#allocation8 + $0x128] sm:$0xff]
    %v1137 = vld [vmem:[#allocation8 + $0x130] sm:$0xff]
    %v1138 = vld [vmem:[#allocation8 + $0x138] sm:$0xff]
    %v1139 = vld [vmem:[#allocation8 + $0x140] sm:$0xff]
    %v1140 = vld [vmem:[#allocation8 + $0x148] sm:$0xff]
    %v1141 = vld [vmem:[#allocation8 + $0x150] sm:$0xff]
    %v1142 = vld [vmem:[#allocation8 + $0x158] sm:$0xff]
    %v1143 = vld [vmem:[#allocation8 + $0x160] sm:$0xff]
    %v1144 = vld [vmem:[#allocation8 + $0x168] sm:$0xff]
    %v1145 = vld [vmem:[#allocation8 + $0x170] sm:$0xff]
    %v1146 = vld [vmem:[#allocation8 + $0x178] sm:$0xff]
    %v1147 = vld [vmem:[#allocation8 + $0x180] sm:$0xff]
    %v1148 = vld [vmem:[#allocation8 + $0x188] sm:$0xff]
    %v1149 = vld [vmem:[#allocation8 + $0x190] sm:$0xff]
    %v1150 = vld [vmem:[#allocation8 + $0x198] sm:$0xff]
    %v1151 = vld [vmem:[#allocation8 + $0x1a0] sm:$0xff]
    %v1152 = vld [vmem:[#allocation8 + $0x1a8] sm:$0xff]
    %v1153 = vld [vmem:[#allocation8 + $0x1b0] sm:$0xff]
    %v1154 = vld [vmem:[#allocation8 + $0x1b8] sm:$0xff]
    %v1155 = vld [vmem:[#allocation8 + $0x1c0] sm:$0xff]
    %v1156 = vld [vmem:[#allocation8 + $0x1c8] sm:$0xff]
    %v1157 = vld [vmem:[#allocation8 + $0x1d0] sm:$0xff]
    %v1158 = vld [vmem:[#allocation8 + $0x1d8] sm:$0xff]
    %v1159 = vld [vmem:[#allocation8 + $0x1e0] sm:$0xff]
    %v1160 = vld [vmem:[#allocation8 + $0x1e8] sm:$0xff]
    %v1161 = vld [vmem:[#allocation8 + $0x1f0] sm:$0xff]
    %v1162 = vld [vmem:[#allocation8 + $0x1f8] sm:$0xff]
    %v1163 = vld [vmem:[#allocation8 + $0x200] sm:$0xff]
    %v1164 = vld [vmem:[#allocation8 + $0x208] sm:$0xff]
    %v1165 = vld [vmem:[#allocation8 + $0x210] sm:$0xff]
    %v1166 = vld [vmem:[#allocation8 + $0x218] sm:$0xff]
    %v1167 = vld [vmem:[#allocation8 + $0x220] sm:$0xff]
    %v1168 = vld [vmem:[#allocation8 + $0x228] sm:$0xff]
    %v1169 = vld [vmem:[#allocation8 + $0x230] sm:$0xff]
    %v1170 = vld [vmem:[#allocation8 + $0x238] sm:$0xff]
    %v1171 = vld [vmem:[#allocation8 + $0x240] sm:$0xff]
    %v1172 = vld [vmem:[#allocation8 + $0x248] sm:$0xff]
    %v1173 = vld [vmem:[#allocation8 + $0x250] sm:$0xff]
    %v1174 = vld [vmem:[#allocation8 + $0x258] sm:$0xff]
    %v1175 = vld [vmem:[#allocation8 + $0x260] sm:$0xff]
    %v1176 = vld [vmem:[#allocation8 + $0x268] sm:$0xff]
    %v1177 = vld [vmem:[#allocation8 + $0x270] sm:$0xff]
    %v1178 = vld [vmem:[#allocation8 + $0x278] sm:$0xff]
    %v1179 = vld [vmem:[#allocation8 + $0x280] sm:$0xff]
    %v1180 = vld [vmem:[#allocation8 + $0x288] sm:$0xff]
    %v1181 = vld [vmem:[#allocation8 + $0x290] sm:$0xff]
    %v1182 = vld [vmem:[#allocation8 + $0x298] sm:$0xff]
    %v1183 = vld [vmem:[#allocation8 + $0x2a0] sm:$0xff]
    %v1184 = vld [vmem:[#allocation8 + $0x2a8] sm:$0xff]
    %v1185 = vld [vmem:[#allocation8 + $0x2b0] sm:$0xff]
    %v1186 = vld [vmem:[#allocation8 + $0x2b8] sm:$0xff]
    %v1187 = vld [vmem:[#allocation8 + $0x2c0] sm:$0xff]
    %v1188 = vld [vmem:[#allocation8 + $0x2c8] sm:$0xff]
    %v1189 = vld [vmem:[#allocation8 + $0x2d0] sm:$0xff]
    %v1190 = vld [vmem:[#allocation8 + $0x2d8] sm:$0xff]
    %v1191 = vld [vmem:[#allocation8 + $0x2e0] sm:$0xff]
    %v1192 = vld [vmem:[#allocation8 + $0x2e8] sm:$0xff]
    %v1193 = vld [vmem:[#allocation8 + $0x2f0] sm:$0xff]
    %v1194 = vld [vmem:[#allocation8 + $0x2f8] sm:$0xff]
    %v1195 = vld [vmem:[#allocation8 + $0x300] sm:$0xff]
    %v1196 = vld [vmem:[#allocation8 + $0x308] sm:$0xff]
    %v1197 = vld [vmem:[#allocation8 + $0x310] sm:$0xff]
    %v1198 = vld [vmem:[#allocation8 + $0x318] sm:$0xff]
    %v1199 = vld [vmem:[#allocation8 + $0x320] sm:$0xff]
    %v1200 = vld [vmem:[#allocation8 + $0x328] sm:$0xff]
    %v1201 = vld [vmem:[#allocation8 + $0x330] sm:$0xff]
    %v1202 = vld [vmem:[#allocation8 + $0x338] sm:$0xff]
    %v1203 = vld [vmem:[#allocation8 + $0x340] sm:$0xff]
    %v1204 = vld [vmem:[#allocation8 + $0x348] sm:$0xff]
    %v1205 = vld [vmem:[#allocation8 + $0x350] sm:$0xff]
    %v1206 = vld [vmem:[#allocation8 + $0x358] sm:$0xff]
    %v1207 = vld [vmem:[#allocation8 + $0x360] sm:$0xff]
    %v1208 = vld [vmem:[#allocation8 + $0x368] sm:$0xff]
    %v1209 = vld [vmem:[#allocation8 + $0x370] sm:$0xff]
    %v1210 = vld [vmem:[#allocation8 + $0x378] sm:$0xff]
    %v1211 = vld [vmem:[#allocation8 + $0x380] sm:$0xff]
    %v1212 = vld [vmem:[#allocation8 + $0x388] sm:$0xff]
    %v1213 = vld [vmem:[#allocation8 + $0x390] sm:$0xff]
    %v1214 = vld [vmem:[#allocation8 + $0x398] sm:$0xff]
    %v1215 = vld [vmem:[#allocation8 + $0x3a0] sm:$0xff]
    %v1216 = vld [vmem:[#allocation8 + $0x3a8] sm:$0xff]
    %v1217 = vld [vmem:[#allocation8 + $0x3b0] sm:$0xff]
    %v1218 = vld [vmem:[#allocation8 + $0x3b8] sm:$0xff]
    %v1219 = vld [vmem:[#allocation8 + $0x3c0] sm:$0xff]
    %v1220 = vld [vmem:[#allocation8 + $0x3c8] sm:$0xff]
    %v1221 = vld [vmem:[#allocation8 + $0x3d0] sm:$0xff]
    %v1222 = vld [vmem:[#allocation8 + $0x3d8] sm:$0xff]
    %v1223 = vld [vmem:[#allocation8 + $0x3e0] sm:$0xff]
    %v1224 = vld [vmem:[#allocation8 + $0x3e8] sm:$0xff]
    %v1225 = vld [vmem:[#allocation8 + $0x3f0] sm:$0xff]
    %v1226 = vld [vmem:[#allocation8 + $0x3f8] sm:$0xff]
    %v1227 = vld [vmem:[%s4] sm:$0xf]
    %v1229 = vlaneseq
    %v1230 = vshrl.u32 %v1229, 7
    %v1231 = vsub.s32 0, %v1230
    %v1232 = vrot.slane %v1227, %v1231
    %v1233 = vlaneseq
    %v1234 = vshrl.u32 %v1233, 7
    %v1235 = vsub.s32 1, %v1234
    %v1236 = vrot.slane %v1227, %v1235
    %v1237 = vlaneseq
    %v1238 = vshrl.u32 %v1237, 7
    %v1239 = vsub.s32 2, %v1238
    %v1240 = vrot.slane %v1227, %v1239
    %v1241 = vlaneseq
    %v1242 = vshrl.u32 %v1241, 7
    %v1243 = vsub.s32 3, %v1242
    %v1244 = vrot.slane %v1227, %v1243
    %v1377 = vunpack.c.l.b16 %v1099
    %v1378 = vunpack.c.h.b16 %v1099
    %v1379 = vunpack.c.l.b16 %v1100
    %v1380 = vunpack.c.h.b16 %v1100
    %v1381 = vunpack.c.l.b16 %v1101
    %v1382 = vunpack.c.h.b16 %v1101
    %v1383 = vunpack.c.l.b16 %v1102
    %v1384 = vunpack.c.h.b16 %v1102
    %v1385 = vunpack.c.l.b16 %v1103
    %v1386 = vunpack.c.h.b16 %v1103
    %v1387 = vunpack.c.l.b16 %v1104
    %v1388 = vunpack.c.h.b16 %v1104
    %v1389 = vunpack.c.l.b16 %v1105
    %v1390 = vunpack.c.h.b16 %v1105
    %v1391 = vunpack.c.l.b16 %v1106
    %v1392 = vunpack.c.h.b16 %v1106
    %v1393 = vunpack.c.l.b16 %v1107
    %v1394 = vunpack.c.h.b16 %v1107
    %v1395 = vunpack.c.l.b16 %v1108
    %v1396 = vunpack.c.h.b16 %v1108
    %v1397 = vunpack.c.l.b16 %v1109
    %v1398 = vunpack.c.h.b16 %v1109
    %v1399 = vunpack.c.l.b16 %v1110
    %v1400 = vunpack.c.h.b16 %v1110
    %v1401 = vunpack.c.l.b16 %v1111
    %v1402 = vunpack.c.h.b16 %v1111
    %v1403 = vunpack.c.l.b16 %v1112
    %v1404 = vunpack.c.h.b16 %v1112
    %v1405 = vunpack.c.l.b16 %v1113
    %v1406 = vunpack.c.h.b16 %v1113
    %v1407 = vunpack.c.l.b16 %v1114
    %v1408 = vunpack.c.h.b16 %v1114
    %v1409 = vunpack.c.l.b16 %v1115
    %v1410 = vunpack.c.h.b16 %v1115
    %v1411 = vunpack.c.l.b16 %v1116
    %v1412 = vunpack.c.h.b16 %v1116
    %v1413 = vunpack.c.l.b16 %v1117
    %v1414 = vunpack.c.h.b16 %v1117
    %v1415 = vunpack.c.l.b16 %v1118
    %v1416 = vunpack.c.h.b16 %v1118
    %v1417 = vunpack.c.l.b16 %v1119
    %v1418 = vunpack.c.h.b16 %v1119
    %v1419 = vunpack.c.l.b16 %v1120
    %v1420 = vunpack.c.h.b16 %v1120
    %v1421 = vunpack.c.l.b16 %v1121
    %v1422 = vunpack.c.h.b16 %v1121
    %v1423 = vunpack.c.l.b16 %v1122
    %v1424 = vunpack.c.h.b16 %v1122
    %v1425 = vunpack.c.l.b16 %v1123
    %v1426 = vunpack.c.h.b16 %v1123
    %v1427 = vunpack.c.l.b16 %v1124
    %v1428 = vunpack.c.h.b16 %v1124
    %v1429 = vunpack.c.l.b16 %v1125
    %v1430 = vunpack.c.h.b16 %v1125
    %v1431 = vunpack.c.l.b16 %v1126
    %v1432 = vunpack.c.h.b16 %v1126
    %v1433 = vunpack.c.l.b16 %v1127
    %v1434 = vunpack.c.h.b16 %v1127
    %v1435 = vunpack.c.l.b16 %v1128
    %v1436 = vunpack.c.h.b16 %v1128
    %v1437 = vunpack.c.l.b16 %v1129
    %v1438 = vunpack.c.h.b16 %v1129
    %v1439 = vunpack.c.l.b16 %v1130
    %v1440 = vunpack.c.h.b16 %v1130
    %v1441 = vunpack.c.l.b16 %v1131
    %v1442 = vunpack.c.h.b16 %v1131
    %v1443 = vunpack.c.l.b16 %v1132
    %v1444 = vunpack.c.h.b16 %v1132
    %v1445 = vunpack.c.l.b16 %v1133
    %v1446 = vunpack.c.h.b16 %v1133
    %v1447 = vunpack.c.l.b16 %v1134
    %v1448 = vunpack.c.h.b16 %v1134
    %v1449 = vunpack.c.l.b16 %v1135
    %v1450 = vunpack.c.h.b16 %v1135
    %v1451 = vunpack.c.l.b16 %v1136
    %v1452 = vunpack.c.h.b16 %v1136
    %v1453 = vunpack.c.l.b16 %v1137
    %v1454 = vunpack.c.h.b16 %v1137
    %v1455 = vunpack.c.l.b16 %v1138
    %v1456 = vunpack.c.h.b16 %v1138
    %v1457 = vunpack.c.l.b16 %v1139
    %v1458 = vunpack.c.h.b16 %v1139
    %v1459 = vunpack.c.l.b16 %v1140
    %v1460 = vunpack.c.h.b16 %v1140
    %v1461 = vunpack.c.l.b16 %v1141
    %v1462 = vunpack.c.h.b16 %v1141
    %v1463 = vunpack.c.l.b16 %v1142
    %v1464 = vunpack.c.h.b16 %v1142
    %v1465 = vunpack.c.l.b16 %v1143
    %v1466 = vunpack.c.h.b16 %v1143
    %v1467 = vunpack.c.l.b16 %v1144
    %v1468 = vunpack.c.h.b16 %v1144
    %v1469 = vunpack.c.l.b16 %v1145
    %v1470 = vunpack.c.h.b16 %v1145
    %v1471 = vunpack.c.l.b16 %v1146
    %v1472 = vunpack.c.h.b16 %v1146
    %v1473 = vunpack.c.l.b16 %v1147
    %v1474 = vunpack.c.h.b16 %v1147
    %v1475 = vunpack.c.l.b16 %v1148
    %v1476 = vunpack.c.h.b16 %v1148
    %v1477 = vunpack.c.l.b16 %v1149
    %v1478 = vunpack.c.h.b16 %v1149
    %v1479 = vunpack.c.l.b16 %v1150
    %v1480 = vunpack.c.h.b16 %v1150
    %v1481 = vunpack.c.l.b16 %v1151
    %v1482 = vunpack.c.h.b16 %v1151
    %v1483 = vunpack.c.l.b16 %v1152
    %v1484 = vunpack.c.h.b16 %v1152
    %v1485 = vunpack.c.l.b16 %v1153
    %v1486 = vunpack.c.h.b16 %v1153
    %v1487 = vunpack.c.l.b16 %v1154
    %v1488 = vunpack.c.h.b16 %v1154
    %v1489 = vunpack.c.l.b16 %v1155
    %v1490 = vunpack.c.h.b16 %v1155
    %v1491 = vunpack.c.l.b16 %v1156
    %v1492 = vunpack.c.h.b16 %v1156
    %v1493 = vunpack.c.l.b16 %v1157
    %v1494 = vunpack.c.h.b16 %v1157
    %v1495 = vunpack.c.l.b16 %v1158
    %v1496 = vunpack.c.h.b16 %v1158
    %v1497 = vunpack.c.l.b16 %v1159
    %v1498 = vunpack.c.h.b16 %v1159
    %v1499 = vunpack.c.l.b16 %v1160
    %v1500 = vunpack.c.h.b16 %v1160
    %v1501 = vunpack.c.l.b16 %v1161
    %v1502 = vunpack.c.h.b16 %v1161
    %v1503 = vunpack.c.l.b16 %v1162
    %v1504 = vunpack.c.h.b16 %v1162
    %v1505 = vunpack.c.l.b16 %v1163
    %v1506 = vunpack.c.h.b16 %v1163
    %v1507 = vunpack.c.l.b16 %v1164
    %v1508 = vunpack.c.h.b16 %v1164
    %v1509 = vunpack.c.l.b16 %v1165
    %v1510 = vunpack.c.h.b16 %v1165
    %v1511 = vunpack.c.l.b16 %v1166
    %v1512 = vunpack.c.h.b16 %v1166
    %v1513 = vunpack.c.l.b16 %v1167
    %v1514 = vunpack.c.h.b16 %v1167
    %v1515 = vunpack.c.l.b16 %v1168
    %v1516 = vunpack.c.h.b16 %v1168
    %v1517 = vunpack.c.l.b16 %v1169
    %v1518 = vunpack.c.h.b16 %v1169
    %v1519 = vunpack.c.l.b16 %v1170
    %v1520 = vunpack.c.h.b16 %v1170
    %v1521 = vunpack.c.l.b16 %v1171
    %v1522 = vunpack.c.h.b16 %v1171
    %v1523 = vunpack.c.l.b16 %v1172
    %v1524 = vunpack.c.h.b16 %v1172
    %v1525 = vunpack.c.l.b16 %v1173
    %v1526 = vunpack.c.h.b16 %v1173
    %v1527 = vunpack.c.l.b16 %v1174
    %v1528 = vunpack.c.h.b16 %v1174
    %v1529 = vunpack.c.l.b16 %v1175
    %v1530 = vunpack.c.h.b16 %v1175
    %v1531 = vunpack.c.l.b16 %v1176
    %v1532 = vunpack.c.h.b16 %v1176
    %v1533 = vunpack.c.l.b16 %v1177
    %v1534 = vunpack.c.h.b16 %v1177
    %v1535 = vunpack.c.l.b16 %v1178
    %v1536 = vunpack.c.h.b16 %v1178
    %v1537 = vunpack.c.l.b16 %v1179
    %v1538 = vunpack.c.h.b16 %v1179
    %v1539 = vunpack.c.l.b16 %v1180
    %v1540 = vunpack.c.h.b16 %v1180
    %v1541 = vunpack.c.l.b16 %v1181
    %v1542 = vunpack.c.h.b16 %v1181
    %v1543 = vunpack.c.l.b16 %v1182
    %v1544 = vunpack.c.h.b16 %v1182
    %v1545 = vunpack.c.l.b16 %v1183
    %v1546 = vunpack.c.h.b16 %v1183
    %v1547 = vunpack.c.l.b16 %v1184
    %v1548 = vunpack.c.h.b16 %v1184
    %v1549 = vunpack.c.l.b16 %v1185
    %v1550 = vunpack.c.h.b16 %v1185
    %v1551 = vunpack.c.l.b16 %v1186
    %v1552 = vunpack.c.h.b16 %v1186
    %v1553 = vunpack.c.l.b16 %v1187
    %v1554 = vunpack.c.h.b16 %v1187
    %v1555 = vunpack.c.l.b16 %v1188
    %v1556 = vunpack.c.h.b16 %v1188
    %v1557 = vunpack.c.l.b16 %v1189
    %v1558 = vunpack.c.h.b16 %v1189
    %v1559 = vunpack.c.l.b16 %v1190
    %v1560 = vunpack.c.h.b16 %v1190
    %v1561 = vunpack.c.l.b16 %v1191
    %v1562 = vunpack.c.h.b16 %v1191
    %v1563 = vunpack.c.l.b16 %v1192
    %v1564 = vunpack.c.h.b16 %v1192
    %v1565 = vunpack.c.l.b16 %v1193
    %v1566 = vunpack.c.h.b16 %v1193
    %v1567 = vunpack.c.l.b16 %v1194
    %v1568 = vunpack.c.h.b16 %v1194
    %v1569 = vunpack.c.l.b16 %v1195
    %v1570 = vunpack.c.h.b16 %v1195
    %v1571 = vunpack.c.l.b16 %v1196
    %v1572 = vunpack.c.h.b16 %v1196
    %v1573 = vunpack.c.l.b16 %v1197
    %v1574 = vunpack.c.h.b16 %v1197
    %v1575 = vunpack.c.l.b16 %v1198
    %v1576 = vunpack.c.h.b16 %v1198
    %v1577 = vunpack.c.l.b16 %v1199
    %v1578 = vunpack.c.h.b16 %v1199
    %v1579 = vunpack.c.l.b16 %v1200
    %v1580 = vunpack.c.h.b16 %v1200
    %v1581 = vunpack.c.l.b16 %v1201
    %v1582 = vunpack.c.h.b16 %v1201
    %v1583 = vunpack.c.l.b16 %v1202
    %v1584 = vunpack.c.h.b16 %v1202
    %v1585 = vunpack.c.l.b16 %v1203
    %v1586 = vunpack.c.h.b16 %v1203
    %v1587 = vunpack.c.l.b16 %v1204
    %v1588 = vunpack.c.h.b16 %v1204
    %v1589 = vunpack.c.l.b16 %v1205
    %v1590 = vunpack.c.h.b16 %v1205
    %v1591 = vunpack.c.l.b16 %v1206
    %v1592 = vunpack.c.h.b16 %v1206
    %v1593 = vunpack.c.l.b16 %v1207
    %v1594 = vunpack.c.h.b16 %v1207
    %v1595 = vunpack.c.l.b16 %v1208
    %v1596 = vunpack.c.h.b16 %v1208
    %v1597 = vunpack.c.l.b16 %v1209
    %v1598 = vunpack.c.h.b16 %v1209
    %v1599 = vunpack.c.l.b16 %v1210
    %v1600 = vunpack.c.h.b16 %v1210
    %v1601 = vunpack.c.l.b16 %v1211
    %v1602 = vunpack.c.h.b16 %v1211
    %v1603 = vunpack.c.l.b16 %v1212
    %v1604 = vunpack.c.h.b16 %v1212
    %v1605 = vunpack.c.l.b16 %v1213
    %v1606 = vunpack.c.h.b16 %v1213
    %v1607 = vunpack.c.l.b16 %v1214
    %v1608 = vunpack.c.h.b16 %v1214
    %v1609 = vunpack.c.l.b16 %v1215
    %v1610 = vunpack.c.h.b16 %v1215
    %v1611 = vunpack.c.l.b16 %v1216
    %v1612 = vunpack.c.h.b16 %v1216
    %v1613 = vunpack.c.l.b16 %v1217
    %v1614 = vunpack.c.h.b16 %v1217
    %v1615 = vunpack.c.l.b16 %v1218
    %v1616 = vunpack.c.h.b16 %v1218
    %v1617 = vunpack.c.l.b16 %v1219
    %v1618 = vunpack.c.h.b16 %v1219
    %v1619 = vunpack.c.l.b16 %v1220
    %v1620 = vunpack.c.h.b16 %v1220
    %v1621 = vunpack.c.l.b16 %v1221
    %v1622 = vunpack.c.h.b16 %v1221
    %v1623 = vunpack.c.l.b16 %v1222
    %v1624 = vunpack.c.h.b16 %v1222
    %v1625 = vunpack.c.l.b16 %v1223
    %v1626 = vunpack.c.h.b16 %v1223
    %v1627 = vunpack.c.l.b16 %v1224
    %v1628 = vunpack.c.h.b16 %v1224
    %v1629 = vunpack.c.l.b16 %v1225
    %v1630 = vunpack.c.h.b16 %v1225
    %v1631 = vunpack.c.l.b16 %v1226
    %v1632 = vunpack.c.h.b16 %v1226
    %v1633 = vpack.c.b16 %v1381, %v1377
    %v1634 = vpack.c.b16 %v1382, %v1378
    %v1635 = vpack.c.b16 %v1383, %v1379
    %v1636 = vpack.c.b16 %v1384, %v1380
    %v1637 = vpack.c.b16 %v1389, %v1385
    %v1638 = vpack.c.b16 %v1390, %v1386
    %v1639 = vpack.c.b16 %v1391, %v1387
    %v1640 = vpack.c.b16 %v1392, %v1388
    %v1641 = vpack.c.b16 %v1397, %v1393
    %v1642 = vpack.c.b16 %v1398, %v1394
    %v1643 = vpack.c.b16 %v1399, %v1395
    %v1644 = vpack.c.b16 %v1400, %v1396
    %v1645 = vpack.c.b16 %v1405, %v1401
    %v1646 = vpack.c.b16 %v1406, %v1402
    %v1647 = vpack.c.b16 %v1407, %v1403
    %v1648 = vpack.c.b16 %v1408, %v1404
    %v1649 = vpack.c.b16 %v1413, %v1409
    %v1650 = vpack.c.b16 %v1414, %v1410
    %v1651 = vpack.c.b16 %v1415, %v1411
    %v1652 = vpack.c.b16 %v1416, %v1412
    %v1653 = vpack.c.b16 %v1421, %v1417
    %v1654 = vpack.c.b16 %v1422, %v1418
    %v1655 = vpack.c.b16 %v1423, %v1419
    %v1656 = vpack.c.b16 %v1424, %v1420
    %v1657 = vpack.c.b16 %v1429, %v1425
    %v1658 = vpack.c.b16 %v1430, %v1426
    %v1659 = vpack.c.b16 %v1431, %v1427
    %v1660 = vpack.c.b16 %v1432, %v1428
    %v1661 = vpack.c.b16 %v1437, %v1433
    %v1662 = vpack.c.b16 %v1438, %v1434
    %v1663 = vpack.c.b16 %v1439, %v1435
    %v1664 = vpack.c.b16 %v1440, %v1436
    %v1665 = vpack.c.b16 %v1445, %v1441
    %v1666 = vpack.c.b16 %v1446, %v1442
    %v1667 = vpack.c.b16 %v1447, %v1443
    %v1668 = vpack.c.b16 %v1448, %v1444
    %v1669 = vpack.c.b16 %v1453, %v1449
    %v1670 = vpack.c.b16 %v1454, %v1450
    %v1671 = vpack.c.b16 %v1455, %v1451
    %v1672 = vpack.c.b16 %v1456, %v1452
    %v1673 = vpack.c.b16 %v1461, %v1457
    %v1674 = vpack.c.b16 %v1462, %v1458
    %v1675 = vpack.c.b16 %v1463, %v1459
    %v1676 = vpack.c.b16 %v1464, %v1460
    %v1677 = vpack.c.b16 %v1469, %v1465
    %v1678 = vpack.c.b16 %v1470, %v1466
    %v1679 = vpack.c.b16 %v1471, %v1467
    %v1680 = vpack.c.b16 %v1472, %v1468
    %v1681 = vpack.c.b16 %v1477, %v1473
    %v1682 = vpack.c.b16 %v1478, %v1474
    %v1683 = vpack.c.b16 %v1479, %v1475
    %v1684 = vpack.c.b16 %v1480, %v1476
    %v1685 = vpack.c.b16 %v1485, %v1481
    %v1686 = vpack.c.b16 %v1486, %v1482
    %v1687 = vpack.c.b16 %v1487, %v1483
    %v1688 = vpack.c.b16 %v1488, %v1484
    %v1689 = vpack.c.b16 %v1493, %v1489
    %v1690 = vpack.c.b16 %v1494, %v1490
    %v1691 = vpack.c.b16 %v1495, %v1491
    %v1692 = vpack.c.b16 %v1496, %v1492
    %v1693 = vpack.c.b16 %v1501, %v1497
    %v1694 = vpack.c.b16 %v1502, %v1498
    %v1695 = vpack.c.b16 %v1503, %v1499
    %v1696 = vpack.c.b16 %v1504, %v1500
    %v1697 = vpack.c.b16 %v1509, %v1505
    %v1698 = vpack.c.b16 %v1510, %v1506
    %v1699 = vpack.c.b16 %v1511, %v1507
    %v1700 = vpack.c.b16 %v1512, %v1508
    %v1701 = vpack.c.b16 %v1517, %v1513
    %v1702 = vpack.c.b16 %v1518, %v1514
    %v1703 = vpack.c.b16 %v1519, %v1515
    %v1704 = vpack.c.b16 %v1520, %v1516
    %v1705 = vpack.c.b16 %v1525, %v1521
    %v1706 = vpack.c.b16 %v1526, %v1522
    %v1707 = vpack.c.b16 %v1527, %v1523
    %v1708 = vpack.c.b16 %v1528, %v1524
    %v1709 = vpack.c.b16 %v1533, %v1529
    %v1710 = vpack.c.b16 %v1534, %v1530
    %v1711 = vpack.c.b16 %v1535, %v1531
    %v1712 = vpack.c.b16 %v1536, %v1532
    %v1713 = vpack.c.b16 %v1541, %v1537
    %v1714 = vpack.c.b16 %v1542, %v1538
    %v1715 = vpack.c.b16 %v1543, %v1539
    %v1716 = vpack.c.b16 %v1544, %v1540
    %v1717 = vpack.c.b16 %v1549, %v1545
    %v1718 = vpack.c.b16 %v1550, %v1546
    %v1719 = vpack.c.b16 %v1551, %v1547
    %v1720 = vpack.c.b16 %v1552, %v1548
    %v1721 = vpack.c.b16 %v1557, %v1553
    %v1722 = vpack.c.b16 %v1558, %v1554
    %v1723 = vpack.c.b16 %v1559, %v1555
    %v1724 = vpack.c.b16 %v1560, %v1556
    %v1725 = vpack.c.b16 %v1565, %v1561
    %v1726 = vpack.c.b16 %v1566, %v1562
    %v1727 = vpack.c.b16 %v1567, %v1563
    %v1728 = vpack.c.b16 %v1568, %v1564
    %v1729 = vpack.c.b16 %v1573, %v1569
    %v1730 = vpack.c.b16 %v1574, %v1570
    %v1731 = vpack.c.b16 %v1575, %v1571
    %v1732 = vpack.c.b16 %v1576, %v1572
    %v1733 = vpack.c.b16 %v1581, %v1577
    %v1734 = vpack.c.b16 %v1582, %v1578
    %v1735 = vpack.c.b16 %v1583, %v1579
    %v1736 = vpack.c.b16 %v1584, %v1580
    %v1737 = vpack.c.b16 %v1589, %v1585
    %v1738 = vpack.c.b16 %v1590, %v1586
    %v1739 = vpack.c.b16 %v1591, %v1587
    %v1740 = vpack.c.b16 %v1592, %v1588
    %v1741 = vpack.c.b16 %v1597, %v1593
    %v1742 = vpack.c.b16 %v1598, %v1594
    %v1743 = vpack.c.b16 %v1599, %v1595
    %v1744 = vpack.c.b16 %v1600, %v1596
    %v1745 = vpack.c.b16 %v1605, %v1601
    %v1746 = vpack.c.b16 %v1606, %v1602
    %v1747 = vpack.c.b16 %v1607, %v1603
    %v1748 = vpack.c.b16 %v1608, %v1604
    %v1749 = vpack.c.b16 %v1613, %v1609
    %v1750 = vpack.c.b16 %v1614, %v1610
    %v1751 = vpack.c.b16 %v1615, %v1611
    %v1752 = vpack.c.b16 %v1616, %v1612
    %v1753 = vpack.c.b16 %v1621, %v1617
    %v1754 = vpack.c.b16 %v1622, %v1618
    %v1755 = vpack.c.b16 %v1623, %v1619
    %v1756 = vpack.c.b16 %v1624, %v1620
    %v1757 = vpack.c.b16 %v1629, %v1625
    %v1758 = vpack.c.b16 %v1630, %v1626
    %v1759 = vpack.c.b16 %v1631, %v1627
    %v1760 = vpack.c.b16 %v1632, %v1628
    %1889 = vmatprep.subr.bf16.mxu0 %v1662
    %1890 = vmatpush1.bf16.msra.mxu0 %v1661
    %1891 = vmatprep.subr.bf16.mxu0 %v1658
    %1892 = vmatpush1.bf16.msra.mxu0 %v1657
    %1893 = vmatprep.subr.bf16.mxu0 %v1654
    %1894 = vmatpush1.bf16.msra.mxu0 %v1653
    %1895 = vmatprep.subr.bf16.mxu0 %v1650
    %1896 = vmatpush1.bf16.msra.mxu0 %v1649
    %1897 = vmatprep.subr.bf16.mxu0 %v1646
    %1898 = vmatpush1.bf16.msra.mxu0 %v1645
    %1899 = vmatprep.subr.bf16.mxu0 %v1642
    %1900 = vmatpush1.bf16.msra.mxu0 %v1641
    %1901 = vmatprep.subr.bf16.mxu0 %v1638
    %1902 = vmatpush1.bf16.msra.mxu0 %v1637
    %1903 = vmatprep.subr.bf16.mxu0 %v1634
    %1904 = vmatpush1.bf16.msra.mxu0 %v1633
    %1905 = vmatprep.subr.bf16.mxu0 %v1694
    %1906 = vmatpush2.bf16.msra.mxu0 %v1693
    %1907 = vmatprep.subr.bf16.mxu0 %v1690
    %1908 = vmatpush2.bf16.msra.mxu0 %v1689
    %1909 = vmatprep.subr.bf16.mxu0 %v1686
    %1910 = vmatpush2.bf16.msra.mxu0 %v1685
    %1911 = vmatprep.subr.bf16.mxu0 %v1682
    %1912 = vmatpush2.bf16.msra.mxu0 %v1681
    %1913 = vmatprep.subr.bf16.mxu0 %v1678
    %1914 = vmatpush2.bf16.msra.mxu0 %v1677
    %1915 = vmatprep.subr.bf16.mxu0 %v1674
    %1916 = vmatpush2.bf16.msra.mxu0 %v1673
    %1917 = vmatprep.subr.bf16.mxu0 %v1670
    %1918 = vmatpush2.bf16.msra.mxu0 %v1669
    %1919 = vmatprep.subr.bf16.mxu0 %v1666
    %1920 = vmatpush2.bf16.msra.mxu0 %v1665
    %1921 = vmatprep.mubr.bf16.mxu0 %v1096
    %1922 = vmatmul.mubr.bf16.gmra.mxu0 %v1095
    %v1923 = vpop.f32.mrf.mxu0
    %v1924 = vadd.f32 %v1232, %v1923
    %v1925 = vpop.f32.mrf.mxu0
    %v1926 = vadd.f32 %v1236, %v1925
    %v1927 = vpop.f32.mrf.mxu0
    %v1928 = vadd.f32 %v1232, %v1927
    %v1929 = vpop.f32.mrf.mxu0
    %v1930 = vadd.f32 %v1236, %v1929
    %1931 = vdwg.mxu0
    %1932 = vmatprep.subr.bf16.mxu0 %v1726
    %1933 = vmatpush1.bf16.msra.mxu0 %v1725
    %1934 = vmatprep.subr.bf16.mxu0 %v1722
    %1935 = vmatpush1.bf16.msra.mxu0 %v1721
    %1936 = vmatprep.subr.bf16.mxu0 %v1718
    %1937 = vmatpush1.bf16.msra.mxu0 %v1717
    %1938 = vmatprep.subr.bf16.mxu0 %v1714
    %1939 = vmatpush1.bf16.msra.mxu0 %v1713
    %1940 = vmatprep.subr.bf16.mxu0 %v1710
    %1941 = vmatpush1.bf16.msra.mxu0 %v1709
    %1942 = vmatprep.subr.bf16.mxu0 %v1706
    %1943 = vmatpush1.bf16.msra.mxu0 %v1705
    %1944 = vmatprep.subr.bf16.mxu0 %v1702
    %1945 = vmatpush1.bf16.msra.mxu0 %v1701
    %1946 = vmatprep.subr.bf16.mxu0 %v1698
    %1947 = vmatpush1.bf16.msra.mxu0 %v1697
    %1948 = vmatprep.subr.bf16.mxu0 %v1758
    %1949 = vmatpush2.bf16.msra.mxu0 %v1757
    %1950 = vmatprep.subr.bf16.mxu0 %v1754
    %1951 = vmatpush2.bf16.msra.mxu0 %v1753
    %1952 = vmatprep.subr.bf16.mxu0 %v1750
    %1953 = vmatpush2.bf16.msra.mxu0 %v1749
    %1954 = vmatprep.subr.bf16.mxu0 %v1746
    %1955 = vmatpush2.bf16.msra.mxu0 %v1745
    %1956 = vmatprep.subr.bf16.mxu0 %v1742
    %1957 = vmatpush2.bf16.msra.mxu0 %v1741
    %1958 = vmatprep.subr.bf16.mxu0 %v1738
    %1959 = vmatpush2.bf16.msra.mxu0 %v1737
    %1960 = vmatprep.subr.bf16.mxu0 %v1734
    %1961 = vmatpush2.bf16.msra.mxu0 %v1733
    %1962 = vmatprep.subr.bf16.mxu0 %v1730
    %1963 = vmatpush2.bf16.msra.mxu0 %v1729
    %1964 = vmatprep.mubr.bf16.mxu0 %v1098
    %1965 = vmatmul.mubr.bf16.gmra.mxu0 %v1097
    %v1966 = vpop.f32.mrf.mxu0
    %v1967 = vadd.f32 %v1924, %v1966
    %v1968 = vpop.f32.mrf.mxu0
    %v1969 = vadd.f32 %v1926, %v1968
    %v1970 = vpop.f32.mrf.mxu0
    %v1971 = vadd.f32 %v1928, %v1970
    %v1972 = vpop.f32.mrf.mxu0
    %v1973 = vadd.f32 %v1930, %v1972
    %1974 = vdwg.mxu0
    %1975 = vmatprep.subr.bf16.mxu0 %v1664
    %1976 = vmatpush1.bf16.msra.mxu0 %v1663
    %1977 = vmatprep.subr.bf16.mxu0 %v1660
    %1978 = vmatpush1.bf16.msra.mxu0 %v1659
    %1979 = vmatprep.subr.bf16.mxu0 %v1656
    %1980 = vmatpush1.bf16.msra.mxu0 %v1655
    %1981 = vmatprep.subr.bf16.mxu0 %v1652
    %1982 = vmatpush1.bf16.msra.mxu0 %v1651
    %1983 = vmatprep.subr.bf16.mxu0 %v1648
    %1984 = vmatpush1.bf16.msra.mxu0 %v1647
    %1985 = vmatprep.subr.bf16.mxu0 %v1644
    %1986 = vmatpush1.bf16.msra.mxu0 %v1643
    %1987 = vmatprep.subr.bf16.mxu0 %v1640
    %1988 = vmatpush1.bf16.msra.mxu0 %v1639
    %1989 = vmatprep.subr.bf16.mxu0 %v1636
    %1990 = vmatpush1.bf16.msra.mxu0 %v1635
    %1991 = vmatprep.subr.bf16.mxu0 %v1696
    %1992 = vmatpush2.bf16.msra.mxu0 %v1695
    %1993 = vmatprep.subr.bf16.mxu0 %v1692
    %1994 = vmatpush2.bf16.msra.mxu0 %v1691
    %1995 = vmatprep.subr.bf16.mxu0 %v1688
    %1996 = vmatpush2.bf16.msra.mxu0 %v1687
    %1997 = vmatprep.subr.bf16.mxu0 %v1684
    %1998 = vmatpush2.bf16.msra.mxu0 %v1683
    %1999 = vmatprep.subr.bf16.mxu0 %v1680
    %2000 = vmatpush2.bf16.msra.mxu0 %v1679
    %2001 = vmatprep.subr.bf16.mxu0 %v1676
    %2002 = vmatpush2.bf16.msra.mxu0 %v1675
    %2003 = vmatprep.subr.bf16.mxu0 %v1672
    %2004 = vmatpush2.bf16.msra.mxu0 %v1671
    %2005 = vmatprep.subr.bf16.mxu0 %v1668
    %2006 = vmatpush2.bf16.msra.mxu0 %v1667
    %2007 = vmatprep.mubr.bf16.mxu0 %v1096
    %2008 = vmatmul.mubr.bf16.gmra.mxu0 %v1095
    %v2009 = vpop.f32.mrf.mxu0
    %v2010 = vadd.f32 %v1240, %v2009
    %v2011 = vpop.f32.mrf.mxu0
    %v2012 = vadd.f32 %v1244, %v2011
    %v2013 = vpop.f32.mrf.mxu0
    %v2014 = vadd.f32 %v1240, %v2013
    %v2015 = vpop.f32.mrf.mxu0
    %v2016 = vadd.f32 %v1244, %v2015
    %2017 = vdwg.mxu0
    %2018 = vmatprep.subr.bf16.mxu0 %v1728
    %2019 = vmatpush1.bf16.msra.mxu0 %v1727
    %2020 = vmatprep.subr.bf16.mxu0 %v1724
    %2021 = vmatpush1.bf16.msra.mxu0 %v1723
    %2022 = vmatprep.subr.bf16.mxu0 %v1720
    %2023 = vmatpush1.bf16.msra.mxu0 %v1719
    %2024 = vmatprep.subr.bf16.mxu0 %v1716
    %2025 = vmatpush1.bf16.msra.mxu0 %v1715
    %2026 = vmatprep.subr.bf16.mxu0 %v1712
    %2027 = vmatpush1.bf16.msra.mxu0 %v1711
    %2028 = vmatprep.subr.bf16.mxu0 %v1708
    %2029 = vmatpush1.bf16.msra.mxu0 %v1707
    %2030 = vmatprep.subr.bf16.mxu0 %v1704
    %2031 = vmatpush1.bf16.msra.mxu0 %v1703
    %2032 = vmatprep.subr.bf16.mxu0 %v1700
    %2033 = vmatpush1.bf16.msra.mxu0 %v1699
    %2034 = vmatprep.subr.bf16.mxu0 %v1760
    %2035 = vmatpush2.bf16.msra.mxu0 %v1759
    %2036 = vmatprep.subr.bf16.mxu0 %v1756
    %2037 = vmatpush2.bf16.msra.mxu0 %v1755
    %2038 = vmatprep.subr.bf16.mxu0 %v1752
    %2039 = vmatpush2.bf16.msra.mxu0 %v1751
    %2040 = vmatprep.subr.bf16.mxu0 %v1748
    %2041 = vmatpush2.bf16.msra.mxu0 %v1747
    %2042 = vmatprep.subr.bf16.mxu0 %v1744
    %2043 = vmatpush2.bf16.msra.mxu0 %v1743
    %2044 = vmatprep.subr.bf16.mxu0 %v1740
    %2045 = vmatpush2.bf16.msra.mxu0 %v1739
    %2046 = vmatprep.subr.bf16.mxu0 %v1736
    %2047 = vmatpush2.bf16.msra.mxu0 %v1735
    %2048 = vmatprep.subr.bf16.mxu0 %v1732
    %2049 = vmatpush2.bf16.msra.mxu0 %v1731
    %2050 = vmatprep.mubr.bf16.mxu0 %v1098
    %2051 = vmatmul.mubr.bf16.gmra.mxu0 %v1097
    %v2052 = vpop.f32.mrf.mxu0
    %v2053 = vadd.f32 %v2010, %v2052
    %v2054 = vpop.f32.mrf.mxu0
    %v2055 = vadd.f32 %v2012, %v2054
    %v2056 = vpop.f32.mrf.mxu0
    %v2057 = vadd.f32 %v2014, %v2056
    %v2058 = vpop.f32.mrf.mxu0
    %v2059 = vadd.f32 %v2016, %v2058
    %2060 = vdwg.mxu0
    %v2061 = vmax.f32 %v1967, 0.0
    %v2062 = vmax.f32 %v1969, 0.0
    %v2063 = vmax.f32 %v2053, 0.0
    %v2064 = vmax.f32 %v2055, 0.0
    %v2065 = vmax.f32 %v1971, 0.0
    %v2066 = vmax.f32 %v1973, 0.0
    %v2067 = vmax.f32 %v2057, 0.0
    %v2068 = vmax.f32 %v2059, 0.0
    %v2069 = vpack.c.bf16 %v2065, %v2061
    %v2070 = vpack.c.bf16 %v2066, %v2062
    %v2071 = vpack.c.bf16 %v2067, %v2063
    %v2072 = vpack.c.bf16 %v2068, %v2064
    %v2073 = vld [vmem:[#allocation10] sm:$0xff]
    %v2074 = vld [vmem:[#allocation10 + $0x8] sm:$0xff]
    %v2075 = vld [vmem:[#allocation10 + $0x10] sm:$0xff]
    %v2076 = vld [vmem:[#allocation10 + $0x18] sm:$0xff]
    %v2077 = vld [vmem:[#allocation10 + $0x20] sm:$0xff]
    %v2078 = vld [vmem:[#allocation10 + $0x28] sm:$0xff]
    %v2079 = vld [vmem:[#allocation10 + $0x30] sm:$0xff]
    %v2080 = vld [vmem:[#allocation10 + $0x38] sm:$0xff]
    %v2081 = vld [vmem:[#allocation10 + $0x40] sm:$0xff]
    %v2082 = vld [vmem:[#allocation10 + $0x48] sm:$0xff]
    %v2083 = vld [vmem:[#allocation10 + $0x50] sm:$0xff]
    %v2084 = vld [vmem:[#allocation10 + $0x58] sm:$0xff]
    %v2085 = vld [vmem:[#allocation10 + $0x60] sm:$0xff]
    %v2086 = vld [vmem:[#allocation10 + $0x68] sm:$0xff]
    %v2087 = vld [vmem:[#allocation10 + $0x70] sm:$0xff]
    %v2088 = vld [vmem:[#allocation10 + $0x78] sm:$0xff]
    %v2089 = vld [vmem:[#allocation10 + $0x80] sm:$0xff]
    %v2090 = vld [vmem:[#allocation10 + $0x88] sm:$0xff]
    %v2091 = vld [vmem:[#allocation10 + $0x90] sm:$0xff]
    %v2092 = vld [vmem:[#allocation10 + $0x98] sm:$0xff]
    %v2093 = vld [vmem:[#allocation10 + $0xa0] sm:$0xff]
    %v2094 = vld [vmem:[#allocation10 + $0xa8] sm:$0xff]
    %v2095 = vld [vmem:[#allocation10 + $0xb0] sm:$0xff]
    %v2096 = vld [vmem:[#allocation10 + $0xb8] sm:$0xff]
    %v2097 = vld [vmem:[#allocation10 + $0xc0] sm:$0xff]
    %v2098 = vld [vmem:[#allocation10 + $0xc8] sm:$0xff]
    %v2099 = vld [vmem:[#allocation10 + $0xd0] sm:$0xff]
    %v2100 = vld [vmem:[#allocation10 + $0xd8] sm:$0xff]
    %v2101 = vld [vmem:[#allocation10 + $0xe0] sm:$0xff]
    %v2102 = vld [vmem:[#allocation10 + $0xe8] sm:$0xff]
    %v2103 = vld [vmem:[#allocation10 + $0xf0] sm:$0xff]
    %v2104 = vld [vmem:[#allocation10 + $0xf8] sm:$0xff]
    %v2105 = vld [vmem:[#allocation10 + $0x100] sm:$0xff]
    %v2106 = vld [vmem:[#allocation10 + $0x108] sm:$0xff]
    %v2107 = vld [vmem:[#allocation10 + $0x110] sm:$0xff]
    %v2108 = vld [vmem:[#allocation10 + $0x118] sm:$0xff]
    %v2109 = vld [vmem:[#allocation10 + $0x120] sm:$0xff]
    %v2110 = vld [vmem:[#allocation10 + $0x128] sm:$0xff]
    %v2111 = vld [vmem:[#allocation10 + $0x130] sm:$0xff]
    %v2112 = vld [vmem:[#allocation10 + $0x138] sm:$0xff]
    %v2113 = vld [vmem:[#allocation10 + $0x140] sm:$0xff]
    %v2114 = vld [vmem:[#allocation10 + $0x148] sm:$0xff]
    %v2115 = vld [vmem:[#allocation10 + $0x150] sm:$0xff]
    %v2116 = vld [vmem:[#allocation10 + $0x158] sm:$0xff]
    %v2117 = vld [vmem:[#allocation10 + $0x160] sm:$0xff]
    %v2118 = vld [vmem:[#allocation10 + $0x168] sm:$0xff]
    %v2119 = vld [vmem:[#allocation10 + $0x170] sm:$0xff]
    %v2120 = vld [vmem:[#allocation10 + $0x178] sm:$0xff]
    %v2121 = vld [vmem:[#allocation10 + $0x180] sm:$0xff]
    %v2122 = vld [vmem:[#allocation10 + $0x188] sm:$0xff]
    %v2123 = vld [vmem:[#allocation10 + $0x190] sm:$0xff]
    %v2124 = vld [vmem:[#allocation10 + $0x198] sm:$0xff]
    %v2125 = vld [vmem:[#allocation10 + $0x1a0] sm:$0xff]
    %v2126 = vld [vmem:[#allocation10 + $0x1a8] sm:$0xff]
    %v2127 = vld [vmem:[#allocation10 + $0x1b0] sm:$0xff]
    %v2128 = vld [vmem:[#allocation10 + $0x1b8] sm:$0xff]
    %v2129 = vld [vmem:[#allocation10 + $0x1c0] sm:$0xff]
    %v2130 = vld [vmem:[#allocation10 + $0x1c8] sm:$0xff]
    %v2131 = vld [vmem:[#allocation10 + $0x1d0] sm:$0xff]
    %v2132 = vld [vmem:[#allocation10 + $0x1d8] sm:$0xff]
    %v2133 = vld [vmem:[#allocation10 + $0x1e0] sm:$0xff]
    %v2134 = vld [vmem:[#allocation10 + $0x1e8] sm:$0xff]
    %v2135 = vld [vmem:[#allocation10 + $0x1f0] sm:$0xff]
    %v2136 = vld [vmem:[#allocation10 + $0x1f8] sm:$0xff]
    %v2137 = vld [vmem:[#allocation10 + $0x200] sm:$0xff]
    %v2138 = vld [vmem:[#allocation10 + $0x208] sm:$0xff]
    %v2139 = vld [vmem:[#allocation10 + $0x210] sm:$0xff]
    %v2140 = vld [vmem:[#allocation10 + $0x218] sm:$0xff]
    %v2141 = vld [vmem:[#allocation10 + $0x220] sm:$0xff]
    %v2142 = vld [vmem:[#allocation10 + $0x228] sm:$0xff]
    %v2143 = vld [vmem:[#allocation10 + $0x230] sm:$0xff]
    %v2144 = vld [vmem:[#allocation10 + $0x238] sm:$0xff]
    %v2145 = vld [vmem:[#allocation10 + $0x240] sm:$0xff]
    %v2146 = vld [vmem:[#allocation10 + $0x248] sm:$0xff]
    %v2147 = vld [vmem:[#allocation10 + $0x250] sm:$0xff]
    %v2148 = vld [vmem:[#allocation10 + $0x258] sm:$0xff]
    %v2149 = vld [vmem:[#allocation10 + $0x260] sm:$0xff]
    %v2150 = vld [vmem:[#allocation10 + $0x268] sm:$0xff]
    %v2151 = vld [vmem:[#allocation10 + $0x270] sm:$0xff]
    %v2152 = vld [vmem:[#allocation10 + $0x278] sm:$0xff]
    %v2153 = vld [vmem:[#allocation10 + $0x280] sm:$0xff]
    %v2154 = vld [vmem:[#allocation10 + $0x288] sm:$0xff]
    %v2155 = vld [vmem:[#allocation10 + $0x290] sm:$0xff]
    %v2156 = vld [vmem:[#allocation10 + $0x298] sm:$0xff]
    %v2157 = vld [vmem:[#allocation10 + $0x2a0] sm:$0xff]
    %v2158 = vld [vmem:[#allocation10 + $0x2a8] sm:$0xff]
    %v2159 = vld [vmem:[#allocation10 + $0x2b0] sm:$0xff]
    %v2160 = vld [vmem:[#allocation10 + $0x2b8] sm:$0xff]
    %v2161 = vld [vmem:[#allocation10 + $0x2c0] sm:$0xff]
    %v2162 = vld [vmem:[#allocation10 + $0x2c8] sm:$0xff]
    %v2163 = vld [vmem:[#allocation10 + $0x2d0] sm:$0xff]
    %v2164 = vld [vmem:[#allocation10 + $0x2d8] sm:$0xff]
    %v2165 = vld [vmem:[#allocation10 + $0x2e0] sm:$0xff]
    %v2166 = vld [vmem:[#allocation10 + $0x2e8] sm:$0xff]
    %v2167 = vld [vmem:[#allocation10 + $0x2f0] sm:$0xff]
    %v2168 = vld [vmem:[#allocation10 + $0x2f8] sm:$0xff]
    %v2169 = vld [vmem:[#allocation10 + $0x300] sm:$0xff]
    %v2170 = vld [vmem:[#allocation10 + $0x308] sm:$0xff]
    %v2171 = vld [vmem:[#allocation10 + $0x310] sm:$0xff]
    %v2172 = vld [vmem:[#allocation10 + $0x318] sm:$0xff]
    %v2173 = vld [vmem:[#allocation10 + $0x320] sm:$0xff]
    %v2174 = vld [vmem:[#allocation10 + $0x328] sm:$0xff]
    %v2175 = vld [vmem:[#allocation10 + $0x330] sm:$0xff]
    %v2176 = vld [vmem:[#allocation10 + $0x338] sm:$0xff]
    %v2177 = vld [vmem:[#allocation10 + $0x340] sm:$0xff]
    %v2178 = vld [vmem:[#allocation10 + $0x348] sm:$0xff]
    %v2179 = vld [vmem:[#allocation10 + $0x350] sm:$0xff]
    %v2180 = vld [vmem:[#allocation10 + $0x358] sm:$0xff]
    %v2181 = vld [vmem:[#allocation10 + $0x360] sm:$0xff]
    %v2182 = vld [vmem:[#allocation10 + $0x368] sm:$0xff]
    %v2183 = vld [vmem:[#allocation10 + $0x370] sm:$0xff]
    %v2184 = vld [vmem:[#allocation10 + $0x378] sm:$0xff]
    %v2185 = vld [vmem:[#allocation10 + $0x380] sm:$0xff]
    %v2186 = vld [vmem:[#allocation10 + $0x388] sm:$0xff]
    %v2187 = vld [vmem:[#allocation10 + $0x390] sm:$0xff]
    %v2188 = vld [vmem:[#allocation10 + $0x398] sm:$0xff]
    %v2189 = vld [vmem:[#allocation10 + $0x3a0] sm:$0xff]
    %v2190 = vld [vmem:[#allocation10 + $0x3a8] sm:$0xff]
    %v2191 = vld [vmem:[#allocation10 + $0x3b0] sm:$0xff]
    %v2192 = vld [vmem:[#allocation10 + $0x3b8] sm:$0xff]
    %v2193 = vld [vmem:[#allocation10 + $0x3c0] sm:$0xff]
    %v2194 = vld [vmem:[#allocation10 + $0x3c8] sm:$0xff]
    %v2195 = vld [vmem:[#allocation10 + $0x3d0] sm:$0xff]
    %v2196 = vld [vmem:[#allocation10 + $0x3d8] sm:$0xff]
    %v2197 = vld [vmem:[#allocation10 + $0x3e0] sm:$0xff]
    %v2198 = vld [vmem:[#allocation10 + $0x3e8] sm:$0xff]
    %v2199 = vld [vmem:[#allocation10 + $0x3f0] sm:$0xff]
    %v2200 = vld [vmem:[#allocation10 + $0x3f8] sm:$0xff]
    %v2201 = vld [vmem:[%s6] sm:$0xf]
    %v2203 = vlaneseq
    %v2204 = vshrl.u32 %v2203, 7
    %v2205 = vsub.s32 0, %v2204
    %v2206 = vrot.slane %v2201, %v2205
    %v2207 = vlaneseq
    %v2208 = vshrl.u32 %v2207, 7
    %v2209 = vsub.s32 1, %v2208
    %v2210 = vrot.slane %v2201, %v2209
    %v2211 = vlaneseq
    %v2212 = vshrl.u32 %v2211, 7
    %v2213 = vsub.s32 2, %v2212
    %v2214 = vrot.slane %v2201, %v2213
    %v2215 = vlaneseq
    %v2216 = vshrl.u32 %v2215, 7
    %v2217 = vsub.s32 3, %v2216
    %v2218 = vrot.slane %v2201, %v2217
    %v2351 = vunpack.c.l.b16 %v2073
    %v2352 = vunpack.c.h.b16 %v2073
    %v2353 = vunpack.c.l.b16 %v2074
    %v2354 = vunpack.c.h.b16 %v2074
    %v2355 = vunpack.c.l.b16 %v2075
    %v2356 = vunpack.c.h.b16 %v2075
    %v2357 = vunpack.c.l.b16 %v2076
    %v2358 = vunpack.c.h.b16 %v2076
    %v2359 = vunpack.c.l.b16 %v2077
    %v2360 = vunpack.c.h.b16 %v2077
    %v2361 = vunpack.c.l.b16 %v2078
    %v2362 = vunpack.c.h.b16 %v2078
    %v2363 = vunpack.c.l.b16 %v2079
    %v2364 = vunpack.c.h.b16 %v2079
    %v2365 = vunpack.c.l.b16 %v2080
    %v2366 = vunpack.c.h.b16 %v2080
    %v2367 = vunpack.c.l.b16 %v2081
    %v2368 = vunpack.c.h.b16 %v2081
    %v2369 = vunpack.c.l.b16 %v2082
    %v2370 = vunpack.c.h.b16 %v2082
    %v2371 = vunpack.c.l.b16 %v2083
    %v2372 = vunpack.c.h.b16 %v2083
    %v2373 = vunpack.c.l.b16 %v2084
    %v2374 = vunpack.c.h.b16 %v2084
    %v2375 = vunpack.c.l.b16 %v2085
    %v2376 = vunpack.c.h.b16 %v2085
    %v2377 = vunpack.c.l.b16 %v2086
    %v2378 = vunpack.c.h.b16 %v2086
    %v2379 = vunpack.c.l.b16 %v2087
    %v2380 = vunpack.c.h.b16 %v2087
    %v2381 = vunpack.c.l.b16 %v2088
    %v2382 = vunpack.c.h.b16 %v2088
    %v2383 = vunpack.c.l.b16 %v2089
    %v2384 = vunpack.c.h.b16 %v2089
    %v2385 = vunpack.c.l.b16 %v2090
    %v2386 = vunpack.c.h.b16 %v2090
    %v2387 = vunpack.c.l.b16 %v2091
    %v2388 = vunpack.c.h.b16 %v2091
    %v2389 = vunpack.c.l.b16 %v2092
    %v2390 = vunpack.c.h.b16 %v2092
    %v2391 = vunpack.c.l.b16 %v2093
    %v2392 = vunpack.c.h.b16 %v2093
    %v2393 = vunpack.c.l.b16 %v2094
    %v2394 = vunpack.c.h.b16 %v2094
    %v2395 = vunpack.c.l.b16 %v2095
    %v2396 = vunpack.c.h.b16 %v2095
    %v2397 = vunpack.c.l.b16 %v2096
    %v2398 = vunpack.c.h.b16 %v2096
    %v2399 = vunpack.c.l.b16 %v2097
    %v2400 = vunpack.c.h.b16 %v2097
    %v2401 = vunpack.c.l.b16 %v2098
    %v2402 = vunpack.c.h.b16 %v2098
    %v2403 = vunpack.c.l.b16 %v2099
    %v2404 = vunpack.c.h.b16 %v2099
    %v2405 = vunpack.c.l.b16 %v2100
    %v2406 = vunpack.c.h.b16 %v2100
    %v2407 = vunpack.c.l.b16 %v2101
    %v2408 = vunpack.c.h.b16 %v2101
    %v2409 = vunpack.c.l.b16 %v2102
    %v2410 = vunpack.c.h.b16 %v2102
    %v2411 = vunpack.c.l.b16 %v2103
    %v2412 = vunpack.c.h.b16 %v2103
    %v2413 = vunpack.c.l.b16 %v2104
    %v2414 = vunpack.c.h.b16 %v2104
    %v2415 = vunpack.c.l.b16 %v2105
    %v2416 = vunpack.c.h.b16 %v2105
    %v2417 = vunpack.c.l.b16 %v2106
    %v2418 = vunpack.c.h.b16 %v2106
    %v2419 = vunpack.c.l.b16 %v2107
    %v2420 = vunpack.c.h.b16 %v2107
    %v2421 = vunpack.c.l.b16 %v2108
    %v2422 = vunpack.c.h.b16 %v2108
    %v2423 = vunpack.c.l.b16 %v2109
    %v2424 = vunpack.c.h.b16 %v2109
    %v2425 = vunpack.c.l.b16 %v2110
    %v2426 = vunpack.c.h.b16 %v2110
    %v2427 = vunpack.c.l.b16 %v2111
    %v2428 = vunpack.c.h.b16 %v2111
    %v2429 = vunpack.c.l.b16 %v2112
    %v2430 = vunpack.c.h.b16 %v2112
    %v2431 = vunpack.c.l.b16 %v2113
    %v2432 = vunpack.c.h.b16 %v2113
    %v2433 = vunpack.c.l.b16 %v2114
    %v2434 = vunpack.c.h.b16 %v2114
    %v2435 = vunpack.c.l.b16 %v2115
    %v2436 = vunpack.c.h.b16 %v2115
    %v2437 = vunpack.c.l.b16 %v2116
    %v2438 = vunpack.c.h.b16 %v2116
    %v2439 = vunpack.c.l.b16 %v2117
    %v2440 = vunpack.c.h.b16 %v2117
    %v2441 = vunpack.c.l.b16 %v2118
    %v2442 = vunpack.c.h.b16 %v2118
    %v2443 = vunpack.c.l.b16 %v2119
    %v2444 = vunpack.c.h.b16 %v2119
    %v2445 = vunpack.c.l.b16 %v2120
    %v2446 = vunpack.c.h.b16 %v2120
    %v2447 = vunpack.c.l.b16 %v2121
    %v2448 = vunpack.c.h.b16 %v2121
    %v2449 = vunpack.c.l.b16 %v2122
    %v2450 = vunpack.c.h.b16 %v2122
    %v2451 = vunpack.c.l.b16 %v2123
    %v2452 = vunpack.c.h.b16 %v2123
    %v2453 = vunpack.c.l.b16 %v2124
    %v2454 = vunpack.c.h.b16 %v2124
    %v2455 = vunpack.c.l.b16 %v2125
    %v2456 = vunpack.c.h.b16 %v2125
    %v2457 = vunpack.c.l.b16 %v2126
    %v2458 = vunpack.c.h.b16 %v2126
    %v2459 = vunpack.c.l.b16 %v2127
    %v2460 = vunpack.c.h.b16 %v2127
    %v2461 = vunpack.c.l.b16 %v2128
    %v2462 = vunpack.c.h.b16 %v2128
    %v2463 = vunpack.c.l.b16 %v2129
    %v2464 = vunpack.c.h.b16 %v2129
    %v2465 = vunpack.c.l.b16 %v2130
    %v2466 = vunpack.c.h.b16 %v2130
    %v2467 = vunpack.c.l.b16 %v2131
    %v2468 = vunpack.c.h.b16 %v2131
    %v2469 = vunpack.c.l.b16 %v2132
    %v2470 = vunpack.c.h.b16 %v2132
    %v2471 = vunpack.c.l.b16 %v2133
    %v2472 = vunpack.c.h.b16 %v2133
    %v2473 = vunpack.c.l.b16 %v2134
    %v2474 = vunpack.c.h.b16 %v2134
    %v2475 = vunpack.c.l.b16 %v2135
    %v2476 = vunpack.c.h.b16 %v2135
    %v2477 = vunpack.c.l.b16 %v2136
    %v2478 = vunpack.c.h.b16 %v2136
    %v2479 = vunpack.c.l.b16 %v2137
    %v2480 = vunpack.c.h.b16 %v2137
    %v2481 = vunpack.c.l.b16 %v2138
    %v2482 = vunpack.c.h.b16 %v2138
    %v2483 = vunpack.c.l.b16 %v2139
    %v2484 = vunpack.c.h.b16 %v2139
    %v2485 = vunpack.c.l.b16 %v2140
    %v2486 = vunpack.c.h.b16 %v2140
    %v2487 = vunpack.c.l.b16 %v2141
    %v2488 = vunpack.c.h.b16 %v2141
    %v2489 = vunpack.c.l.b16 %v2142
    %v2490 = vunpack.c.h.b16 %v2142
    %v2491 = vunpack.c.l.b16 %v2143
    %v2492 = vunpack.c.h.b16 %v2143
    %v2493 = vunpack.c.l.b16 %v2144
    %v2494 = vunpack.c.h.b16 %v2144
    %v2495 = vunpack.c.l.b16 %v2145
    %v2496 = vunpack.c.h.b16 %v2145
    %v2497 = vunpack.c.l.b16 %v2146
    %v2498 = vunpack.c.h.b16 %v2146
    %v2499 = vunpack.c.l.b16 %v2147
    %v2500 = vunpack.c.h.b16 %v2147
    %v2501 = vunpack.c.l.b16 %v2148
    %v2502 = vunpack.c.h.b16 %v2148
    %v2503 = vunpack.c.l.b16 %v2149
    %v2504 = vunpack.c.h.b16 %v2149
    %v2505 = vunpack.c.l.b16 %v2150
    %v2506 = vunpack.c.h.b16 %v2150
    %v2507 = vunpack.c.l.b16 %v2151
    %v2508 = vunpack.c.h.b16 %v2151
    %v2509 = vunpack.c.l.b16 %v2152
    %v2510 = vunpack.c.h.b16 %v2152
    %v2511 = vunpack.c.l.b16 %v2153
    %v2512 = vunpack.c.h.b16 %v2153
    %v2513 = vunpack.c.l.b16 %v2154
    %v2514 = vunpack.c.h.b16 %v2154
    %v2515 = vunpack.c.l.b16 %v2155
    %v2516 = vunpack.c.h.b16 %v2155
    %v2517 = vunpack.c.l.b16 %v2156
    %v2518 = vunpack.c.h.b16 %v2156
    %v2519 = vunpack.c.l.b16 %v2157
    %v2520 = vunpack.c.h.b16 %v2157
    %v2521 = vunpack.c.l.b16 %v2158
    %v2522 = vunpack.c.h.b16 %v2158
    %v2523 = vunpack.c.l.b16 %v2159
    %v2524 = vunpack.c.h.b16 %v2159
    %v2525 = vunpack.c.l.b16 %v2160
    %v2526 = vunpack.c.h.b16 %v2160
    %v2527 = vunpack.c.l.b16 %v2161
    %v2528 = vunpack.c.h.b16 %v2161
    %v2529 = vunpack.c.l.b16 %v2162
    %v2530 = vunpack.c.h.b16 %v2162
    %v2531 = vunpack.c.l.b16 %v2163
    %v2532 = vunpack.c.h.b16 %v2163
    %v2533 = vunpack.c.l.b16 %v2164
    %v2534 = vunpack.c.h.b16 %v2164
    %v2535 = vunpack.c.l.b16 %v2165
    %v2536 = vunpack.c.h.b16 %v2165
    %v2537 = vunpack.c.l.b16 %v2166
    %v2538 = vunpack.c.h.b16 %v2166
    %v2539 = vunpack.c.l.b16 %v2167
    %v2540 = vunpack.c.h.b16 %v2167
    %v2541 = vunpack.c.l.b16 %v2168
    %v2542 = vunpack.c.h.b16 %v2168
    %v2543 = vunpack.c.l.b16 %v2169
    %v2544 = vunpack.c.h.b16 %v2169
    %v2545 = vunpack.c.l.b16 %v2170
    %v2546 = vunpack.c.h.b16 %v2170
    %v2547 = vunpack.c.l.b16 %v2171
    %v2548 = vunpack.c.h.b16 %v2171
    %v2549 = vunpack.c.l.b16 %v2172
    %v2550 = vunpack.c.h.b16 %v2172
    %v2551 = vunpack.c.l.b16 %v2173
    %v2552 = vunpack.c.h.b16 %v2173
    %v2553 = vunpack.c.l.b16 %v2174
    %v2554 = vunpack.c.h.b16 %v2174
    %v2555 = vunpack.c.l.b16 %v2175
    %v2556 = vunpack.c.h.b16 %v2175
    %v2557 = vunpack.c.l.b16 %v2176
    %v2558 = vunpack.c.h.b16 %v2176
    %v2559 = vunpack.c.l.b16 %v2177
    %v2560 = vunpack.c.h.b16 %v2177
    %v2561 = vunpack.c.l.b16 %v2178
    %v2562 = vunpack.c.h.b16 %v2178
    %v2563 = vunpack.c.l.b16 %v2179
    %v2564 = vunpack.c.h.b16 %v2179
    %v2565 = vunpack.c.l.b16 %v2180
    %v2566 = vunpack.c.h.b16 %v2180
    %v2567 = vunpack.c.l.b16 %v2181
    %v2568 = vunpack.c.h.b16 %v2181
    %v2569 = vunpack.c.l.b16 %v2182
    %v2570 = vunpack.c.h.b16 %v2182
    %v2571 = vunpack.c.l.b16 %v2183
    %v2572 = vunpack.c.h.b16 %v2183
    %v2573 = vunpack.c.l.b16 %v2184
    %v2574 = vunpack.c.h.b16 %v2184
    %v2575 = vunpack.c.l.b16 %v2185
    %v2576 = vunpack.c.h.b16 %v2185
    %v2577 = vunpack.c.l.b16 %v2186
    %v2578 = vunpack.c.h.b16 %v2186
    %v2579 = vunpack.c.l.b16 %v2187
    %v2580 = vunpack.c.h.b16 %v2187
    %v2581 = vunpack.c.l.b16 %v2188
    %v2582 = vunpack.c.h.b16 %v2188
    %v2583 = vunpack.c.l.b16 %v2189
    %v2584 = vunpack.c.h.b16 %v2189
    %v2585 = vunpack.c.l.b16 %v2190
    %v2586 = vunpack.c.h.b16 %v2190
    %v2587 = vunpack.c.l.b16 %v2191
    %v2588 = vunpack.c.h.b16 %v2191
    %v2589 = vunpack.c.l.b16 %v2192
    %v2590 = vunpack.c.h.b16 %v2192
    %v2591 = vunpack.c.l.b16 %v2193
    %v2592 = vunpack.c.h.b16 %v2193
    %v2593 = vunpack.c.l.b16 %v2194
    %v2594 = vunpack.c.h.b16 %v2194
    %v2595 = vunpack.c.l.b16 %v2195
    %v2596 = vunpack.c.h.b16 %v2195
    %v2597 = vunpack.c.l.b16 %v2196
    %v2598 = vunpack.c.h.b16 %v2196
    %v2599 = vunpack.c.l.b16 %v2197
    %v2600 = vunpack.c.h.b16 %v2197
    %v2601 = vunpack.c.l.b16 %v2198
    %v2602 = vunpack.c.h.b16 %v2198
    %v2603 = vunpack.c.l.b16 %v2199
    %v2604 = vunpack.c.h.b16 %v2199
    %v2605 = vunpack.c.l.b16 %v2200
    %v2606 = vunpack.c.h.b16 %v2200
    %v2607 = vpack.c.b16 %v2355, %v2351
    %v2608 = vpack.c.b16 %v2356, %v2352
    %v2609 = vpack.c.b16 %v2357, %v2353
    %v2610 = vpack.c.b16 %v2358, %v2354
    %v2611 = vpack.c.b16 %v2363, %v2359
    %v2612 = vpack.c.b16 %v2364, %v2360
    %v2613 = vpack.c.b16 %v2365, %v2361
    %v2614 = vpack.c.b16 %v2366, %v2362
    %v2615 = vpack.c.b16 %v2371, %v2367
    %v2616 = vpack.c.b16 %v2372, %v2368
    %v2617 = vpack.c.b16 %v2373, %v2369
    %v2618 = vpack.c.b16 %v2374, %v2370
    %v2619 = vpack.c.b16 %v2379, %v2375
    %v2620 = vpack.c.b16 %v2380, %v2376
    %v2621 = vpack.c.b16 %v2381, %v2377
    %v2622 = vpack.c.b16 %v2382, %v2378
    %v2623 = vpack.c.b16 %v2387, %v2383
    %v2624 = vpack.c.b16 %v2388, %v2384
    %v2625 = vpack.c.b16 %v2389, %v2385
    %v2626 = vpack.c.b16 %v2390, %v2386
    %v2627 = vpack.c.b16 %v2395, %v2391
    %v2628 = vpack.c.b16 %v2396, %v2392
    %v2629 = vpack.c.b16 %v2397, %v2393
    %v2630 = vpack.c.b16 %v2398, %v2394
    %v2631 = vpack.c.b16 %v2403, %v2399
    %v2632 = vpack.c.b16 %v2404, %v2400
    %v2633 = vpack.c.b16 %v2405, %v2401
    %v2634 = vpack.c.b16 %v2406, %v2402
    %v2635 = vpack.c.b16 %v2411, %v2407
    %v2636 = vpack.c.b16 %v2412, %v2408
    %v2637 = vpack.c.b16 %v2413, %v2409
    %v2638 = vpack.c.b16 %v2414, %v2410
    %v2639 = vpack.c.b16 %v2419, %v2415
    %v2640 = vpack.c.b16 %v2420, %v2416
    %v2641 = vpack.c.b16 %v2421, %v2417
    %v2642 = vpack.c.b16 %v2422, %v2418
    %v2643 = vpack.c.b16 %v2427, %v2423
    %v2644 = vpack.c.b16 %v2428, %v2424
    %v2645 = vpack.c.b16 %v2429, %v2425
    %v2646 = vpack.c.b16 %v2430, %v2426
    %v2647 = vpack.c.b16 %v2435, %v2431
    %v2648 = vpack.c.b16 %v2436, %v2432
    %v2649 = vpack.c.b16 %v2437, %v2433
    %v2650 = vpack.c.b16 %v2438, %v2434
    %v2651 = vpack.c.b16 %v2443, %v2439
    %v2652 = vpack.c.b16 %v2444, %v2440
    %v2653 = vpack.c.b16 %v2445, %v2441
    %v2654 = vpack.c.b16 %v2446, %v2442
    %v2655 = vpack.c.b16 %v2451, %v2447
    %v2656 = vpack.c.b16 %v2452, %v2448
    %v2657 = vpack.c.b16 %v2453, %v2449
    %v2658 = vpack.c.b16 %v2454, %v2450
    %v2659 = vpack.c.b16 %v2459, %v2455
    %v2660 = vpack.c.b16 %v2460, %v2456
    %v2661 = vpack.c.b16 %v2461, %v2457
    %v2662 = vpack.c.b16 %v2462, %v2458
    %v2663 = vpack.c.b16 %v2467, %v2463
    %v2664 = vpack.c.b16 %v2468, %v2464
    %v2665 = vpack.c.b16 %v2469, %v2465
    %v2666 = vpack.c.b16 %v2470, %v2466
    %v2667 = vpack.c.b16 %v2475, %v2471
    %v2668 = vpack.c.b16 %v2476, %v2472
    %v2669 = vpack.c.b16 %v2477, %v2473
    %v2670 = vpack.c.b16 %v2478, %v2474
    %v2671 = vpack.c.b16 %v2483, %v2479
    %v2672 = vpack.c.b16 %v2484, %v2480
    %v2673 = vpack.c.b16 %v2485, %v2481
    %v2674 = vpack.c.b16 %v2486, %v2482
    %v2675 = vpack.c.b16 %v2491, %v2487
    %v2676 = vpack.c.b16 %v2492, %v2488
    %v2677 = vpack.c.b16 %v2493, %v2489
    %v2678 = vpack.c.b16 %v2494, %v2490
    %v2679 = vpack.c.b16 %v2499, %v2495
    %v2680 = vpack.c.b16 %v2500, %v2496
    %v2681 = vpack.c.b16 %v2501, %v2497
    %v2682 = vpack.c.b16 %v2502, %v2498
    %v2683 = vpack.c.b16 %v2507, %v2503
    %v2684 = vpack.c.b16 %v2508, %v2504
    %v2685 = vpack.c.b16 %v2509, %v2505
    %v2686 = vpack.c.b16 %v2510, %v2506
    %v2687 = vpack.c.b16 %v2515, %v2511
    %v2688 = vpack.c.b16 %v2516, %v2512
    %v2689 = vpack.c.b16 %v2517, %v2513
    %v2690 = vpack.c.b16 %v2518, %v2514
    %v2691 = vpack.c.b16 %v2523, %v2519
    %v2692 = vpack.c.b16 %v2524, %v2520
    %v2693 = vpack.c.b16 %v2525, %v2521
    %v2694 = vpack.c.b16 %v2526, %v2522
    %v2695 = vpack.c.b16 %v2531, %v2527
    %v2696 = vpack.c.b16 %v2532, %v2528
    %v2697 = vpack.c.b16 %v2533, %v2529
    %v2698 = vpack.c.b16 %v2534, %v2530
    %v2699 = vpack.c.b16 %v2539, %v2535
    %v2700 = vpack.c.b16 %v2540, %v2536
    %v2701 = vpack.c.b16 %v2541, %v2537
    %v2702 = vpack.c.b16 %v2542, %v2538
    %v2703 = vpack.c.b16 %v2547, %v2543
    %v2704 = vpack.c.b16 %v2548, %v2544
    %v2705 = vpack.c.b16 %v2549, %v2545
    %v2706 = vpack.c.b16 %v2550, %v2546
    %v2707 = vpack.c.b16 %v2555, %v2551
    %v2708 = vpack.c.b16 %v2556, %v2552
    %v2709 = vpack.c.b16 %v2557, %v2553
    %v2710 = vpack.c.b16 %v2558, %v2554
    %v2711 = vpack.c.b16 %v2563, %v2559
    %v2712 = vpack.c.b16 %v2564, %v2560
    %v2713 = vpack.c.b16 %v2565, %v2561
    %v2714 = vpack.c.b16 %v2566, %v2562
    %v2715 = vpack.c.b16 %v2571, %v2567
    %v2716 = vpack.c.b16 %v2572, %v2568
    %v2717 = vpack.c.b16 %v2573, %v2569
    %v2718 = vpack.c.b16 %v2574, %v2570
    %v2719 = vpack.c.b16 %v2579, %v2575
    %v2720 = vpack.c.b16 %v2580, %v2576
    %v2721 = vpack.c.b16 %v2581, %v2577
    %v2722 = vpack.c.b16 %v2582, %v2578
    %v2723 = vpack.c.b16 %v2587, %v2583
    %v2724 = vpack.c.b16 %v2588, %v2584
    %v2725 = vpack.c.b16 %v2589, %v2585
    %v2726 = vpack.c.b16 %v2590, %v2586
    %v2727 = vpack.c.b16 %v2595, %v2591
    %v2728 = vpack.c.b16 %v2596, %v2592
    %v2729 = vpack.c.b16 %v2597, %v2593
    %v2730 = vpack.c.b16 %v2598, %v2594
    %v2731 = vpack.c.b16 %v2603, %v2599
    %v2732 = vpack.c.b16 %v2604, %v2600
    %v2733 = vpack.c.b16 %v2605, %v2601
    %v2734 = vpack.c.b16 %v2606, %v2602
    %2863 = vmatprep.subr.bf16.mxu0 %v2636
    %2864 = vmatpush1.bf16.msra.mxu0 %v2635
    %2865 = vmatprep.subr.bf16.mxu0 %v2632
    %2866 = vmatpush1.bf16.msra.mxu0 %v2631
    %2867 = vmatprep.subr.bf16.mxu0 %v2628
    %2868 = vmatpush1.bf16.msra.mxu0 %v2627
    %2869 = vmatprep.subr.bf16.mxu0 %v2624
    %2870 = vmatpush1.bf16.msra.mxu0 %v2623
    %2871 = vmatprep.subr.bf16.mxu0 %v2620
    %2872 = vmatpush1.bf16.msra.mxu0 %v2619
    %2873 = vmatprep.subr.bf16.mxu0 %v2616
    %2874 = vmatpush1.bf16.msra.mxu0 %v2615
    %2875 = vmatprep.subr.bf16.mxu0 %v2612
    %2876 = vmatpush1.bf16.msra.mxu0 %v2611
    %2877 = vmatprep.subr.bf16.mxu0 %v2608
    %2878 = vmatpush1.bf16.msra.mxu0 %v2607
    %2879 = vmatprep.subr.bf16.mxu0 %v2668
    %2880 = vmatpush2.bf16.msra.mxu0 %v2667
    %2881 = vmatprep.subr.bf16.mxu0 %v2664
    %2882 = vmatpush2.bf16.msra.mxu0 %v2663
    %2883 = vmatprep.subr.bf16.mxu0 %v2660
    %2884 = vmatpush2.bf16.msra.mxu0 %v2659
    %2885 = vmatprep.subr.bf16.mxu0 %v2656
    %2886 = vmatpush2.bf16.msra.mxu0 %v2655
    %2887 = vmatprep.subr.bf16.mxu0 %v2652
    %2888 = vmatpush2.bf16.msra.mxu0 %v2651
    %2889 = vmatprep.subr.bf16.mxu0 %v2648
    %2890 = vmatpush2.bf16.msra.mxu0 %v2647
    %2891 = vmatprep.subr.bf16.mxu0 %v2644
    %2892 = vmatpush2.bf16.msra.mxu0 %v2643
    %2893 = vmatprep.subr.bf16.mxu0 %v2640
    %2894 = vmatpush2.bf16.msra.mxu0 %v2639
    %2895 = vmatprep.mubr.bf16.mxu0 %v2070
    %2896 = vmatmul.mubr.bf16.gmra.mxu0 %v2069
    %v2897 = vpop.f32.mrf.mxu0
    %v2898 = vadd.f32 %v2206, %v2897
    %v2899 = vpop.f32.mrf.mxu0
    %v2900 = vadd.f32 %v2210, %v2899
    %v2901 = vpop.f32.mrf.mxu0
    %v2902 = vadd.f32 %v2206, %v2901
    %v2903 = vpop.f32.mrf.mxu0
    %v2904 = vadd.f32 %v2210, %v2903
    %2905 = vdwg.mxu0
    %2906 = vmatprep.subr.bf16.mxu0 %v2700
    %2907 = vmatpush1.bf16.msra.mxu0 %v2699
    %2908 = vmatprep.subr.bf16.mxu0 %v2696
    %2909 = vmatpush1.bf16.msra.mxu0 %v2695
    %2910 = vmatprep.subr.bf16.mxu0 %v2692
    %2911 = vmatpush1.bf16.msra.mxu0 %v2691
    %2912 = vmatprep.subr.bf16.mxu0 %v2688
    %2913 = vmatpush1.bf16.msra.mxu0 %v2687
    %2914 = vmatprep.subr.bf16.mxu0 %v2684
    %2915 = vmatpush1.bf16.msra.mxu0 %v2683
    %2916 = vmatprep.subr.bf16.mxu0 %v2680
    %2917 = vmatpush1.bf16.msra.mxu0 %v2679
    %2918 = vmatprep.subr.bf16.mxu0 %v2676
    %2919 = vmatpush1.bf16.msra.mxu0 %v2675
    %2920 = vmatprep.subr.bf16.mxu0 %v2672
    %2921 = vmatpush1.bf16.msra.mxu0 %v2671
    %2922 = vmatprep.subr.bf16.mxu0 %v2732
    %2923 = vmatpush2.bf16.msra.mxu0 %v2731
    %2924 = vmatprep.subr.bf16.mxu0 %v2728
    %2925 = vmatpush2.bf16.msra.mxu0 %v2727
    %2926 = vmatprep.subr.bf16.mxu0 %v2724
    %2927 = vmatpush2.bf16.msra.mxu0 %v2723
    %2928 = vmatprep.subr.bf16.mxu0 %v2720
    %2929 = vmatpush2.bf16.msra.mxu0 %v2719
    %2930 = vmatprep.subr.bf16.mxu0 %v2716
    %2931 = vmatpush2.bf16.msra.mxu0 %v2715
    %2932 = vmatprep.subr.bf16.mxu0 %v2712
    %2933 = vmatpush2.bf16.msra.mxu0 %v2711
    %2934 = vmatprep.subr.bf16.mxu0 %v2708
    %2935 = vmatpush2.bf16.msra.mxu0 %v2707
    %2936 = vmatprep.subr.bf16.mxu0 %v2704
    %2937 = vmatpush2.bf16.msra.mxu0 %v2703
    %2938 = vmatprep.mubr.bf16.mxu0 %v2072
    %2939 = vmatmul.mubr.bf16.gmra.mxu0 %v2071
    %v2940 = vpop.f32.mrf.mxu0
    %v2941 = vadd.f32 %v2898, %v2940
    %v2942 = vpop.f32.mrf.mxu0
    %v2943 = vadd.f32 %v2900, %v2942
    %v2944 = vpop.f32.mrf.mxu0
    %v2945 = vadd.f32 %v2902, %v2944
    %v2946 = vpop.f32.mrf.mxu0
    %v2947 = vadd.f32 %v2904, %v2946
    %2948 = vdwg.mxu0
    %2949 = vmatprep.subr.bf16.mxu0 %v2638
    %2950 = vmatpush1.bf16.msra.mxu0 %v2637
    %2951 = vmatprep.subr.bf16.mxu0 %v2634
    %2952 = vmatpush1.bf16.msra.mxu0 %v2633
    %2953 = vmatprep.subr.bf16.mxu0 %v2630
    %2954 = vmatpush1.bf16.msra.mxu0 %v2629
    %2955 = vmatprep.subr.bf16.mxu0 %v2626
    %2956 = vmatpush1.bf16.msra.mxu0 %v2625
    %2957 = vmatprep.subr.bf16.mxu0 %v2622
    %2958 = vmatpush1.bf16.msra.mxu0 %v2621
    %2959 = vmatprep.subr.bf16.mxu0 %v2618
    %2960 = vmatpush1.bf16.msra.mxu0 %v2617
    %2961 = vmatprep.subr.bf16.mxu0 %v2614
    %2962 = vmatpush1.bf16.msra.mxu0 %v2613
    %2963 = vmatprep.subr.bf16.mxu0 %v2610
    %2964 = vmatpush1.bf16.msra.mxu0 %v2609
    %2965 = vmatprep.subr.bf16.mxu0 %v2670
    %2966 = vmatpush2.bf16.msra.mxu0 %v2669
    %2967 = vmatprep.subr.bf16.mxu0 %v2666
    %2968 = vmatpush2.bf16.msra.mxu0 %v2665
    %2969 = vmatprep.subr.bf16.mxu0 %v2662
    %2970 = vmatpush2.bf16.msra.mxu0 %v2661
    %2971 = vmatprep.subr.bf16.mxu0 %v2658
    %2972 = vmatpush2.bf16.msra.mxu0 %v2657
    %2973 = vmatprep.subr.bf16.mxu0 %v2654
    %2974 = vmatpush2.bf16.msra.mxu0 %v2653
    %2975 = vmatprep.subr.bf16.mxu0 %v2650
    %2976 = vmatpush2.bf16.msra.mxu0 %v2649
    %2977 = vmatprep.subr.bf16.mxu0 %v2646
    %2978 = vmatpush2.bf16.msra.mxu0 %v2645
    %2979 = vmatprep.subr.bf16.mxu0 %v2642
    %2980 = vmatpush2.bf16.msra.mxu0 %v2641
    %2981 = vmatprep.mubr.bf16.mxu0 %v2070
    %2982 = vmatmul.mubr.bf16.gmra.mxu0 %v2069
    %v2983 = vpop.f32.mrf.mxu0
    %v2984 = vadd.f32 %v2214, %v2983
    %v2985 = vpop.f32.mrf.mxu0
    %v2986 = vadd.f32 %v2218, %v2985
    %v2987 = vpop.f32.mrf.mxu0
    %v2988 = vadd.f32 %v2214, %v2987
    %v2989 = vpop.f32.mrf.mxu0
    %v2990 = vadd.f32 %v2218, %v2989
    %2991 = vdwg.mxu0
    %2992 = vmatprep.subr.bf16.mxu0 %v2702
    %2993 = vmatpush1.bf16.msra.mxu0 %v2701
    %2994 = vmatprep.subr.bf16.mxu0 %v2698
    %2995 = vmatpush1.bf16.msra.mxu0 %v2697
    %2996 = vmatprep.subr.bf16.mxu0 %v2694
    %2997 = vmatpush1.bf16.msra.mxu0 %v2693
    %2998 = vmatprep.subr.bf16.mxu0 %v2690
    %2999 = vmatpush1.bf16.msra.mxu0 %v2689
    %3000 = vmatprep.subr.bf16.mxu0 %v2686
    %3001 = vmatpush1.bf16.msra.mxu0 %v2685
    %3002 = vmatprep.subr.bf16.mxu0 %v2682
    %3003 = vmatpush1.bf16.msra.mxu0 %v2681
    %3004 = vmatprep.subr.bf16.mxu0 %v2678
    %3005 = vmatpush1.bf16.msra.mxu0 %v2677
    %3006 = vmatprep.subr.bf16.mxu0 %v2674
    %3007 = vmatpush1.bf16.msra.mxu0 %v2673
    %3008 = vmatprep.subr.bf16.mxu0 %v2734
    %3009 = vmatpush2.bf16.msra.mxu0 %v2733
    %3010 = vmatprep.subr.bf16.mxu0 %v2730
    %3011 = vmatpush2.bf16.msra.mxu0 %v2729
    %3012 = vmatprep.subr.bf16.mxu0 %v2726
    %3013 = vmatpush2.bf16.msra.mxu0 %v2725
    %3014 = vmatprep.subr.bf16.mxu0 %v2722
    %3015 = vmatpush2.bf16.msra.mxu0 %v2721
    %3016 = vmatprep.subr.bf16.mxu0 %v2718
    %3017 = vmatpush2.bf16.msra.mxu0 %v2717
    %3018 = vmatprep.subr.bf16.mxu0 %v2714
    %3019 = vmatpush2.bf16.msra.mxu0 %v2713
    %3020 = vmatprep.subr.bf16.mxu0 %v2710
    %3021 = vmatpush2.bf16.msra.mxu0 %v2709
    %3022 = vmatprep.subr.bf16.mxu0 %v2706
    %3023 = vmatpush2.bf16.msra.mxu0 %v2705
    %3024 = vmatprep.mubr.bf16.mxu0 %v2072
    %3025 = vmatmul.mubr.bf16.gmra.mxu0 %v2071
    %v3026 = vpop.f32.mrf.mxu0
    %v3027 = vadd.f32 %v2984, %v3026
    %v3028 = vpop.f32.mrf.mxu0
    %v3029 = vadd.f32 %v2986, %v3028
    %v3030 = vpop.f32.mrf.mxu0
    %v3031 = vadd.f32 %v2988, %v3030
    %v3032 = vpop.f32.mrf.mxu0
    %v3033 = vadd.f32 %v2990, %v3032
    %3034 = vdwg.mxu0
    %v3035 = vmax.f32 %v2941, 0.0
    %v3036 = vmax.f32 %v2943, 0.0
    %v3037 = vmax.f32 %v3027, 0.0
    %v3038 = vmax.f32 %v3029, 0.0
    %v3039 = vmax.f32 %v2945, 0.0
    %v3040 = vmax.f32 %v2947, 0.0
    %v3041 = vmax.f32 %v3031, 0.0
    %v3042 = vmax.f32 %v3033, 0.0
    %v3043 = vpack.c.bf16 %v3039, %v3035
    %v3044 = vpack.c.bf16 %v3040, %v3036
    %v3045 = vpack.c.bf16 %v3041, %v3037
    %v3046 = vpack.c.bf16 %v3042, %v3038
    %v3047 = vld [vmem:[#allocation11] sm:$0xff]
    %v3048 = vld [vmem:[#allocation11 + $0x8] sm:$0xff]
    %v3049 = vld [vmem:[#allocation11 + $0x10] sm:$0xff]
    %v3050 = vld [vmem:[#allocation11 + $0x18] sm:$0xff]
    %v3051 = vld [vmem:[#allocation11 + $0x20] sm:$0xff]
    %v3052 = vld [vmem:[#allocation11 + $0x28] sm:$0xff]
    %v3053 = vld [vmem:[#allocation11 + $0x30] sm:$0xff]
    %v3054 = vld [vmem:[#allocation11 + $0x38] sm:$0xff]
    %v3055 = vld [vmem:[#allocation11 + $0x40] sm:$0xff]
    %v3056 = vld [vmem:[#allocation11 + $0x48] sm:$0xff]
    %v3057 = vld [vmem:[#allocation11 + $0x50] sm:$0xff]
    %v3058 = vld [vmem:[#allocation11 + $0x58] sm:$0xff]
    %v3059 = vld [vmem:[#allocation11 + $0x60] sm:$0xff]
    %v3060 = vld [vmem:[#allocation11 + $0x68] sm:$0xff]
    %v3061 = vld [vmem:[#allocation11 + $0x70] sm:$0xff]
    %v3062 = vld [vmem:[#allocation11 + $0x78] sm:$0xff]
    %v3063 = vld [vmem:[#allocation11 + $0x80] sm:$0xff]
    %v3064 = vld [vmem:[#allocation11 + $0x88] sm:$0xff]
    %v3065 = vld [vmem:[#allocation11 + $0x90] sm:$0xff]
    %v3066 = vld [vmem:[#allocation11 + $0x98] sm:$0xff]
    %v3067 = vld [vmem:[#allocation11 + $0xa0] sm:$0xff]
    %v3068 = vld [vmem:[#allocation11 + $0xa8] sm:$0xff]
    %v3069 = vld [vmem:[#allocation11 + $0xb0] sm:$0xff]
    %v3070 = vld [vmem:[#allocation11 + $0xb8] sm:$0xff]
    %v3071 = vld [vmem:[#allocation11 + $0xc0] sm:$0xff]
    %v3072 = vld [vmem:[#allocation11 + $0xc8] sm:$0xff]
    %v3073 = vld [vmem:[#allocation11 + $0xd0] sm:$0xff]
    %v3074 = vld [vmem:[#allocation11 + $0xd8] sm:$0xff]
    %v3075 = vld [vmem:[#allocation11 + $0xe0] sm:$0xff]
    %v3076 = vld [vmem:[#allocation11 + $0xe8] sm:$0xff]
    %v3077 = vld [vmem:[#allocation11 + $0xf0] sm:$0xff]
    %v3078 = vld [vmem:[#allocation11 + $0xf8] sm:$0xff]
    %v3079 = vld [vmem:[#allocation11 + $0x100] sm:$0xff]
    %v3080 = vld [vmem:[#allocation11 + $0x108] sm:$0xff]
    %v3081 = vld [vmem:[#allocation11 + $0x110] sm:$0xff]
    %v3082 = vld [vmem:[#allocation11 + $0x118] sm:$0xff]
    %v3083 = vld [vmem:[#allocation11 + $0x120] sm:$0xff]
    %v3084 = vld [vmem:[#allocation11 + $0x128] sm:$0xff]
    %v3085 = vld [vmem:[#allocation11 + $0x130] sm:$0xff]
    %v3086 = vld [vmem:[#allocation11 + $0x138] sm:$0xff]
    %v3087 = vld [vmem:[#allocation11 + $0x140] sm:$0xff]
    %v3088 = vld [vmem:[#allocation11 + $0x148] sm:$0xff]
    %v3089 = vld [vmem:[#allocation11 + $0x150] sm:$0xff]
    %v3090 = vld [vmem:[#allocation11 + $0x158] sm:$0xff]
    %v3091 = vld [vmem:[#allocation11 + $0x160] sm:$0xff]
    %v3092 = vld [vmem:[#allocation11 + $0x168] sm:$0xff]
    %v3093 = vld [vmem:[#allocation11 + $0x170] sm:$0xff]
    %v3094 = vld [vmem:[#allocation11 + $0x178] sm:$0xff]
    %v3095 = vld [vmem:[#allocation11 + $0x180] sm:$0xff]
    %v3096 = vld [vmem:[#allocation11 + $0x188] sm:$0xff]
    %v3097 = vld [vmem:[#allocation11 + $0x190] sm:$0xff]
    %v3098 = vld [vmem:[#allocation11 + $0x198] sm:$0xff]
    %v3099 = vld [vmem:[#allocation11 + $0x1a0] sm:$0xff]
    %v3100 = vld [vmem:[#allocation11 + $0x1a8] sm:$0xff]
    %v3101 = vld [vmem:[#allocation11 + $0x1b0] sm:$0xff]
    %v3102 = vld [vmem:[#allocation11 + $0x1b8] sm:$0xff]
    %v3103 = vld [vmem:[#allocation11 + $0x1c0] sm:$0xff]
    %v3104 = vld [vmem:[#allocation11 + $0x1c8] sm:$0xff]
    %v3105 = vld [vmem:[#allocation11 + $0x1d0] sm:$0xff]
    %v3106 = vld [vmem:[#allocation11 + $0x1d8] sm:$0xff]
    %v3107 = vld [vmem:[#allocation11 + $0x1e0] sm:$0xff]
    %v3108 = vld [vmem:[#allocation11 + $0x1e8] sm:$0xff]
    %v3109 = vld [vmem:[#allocation11 + $0x1f0] sm:$0xff]
    %v3110 = vld [vmem:[#allocation11 + $0x1f8] sm:$0xff]
    %v3111 = vld [vmem:[#allocation11 + $0x200] sm:$0xff]
    %v3112 = vld [vmem:[#allocation11 + $0x208] sm:$0xff]
    %v3113 = vld [vmem:[#allocation11 + $0x210] sm:$0xff]
    %v3114 = vld [vmem:[#allocation11 + $0x218] sm:$0xff]
    %v3115 = vld [vmem:[#allocation11 + $0x220] sm:$0xff]
    %v3116 = vld [vmem:[#allocation11 + $0x228] sm:$0xff]
    %v3117 = vld [vmem:[#allocation11 + $0x230] sm:$0xff]
    %v3118 = vld [vmem:[#allocation11 + $0x238] sm:$0xff]
    %v3119 = vld [vmem:[#allocation11 + $0x240] sm:$0xff]
    %v3120 = vld [vmem:[#allocation11 + $0x248] sm:$0xff]
    %v3121 = vld [vmem:[#allocation11 + $0x250] sm:$0xff]
    %v3122 = vld [vmem:[#allocation11 + $0x258] sm:$0xff]
    %v3123 = vld [vmem:[#allocation11 + $0x260] sm:$0xff]
    %v3124 = vld [vmem:[#allocation11 + $0x268] sm:$0xff]
    %v3125 = vld [vmem:[#allocation11 + $0x270] sm:$0xff]
    %v3126 = vld [vmem:[#allocation11 + $0x278] sm:$0xff]
    %v3127 = vld [vmem:[#allocation11 + $0x280] sm:$0xff]
    %v3128 = vld [vmem:[#allocation11 + $0x288] sm:$0xff]
    %v3129 = vld [vmem:[#allocation11 + $0x290] sm:$0xff]
    %v3130 = vld [vmem:[#allocation11 + $0x298] sm:$0xff]
    %v3131 = vld [vmem:[#allocation11 + $0x2a0] sm:$0xff]
    %v3132 = vld [vmem:[#allocation11 + $0x2a8] sm:$0xff]
    %v3133 = vld [vmem:[#allocation11 + $0x2b0] sm:$0xff]
    %v3134 = vld [vmem:[#allocation11 + $0x2b8] sm:$0xff]
    %v3135 = vld [vmem:[#allocation11 + $0x2c0] sm:$0xff]
    %v3136 = vld [vmem:[#allocation11 + $0x2c8] sm:$0xff]
    %v3137 = vld [vmem:[#allocation11 + $0x2d0] sm:$0xff]
    %v3138 = vld [vmem:[#allocation11 + $0x2d8] sm:$0xff]
    %v3139 = vld [vmem:[#allocation11 + $0x2e0] sm:$0xff]
    %v3140 = vld [vmem:[#allocation11 + $0x2e8] sm:$0xff]
    %v3141 = vld [vmem:[#allocation11 + $0x2f0] sm:$0xff]
    %v3142 = vld [vmem:[#allocation11 + $0x2f8] sm:$0xff]
    %v3143 = vld [vmem:[#allocation11 + $0x300] sm:$0xff]
    %v3144 = vld [vmem:[#allocation11 + $0x308] sm:$0xff]
    %v3145 = vld [vmem:[#allocation11 + $0x310] sm:$0xff]
    %v3146 = vld [vmem:[#allocation11 + $0x318] sm:$0xff]
    %v3147 = vld [vmem:[#allocation11 + $0x320] sm:$0xff]
    %v3148 = vld [vmem:[#allocation11 + $0x328] sm:$0xff]
    %v3149 = vld [vmem:[#allocation11 + $0x330] sm:$0xff]
    %v3150 = vld [vmem:[#allocation11 + $0x338] sm:$0xff]
    %v3151 = vld [vmem:[#allocation11 + $0x340] sm:$0xff]
    %v3152 = vld [vmem:[#allocation11 + $0x348] sm:$0xff]
    %v3153 = vld [vmem:[#allocation11 + $0x350] sm:$0xff]
    %v3154 = vld [vmem:[#allocation11 + $0x358] sm:$0xff]
    %v3155 = vld [vmem:[#allocation11 + $0x360] sm:$0xff]
    %v3156 = vld [vmem:[#allocation11 + $0x368] sm:$0xff]
    %v3157 = vld [vmem:[#allocation11 + $0x370] sm:$0xff]
    %v3158 = vld [vmem:[#allocation11 + $0x378] sm:$0xff]
    %v3159 = vld [vmem:[#allocation11 + $0x380] sm:$0xff]
    %v3160 = vld [vmem:[#allocation11 + $0x388] sm:$0xff]
    %v3161 = vld [vmem:[#allocation11 + $0x390] sm:$0xff]
    %v3162 = vld [vmem:[#allocation11 + $0x398] sm:$0xff]
    %v3163 = vld [vmem:[#allocation11 + $0x3a0] sm:$0xff]
    %v3164 = vld [vmem:[#allocation11 + $0x3a8] sm:$0xff]
    %v3165 = vld [vmem:[#allocation11 + $0x3b0] sm:$0xff]
    %v3166 = vld [vmem:[#allocation11 + $0x3b8] sm:$0xff]
    %v3167 = vld [vmem:[#allocation11 + $0x3c0] sm:$0xff]
    %v3168 = vld [vmem:[#allocation11 + $0x3c8] sm:$0xff]
    %v3169 = vld [vmem:[#allocation11 + $0x3d0] sm:$0xff]
    %v3170 = vld [vmem:[#allocation11 + $0x3d8] sm:$0xff]
    %v3171 = vld [vmem:[#allocation11 + $0x3e0] sm:$0xff]
    %v3172 = vld [vmem:[#allocation11 + $0x3e8] sm:$0xff]
    %v3173 = vld [vmem:[#allocation11 + $0x3f0] sm:$0xff]
    %v3174 = vld [vmem:[#allocation11 + $0x3f8] sm:$0xff]
    %v3175 = vld [vmem:[%s8] sm:$0xf]
    %v3177 = vlaneseq
    %v3178 = vshrl.u32 %v3177, 7
    %v3179 = vsub.s32 0, %v3178
    %v3180 = vrot.slane %v3175, %v3179
    %v3181 = vlaneseq
    %v3182 = vshrl.u32 %v3181, 7
    %v3183 = vsub.s32 1, %v3182
    %v3184 = vrot.slane %v3175, %v3183
    %v3185 = vlaneseq
    %v3186 = vshrl.u32 %v3185, 7
    %v3187 = vsub.s32 2, %v3186
    %v3188 = vrot.slane %v3175, %v3187
    %v3189 = vlaneseq
    %v3190 = vshrl.u32 %v3189, 7
    %v3191 = vsub.s32 3, %v3190
    %v3192 = vrot.slane %v3175, %v3191
    %v3325 = vunpack.c.l.b16 %v3047
    %v3326 = vunpack.c.h.b16 %v3047
    %v3327 = vunpack.c.l.b16 %v3048
    %v3328 = vunpack.c.h.b16 %v3048
    %v3329 = vunpack.c.l.b16 %v3049
    %v3330 = vunpack.c.h.b16 %v3049
    %v3331 = vunpack.c.l.b16 %v3050
    %v3332 = vunpack.c.h.b16 %v3050
    %v3333 = vunpack.c.l.b16 %v3051
    %v3334 = vunpack.c.h.b16 %v3051
    %v3335 = vunpack.c.l.b16 %v3052
    %v3336 = vunpack.c.h.b16 %v3052
    %v3337 = vunpack.c.l.b16 %v3053
    %v3338 = vunpack.c.h.b16 %v3053
    %v3339 = vunpack.c.l.b16 %v3054
    %v3340 = vunpack.c.h.b16 %v3054
    %v3341 = vunpack.c.l.b16 %v3055
    %v3342 = vunpack.c.h.b16 %v3055
    %v3343 = vunpack.c.l.b16 %v3056
    %v3344 = vunpack.c.h.b16 %v3056
    %v3345 = vunpack.c.l.b16 %v3057
    %v3346 = vunpack.c.h.b16 %v3057
    %v3347 = vunpack.c.l.b16 %v3058
    %v3348 = vunpack.c.h.b16 %v3058
    %v3349 = vunpack.c.l.b16 %v3059
    %v3350 = vunpack.c.h.b16 %v3059
    %v3351 = vunpack.c.l.b16 %v3060
    %v3352 = vunpack.c.h.b16 %v3060
    %v3353 = vunpack.c.l.b16 %v3061
    %v3354 = vunpack.c.h.b16 %v3061
    %v3355 = vunpack.c.l.b16 %v3062
    %v3356 = vunpack.c.h.b16 %v3062
    %v3357 = vunpack.c.l.b16 %v3063
    %v3358 = vunpack.c.h.b16 %v3063
    %v3359 = vunpack.c.l.b16 %v3064
    %v3360 = vunpack.c.h.b16 %v3064
    %v3361 = vunpack.c.l.b16 %v3065
    %v3362 = vunpack.c.h.b16 %v3065
    %v3363 = vunpack.c.l.b16 %v3066
    %v3364 = vunpack.c.h.b16 %v3066
    %v3365 = vunpack.c.l.b16 %v3067
    %v3366 = vunpack.c.h.b16 %v3067
    %v3367 = vunpack.c.l.b16 %v3068
    %v3368 = vunpack.c.h.b16 %v3068
    %v3369 = vunpack.c.l.b16 %v3069
    %v3370 = vunpack.c.h.b16 %v3069
    %v3371 = vunpack.c.l.b16 %v3070
    %v3372 = vunpack.c.h.b16 %v3070
    %v3373 = vunpack.c.l.b16 %v3071
    %v3374 = vunpack.c.h.b16 %v3071
    %v3375 = vunpack.c.l.b16 %v3072
    %v3376 = vunpack.c.h.b16 %v3072
    %v3377 = vunpack.c.l.b16 %v3073
    %v3378 = vunpack.c.h.b16 %v3073
    %v3379 = vunpack.c.l.b16 %v3074
    %v3380 = vunpack.c.h.b16 %v3074
    %v3381 = vunpack.c.l.b16 %v3075
    %v3382 = vunpack.c.h.b16 %v3075
    %v3383 = vunpack.c.l.b16 %v3076
    %v3384 = vunpack.c.h.b16 %v3076
    %v3385 = vunpack.c.l.b16 %v3077
    %v3386 = vunpack.c.h.b16 %v3077
    %v3387 = vunpack.c.l.b16 %v3078
    %v3388 = vunpack.c.h.b16 %v3078
    %v3389 = vunpack.c.l.b16 %v3079
    %v3390 = vunpack.c.h.b16 %v3079
    %v3391 = vunpack.c.l.b16 %v3080
    %v3392 = vunpack.c.h.b16 %v3080
    %v3393 = vunpack.c.l.b16 %v3081
    %v3394 = vunpack.c.h.b16 %v3081
    %v3395 = vunpack.c.l.b16 %v3082
    %v3396 = vunpack.c.h.b16 %v3082
    %v3397 = vunpack.c.l.b16 %v3083
    %v3398 = vunpack.c.h.b16 %v3083
    %v3399 = vunpack.c.l.b16 %v3084
    %v3400 = vunpack.c.h.b16 %v3084
    %v3401 = vunpack.c.l.b16 %v3085
    %v3402 = vunpack.c.h.b16 %v3085
    %v3403 = vunpack.c.l.b16 %v3086
    %v3404 = vunpack.c.h.b16 %v3086
    %v3405 = vunpack.c.l.b16 %v3087
    %v3406 = vunpack.c.h.b16 %v3087
    %v3407 = vunpack.c.l.b16 %v3088
    %v3408 = vunpack.c.h.b16 %v3088
    %v3409 = vunpack.c.l.b16 %v3089
    %v3410 = vunpack.c.h.b16 %v3089
    %v3411 = vunpack.c.l.b16 %v3090
    %v3412 = vunpack.c.h.b16 %v3090
    %v3413 = vunpack.c.l.b16 %v3091
    %v3414 = vunpack.c.h.b16 %v3091
    %v3415 = vunpack.c.l.b16 %v3092
    %v3416 = vunpack.c.h.b16 %v3092
    %v3417 = vunpack.c.l.b16 %v3093
    %v3418 = vunpack.c.h.b16 %v3093
    %v3419 = vunpack.c.l.b16 %v3094
    %v3420 = vunpack.c.h.b16 %v3094
    %v3421 = vunpack.c.l.b16 %v3095
    %v3422 = vunpack.c.h.b16 %v3095
    %v3423 = vunpack.c.l.b16 %v3096
    %v3424 = vunpack.c.h.b16 %v3096
    %v3425 = vunpack.c.l.b16 %v3097
    %v3426 = vunpack.c.h.b16 %v3097
    %v3427 = vunpack.c.l.b16 %v3098
    %v3428 = vunpack.c.h.b16 %v3098
    %v3429 = vunpack.c.l.b16 %v3099
    %v3430 = vunpack.c.h.b16 %v3099
    %v3431 = vunpack.c.l.b16 %v3100
    %v3432 = vunpack.c.h.b16 %v3100
    %v3433 = vunpack.c.l.b16 %v3101
    %v3434 = vunpack.c.h.b16 %v3101
    %v3435 = vunpack.c.l.b16 %v3102
    %v3436 = vunpack.c.h.b16 %v3102
    %v3437 = vunpack.c.l.b16 %v3103
    %v3438 = vunpack.c.h.b16 %v3103
    %v3439 = vunpack.c.l.b16 %v3104
    %v3440 = vunpack.c.h.b16 %v3104
    %v3441 = vunpack.c.l.b16 %v3105
    %v3442 = vunpack.c.h.b16 %v3105
    %v3443 = vunpack.c.l.b16 %v3106
    %v3444 = vunpack.c.h.b16 %v3106
    %v3445 = vunpack.c.l.b16 %v3107
    %v3446 = vunpack.c.h.b16 %v3107
    %v3447 = vunpack.c.l.b16 %v3108
    %v3448 = vunpack.c.h.b16 %v3108
    %v3449 = vunpack.c.l.b16 %v3109
    %v3450 = vunpack.c.h.b16 %v3109
    %v3451 = vunpack.c.l.b16 %v3110
    %v3452 = vunpack.c.h.b16 %v3110
    %v3453 = vunpack.c.l.b16 %v3111
    %v3454 = vunpack.c.h.b16 %v3111
    %v3455 = vunpack.c.l.b16 %v3112
    %v3456 = vunpack.c.h.b16 %v3112
    %v3457 = vunpack.c.l.b16 %v3113
    %v3458 = vunpack.c.h.b16 %v3113
    %v3459 = vunpack.c.l.b16 %v3114
    %v3460 = vunpack.c.h.b16 %v3114
    %v3461 = vunpack.c.l.b16 %v3115
    %v3462 = vunpack.c.h.b16 %v3115
    %v3463 = vunpack.c.l.b16 %v3116
    %v3464 = vunpack.c.h.b16 %v3116
    %v3465 = vunpack.c.l.b16 %v3117
    %v3466 = vunpack.c.h.b16 %v3117
    %v3467 = vunpack.c.l.b16 %v3118
    %v3468 = vunpack.c.h.b16 %v3118
    %v3469 = vunpack.c.l.b16 %v3119
    %v3470 = vunpack.c.h.b16 %v3119
    %v3471 = vunpack.c.l.b16 %v3120
    %v3472 = vunpack.c.h.b16 %v3120
    %v3473 = vunpack.c.l.b16 %v3121
    %v3474 = vunpack.c.h.b16 %v3121
    %v3475 = vunpack.c.l.b16 %v3122
    %v3476 = vunpack.c.h.b16 %v3122
    %v3477 = vunpack.c.l.b16 %v3123
    %v3478 = vunpack.c.h.b16 %v3123
    %v3479 = vunpack.c.l.b16 %v3124
    %v3480 = vunpack.c.h.b16 %v3124
    %v3481 = vunpack.c.l.b16 %v3125
    %v3482 = vunpack.c.h.b16 %v3125
    %v3483 = vunpack.c.l.b16 %v3126
    %v3484 = vunpack.c.h.b16 %v3126
    %v3485 = vunpack.c.l.b16 %v3127
    %v3486 = vunpack.c.h.b16 %v3127
    %v3487 = vunpack.c.l.b16 %v3128
    %v3488 = vunpack.c.h.b16 %v3128
    %v3489 = vunpack.c.l.b16 %v3129
    %v3490 = vunpack.c.h.b16 %v3129
    %v3491 = vunpack.c.l.b16 %v3130
    %v3492 = vunpack.c.h.b16 %v3130
    %v3493 = vunpack.c.l.b16 %v3131
    %v3494 = vunpack.c.h.b16 %v3131
    %v3495 = vunpack.c.l.b16 %v3132
    %v3496 = vunpack.c.h.b16 %v3132
    %v3497 = vunpack.c.l.b16 %v3133
    %v3498 = vunpack.c.h.b16 %v3133
    %v3499 = vunpack.c.l.b16 %v3134
    %v3500 = vunpack.c.h.b16 %v3134
    %v3501 = vunpack.c.l.b16 %v3135
    %v3502 = vunpack.c.h.b16 %v3135
    %v3503 = vunpack.c.l.b16 %v3136
    %v3504 = vunpack.c.h.b16 %v3136
    %v3505 = vunpack.c.l.b16 %v3137
    %v3506 = vunpack.c.h.b16 %v3137
    %v3507 = vunpack.c.l.b16 %v3138
    %v3508 = vunpack.c.h.b16 %v3138
    %v3509 = vunpack.c.l.b16 %v3139
    %v3510 = vunpack.c.h.b16 %v3139
    %v3511 = vunpack.c.l.b16 %v3140
    %v3512 = vunpack.c.h.b16 %v3140
    %v3513 = vunpack.c.l.b16 %v3141
    %v3514 = vunpack.c.h.b16 %v3141
    %v3515 = vunpack.c.l.b16 %v3142
    %v3516 = vunpack.c.h.b16 %v3142
    %v3517 = vunpack.c.l.b16 %v3143
    %v3518 = vunpack.c.h.b16 %v3143
    %v3519 = vunpack.c.l.b16 %v3144
    %v3520 = vunpack.c.h.b16 %v3144
    %v3521 = vunpack.c.l.b16 %v3145
    %v3522 = vunpack.c.h.b16 %v3145
    %v3523 = vunpack.c.l.b16 %v3146
    %v3524 = vunpack.c.h.b16 %v3146
    %v3525 = vunpack.c.l.b16 %v3147
    %v3526 = vunpack.c.h.b16 %v3147
    %v3527 = vunpack.c.l.b16 %v3148
    %v3528 = vunpack.c.h.b16 %v3148
    %v3529 = vunpack.c.l.b16 %v3149
    %v3530 = vunpack.c.h.b16 %v3149
    %v3531 = vunpack.c.l.b16 %v3150
    %v3532 = vunpack.c.h.b16 %v3150
    %v3533 = vunpack.c.l.b16 %v3151
    %v3534 = vunpack.c.h.b16 %v3151
    %v3535 = vunpack.c.l.b16 %v3152
    %v3536 = vunpack.c.h.b16 %v3152
    %v3537 = vunpack.c.l.b16 %v3153
    %v3538 = vunpack.c.h.b16 %v3153
    %v3539 = vunpack.c.l.b16 %v3154
    %v3540 = vunpack.c.h.b16 %v3154
    %v3541 = vunpack.c.l.b16 %v3155
    %v3542 = vunpack.c.h.b16 %v3155
    %v3543 = vunpack.c.l.b16 %v3156
    %v3544 = vunpack.c.h.b16 %v3156
    %v3545 = vunpack.c.l.b16 %v3157
    %v3546 = vunpack.c.h.b16 %v3157
    %v3547 = vunpack.c.l.b16 %v3158
    %v3548 = vunpack.c.h.b16 %v3158
    %v3549 = vunpack.c.l.b16 %v3159
    %v3550 = vunpack.c.h.b16 %v3159
    %v3551 = vunpack.c.l.b16 %v3160
    %v3552 = vunpack.c.h.b16 %v3160
    %v3553 = vunpack.c.l.b16 %v3161
    %v3554 = vunpack.c.h.b16 %v3161
    %v3555 = vunpack.c.l.b16 %v3162
    %v3556 = vunpack.c.h.b16 %v3162
    %v3557 = vunpack.c.l.b16 %v3163
    %v3558 = vunpack.c.h.b16 %v3163
    %v3559 = vunpack.c.l.b16 %v3164
    %v3560 = vunpack.c.h.b16 %v3164
    %v3561 = vunpack.c.l.b16 %v3165
    %v3562 = vunpack.c.h.b16 %v3165
    %v3563 = vunpack.c.l.b16 %v3166
    %v3564 = vunpack.c.h.b16 %v3166
    %v3565 = vunpack.c.l.b16 %v3167
    %v3566 = vunpack.c.h.b16 %v3167
    %v3567 = vunpack.c.l.b16 %v3168
    %v3568 = vunpack.c.h.b16 %v3168
    %v3569 = vunpack.c.l.b16 %v3169
    %v3570 = vunpack.c.h.b16 %v3169
    %v3571 = vunpack.c.l.b16 %v3170
    %v3572 = vunpack.c.h.b16 %v3170
    %v3573 = vunpack.c.l.b16 %v3171
    %v3574 = vunpack.c.h.b16 %v3171
    %v3575 = vunpack.c.l.b16 %v3172
    %v3576 = vunpack.c.h.b16 %v3172
    %v3577 = vunpack.c.l.b16 %v3173
    %v3578 = vunpack.c.h.b16 %v3173
    %v3579 = vunpack.c.l.b16 %v3174
    %v3580 = vunpack.c.h.b16 %v3174
    %v3581 = vpack.c.b16 %v3329, %v3325
    %v3582 = vpack.c.b16 %v3330, %v3326
    %v3583 = vpack.c.b16 %v3331, %v3327
    %v3584 = vpack.c.b16 %v3332, %v3328
    %v3585 = vpack.c.b16 %v3337, %v3333
    %v3586 = vpack.c.b16 %v3338, %v3334
    %v3587 = vpack.c.b16 %v3339, %v3335
    %v3588 = vpack.c.b16 %v3340, %v3336
    %v3589 = vpack.c.b16 %v3345, %v3341
    %v3590 = vpack.c.b16 %v3346, %v3342
    %v3591 = vpack.c.b16 %v3347, %v3343
    %v3592 = vpack.c.b16 %v3348, %v3344
    %v3593 = vpack.c.b16 %v3353, %v3349
    %v3594 = vpack.c.b16 %v3354, %v3350
    %v3595 = vpack.c.b16 %v3355, %v3351
    %v3596 = vpack.c.b16 %v3356, %v3352
    %v3597 = vpack.c.b16 %v3361, %v3357
    %v3598 = vpack.c.b16 %v3362, %v3358
    %v3599 = vpack.c.b16 %v3363, %v3359
    %v3600 = vpack.c.b16 %v3364, %v3360
    %v3601 = vpack.c.b16 %v3369, %v3365
    %v3602 = vpack.c.b16 %v3370, %v3366
    %v3603 = vpack.c.b16 %v3371, %v3367
    %v3604 = vpack.c.b16 %v3372, %v3368
    %v3605 = vpack.c.b16 %v3377, %v3373
    %v3606 = vpack.c.b16 %v3378, %v3374
    %v3607 = vpack.c.b16 %v3379, %v3375
    %v3608 = vpack.c.b16 %v3380, %v3376
    %v3609 = vpack.c.b16 %v3385, %v3381
    %v3610 = vpack.c.b16 %v3386, %v3382
    %v3611 = vpack.c.b16 %v3387, %v3383
    %v3612 = vpack.c.b16 %v3388, %v3384
    %v3613 = vpack.c.b16 %v3393, %v3389
    %v3614 = vpack.c.b16 %v3394, %v3390
    %v3615 = vpack.c.b16 %v3395, %v3391
    %v3616 = vpack.c.b16 %v3396, %v3392
    %v3617 = vpack.c.b16 %v3401, %v3397
    %v3618 = vpack.c.b16 %v3402, %v3398
    %v3619 = vpack.c.b16 %v3403, %v3399
    %v3620 = vpack.c.b16 %v3404, %v3400
    %v3621 = vpack.c.b16 %v3409, %v3405
    %v3622 = vpack.c.b16 %v3410, %v3406
    %v3623 = vpack.c.b16 %v3411, %v3407
    %v3624 = vpack.c.b16 %v3412, %v3408
    %v3625 = vpack.c.b16 %v3417, %v3413
    %v3626 = vpack.c.b16 %v3418, %v3414
    %v3627 = vpack.c.b16 %v3419, %v3415
    %v3628 = vpack.c.b16 %v3420, %v3416
    %v3629 = vpack.c.b16 %v3425, %v3421
    %v3630 = vpack.c.b16 %v3426, %v3422
    %v3631 = vpack.c.b16 %v3427, %v3423
    %v3632 = vpack.c.b16 %v3428, %v3424
    %v3633 = vpack.c.b16 %v3433, %v3429
    %v3634 = vpack.c.b16 %v3434, %v3430
    %v3635 = vpack.c.b16 %v3435, %v3431
    %v3636 = vpack.c.b16 %v3436, %v3432
    %v3637 = vpack.c.b16 %v3441, %v3437
    %v3638 = vpack.c.b16 %v3442, %v3438
    %v3639 = vpack.c.b16 %v3443, %v3439
    %v3640 = vpack.c.b16 %v3444, %v3440
    %v3641 = vpack.c.b16 %v3449, %v3445
    %v3642 = vpack.c.b16 %v3450, %v3446
    %v3643 = vpack.c.b16 %v3451, %v3447
    %v3644 = vpack.c.b16 %v3452, %v3448
    %v3645 = vpack.c.b16 %v3457, %v3453
    %v3646 = vpack.c.b16 %v3458, %v3454
    %v3647 = vpack.c.b16 %v3459, %v3455
    %v3648 = vpack.c.b16 %v3460, %v3456
    %v3649 = vpack.c.b16 %v3465, %v3461
    %v3650 = vpack.c.b16 %v3466, %v3462
    %v3651 = vpack.c.b16 %v3467, %v3463
    %v3652 = vpack.c.b16 %v3468, %v3464
    %v3653 = vpack.c.b16 %v3473, %v3469
    %v3654 = vpack.c.b16 %v3474, %v3470
    %v3655 = vpack.c.b16 %v3475, %v3471
    %v3656 = vpack.c.b16 %v3476, %v3472
    %v3657 = vpack.c.b16 %v3481, %v3477
    %v3658 = vpack.c.b16 %v3482, %v3478
    %v3659 = vpack.c.b16 %v3483, %v3479
    %v3660 = vpack.c.b16 %v3484, %v3480
    %v3661 = vpack.c.b16 %v3489, %v3485
    %v3662 = vpack.c.b16 %v3490, %v3486
    %v3663 = vpack.c.b16 %v3491, %v3487
    %v3664 = vpack.c.b16 %v3492, %v3488
    %v3665 = vpack.c.b16 %v3497, %v3493
    %v3666 = vpack.c.b16 %v3498, %v3494
    %v3667 = vpack.c.b16 %v3499, %v3495
    %v3668 = vpack.c.b16 %v3500, %v3496
    %v3669 = vpack.c.b16 %v3505, %v3501
    %v3670 = vpack.c.b16 %v3506, %v3502
    %v3671 = vpack.c.b16 %v3507, %v3503
    %v3672 = vpack.c.b16 %v3508, %v3504
    %v3673 = vpack.c.b16 %v3513, %v3509
    %v3674 = vpack.c.b16 %v3514, %v3510
    %v3675 = vpack.c.b16 %v3515, %v3511
    %v3676 = vpack.c.b16 %v3516, %v3512
    %v3677 = vpack.c.b16 %v3521, %v3517
    %v3678 = vpack.c.b16 %v3522, %v3518
    %v3679 = vpack.c.b16 %v3523, %v3519
    %v3680 = vpack.c.b16 %v3524, %v3520
    %v3681 = vpack.c.b16 %v3529, %v3525
    %v3682 = vpack.c.b16 %v3530, %v3526
    %v3683 = vpack.c.b16 %v3531, %v3527
    %v3684 = vpack.c.b16 %v3532, %v3528
    %v3685 = vpack.c.b16 %v3537, %v3533
    %v3686 = vpack.c.b16 %v3538, %v3534
    %v3687 = vpack.c.b16 %v3539, %v3535
    %v3688 = vpack.c.b16 %v3540, %v3536
    %v3689 = vpack.c.b16 %v3545, %v3541
    %v3690 = vpack.c.b16 %v3546, %v3542
    %v3691 = vpack.c.b16 %v3547, %v3543
    %v3692 = vpack.c.b16 %v3548, %v3544
    %v3693 = vpack.c.b16 %v3553, %v3549
    %v3694 = vpack.c.b16 %v3554, %v3550
    %v3695 = vpack.c.b16 %v3555, %v3551
    %v3696 = vpack.c.b16 %v3556, %v3552
    %v3697 = vpack.c.b16 %v3561, %v3557
    %v3698 = vpack.c.b16 %v3562, %v3558
    %v3699 = vpack.c.b16 %v3563, %v3559
    %v3700 = vpack.c.b16 %v3564, %v3560
    %v3701 = vpack.c.b16 %v3569, %v3565
    %v3702 = vpack.c.b16 %v3570, %v3566
    %v3703 = vpack.c.b16 %v3571, %v3567
    %v3704 = vpack.c.b16 %v3572, %v3568
    %v3705 = vpack.c.b16 %v3577, %v3573
    %v3706 = vpack.c.b16 %v3578, %v3574
    %v3707 = vpack.c.b16 %v3579, %v3575
    %v3708 = vpack.c.b16 %v3580, %v3576
    %3837 = vmatprep.subr.bf16.mxu0 %v3610
    %3838 = vmatpush1.bf16.msra.mxu0 %v3609
    %3839 = vmatprep.subr.bf16.mxu0 %v3606
    %3840 = vmatpush1.bf16.msra.mxu0 %v3605
    %3841 = vmatprep.subr.bf16.mxu0 %v3602
    %3842 = vmatpush1.bf16.msra.mxu0 %v3601
    %3843 = vmatprep.subr.bf16.mxu0 %v3598
    %3844 = vmatpush1.bf16.msra.mxu0 %v3597
    %3845 = vmatprep.subr.bf16.mxu0 %v3594
    %3846 = vmatpush1.bf16.msra.mxu0 %v3593
    %3847 = vmatprep.subr.bf16.mxu0 %v3590
    %3848 = vmatpush1.bf16.msra.mxu0 %v3589
    %3849 = vmatprep.subr.bf16.mxu0 %v3586
    %3850 = vmatpush1.bf16.msra.mxu0 %v3585
    %3851 = vmatprep.subr.bf16.mxu0 %v3582
    %3852 = vmatpush1.bf16.msra.mxu0 %v3581
    %3853 = vmatprep.subr.bf16.mxu0 %v3642
    %3854 = vmatpush2.bf16.msra.mxu0 %v3641
    %3855 = vmatprep.subr.bf16.mxu0 %v3638
    %3856 = vmatpush2.bf16.msra.mxu0 %v3637
    %3857 = vmatprep.subr.bf16.mxu0 %v3634
    %3858 = vmatpush2.bf16.msra.mxu0 %v3633
    %3859 = vmatprep.subr.bf16.mxu0 %v3630
    %3860 = vmatpush2.bf16.msra.mxu0 %v3629
    %3861 = vmatprep.subr.bf16.mxu0 %v3626
    %3862 = vmatpush2.bf16.msra.mxu0 %v3625
    %3863 = vmatprep.subr.bf16.mxu0 %v3622
    %3864 = vmatpush2.bf16.msra.mxu0 %v3621
    %3865 = vmatprep.subr.bf16.mxu0 %v3618
    %3866 = vmatpush2.bf16.msra.mxu0 %v3617
    %3867 = vmatprep.subr.bf16.mxu0 %v3614
    %3868 = vmatpush2.bf16.msra.mxu0 %v3613
    %3869 = vmatprep.mubr.bf16.mxu0 %v3044
    %3870 = vmatmul.mubr.bf16.gmra.mxu0 %v3043
    %v3871 = vpop.f32.mrf.mxu0
    %v3872 = vadd.f32 %v3180, %v3871
    %v3873 = vpop.f32.mrf.mxu0
    %v3874 = vadd.f32 %v3184, %v3873
    %v3875 = vpop.f32.mrf.mxu0
    %v3876 = vadd.f32 %v3180, %v3875
    %v3877 = vpop.f32.mrf.mxu0
    %v3878 = vadd.f32 %v3184, %v3877
    %3879 = vdwg.mxu0
    %3880 = vmatprep.subr.bf16.mxu0 %v3674
    %3881 = vmatpush1.bf16.msra.mxu0 %v3673
    %3882 = vmatprep.subr.bf16.mxu0 %v3670
    %3883 = vmatpush1.bf16.msra.mxu0 %v3669
    %3884 = vmatprep.subr.bf16.mxu0 %v3666
    %3885 = vmatpush1.bf16.msra.mxu0 %v3665
    %3886 = vmatprep.subr.bf16.mxu0 %v3662
    %3887 = vmatpush1.bf16.msra.mxu0 %v3661
    %3888 = vmatprep.subr.bf16.mxu0 %v3658
    %3889 = vmatpush1.bf16.msra.mxu0 %v3657
    %3890 = vmatprep.subr.bf16.mxu0 %v3654
    %3891 = vmatpush1.bf16.msra.mxu0 %v3653
    %3892 = vmatprep.subr.bf16.mxu0 %v3650
    %3893 = vmatpush1.bf16.msra.mxu0 %v3649
    %3894 = vmatprep.subr.bf16.mxu0 %v3646
    %3895 = vmatpush1.bf16.msra.mxu0 %v3645
    %3896 = vmatprep.subr.bf16.mxu0 %v3706
    %3897 = vmatpush2.bf16.msra.mxu0 %v3705
    %3898 = vmatprep.subr.bf16.mxu0 %v3702
    %3899 = vmatpush2.bf16.msra.mxu0 %v3701
    %3900 = vmatprep.subr.bf16.mxu0 %v3698
    %3901 = vmatpush2.bf16.msra.mxu0 %v3697
    %3902 = vmatprep.subr.bf16.mxu0 %v3694
    %3903 = vmatpush2.bf16.msra.mxu0 %v3693
    %3904 = vmatprep.subr.bf16.mxu0 %v3690
    %3905 = vmatpush2.bf16.msra.mxu0 %v3689
    %3906 = vmatprep.subr.bf16.mxu0 %v3686
    %3907 = vmatpush2.bf16.msra.mxu0 %v3685
    %3908 = vmatprep.subr.bf16.mxu0 %v3682
    %3909 = vmatpush2.bf16.msra.mxu0 %v3681
    %3910 = vmatprep.subr.bf16.mxu0 %v3678
    %3911 = vmatpush2.bf16.msra.mxu0 %v3677
    %3912 = vmatprep.mubr.bf16.mxu0 %v3046
    %3913 = vmatmul.mubr.bf16.gmra.mxu0 %v3045
    %v3914 = vpop.f32.mrf.mxu0
    %v3915 = vadd.f32 %v3872, %v3914
    %v3916 = vpop.f32.mrf.mxu0
    %v3917 = vadd.f32 %v3874, %v3916
    %v3918 = vpop.f32.mrf.mxu0
    %v3919 = vadd.f32 %v3876, %v3918
    %v3920 = vpop.f32.mrf.mxu0
    %v3921 = vadd.f32 %v3878, %v3920
    %3922 = vdwg.mxu0
    %3923 = vmatprep.subr.bf16.mxu0 %v3612
    %3924 = vmatpush1.bf16.msra.mxu0 %v3611
    %3925 = vmatprep.subr.bf16.mxu0 %v3608
    %3926 = vmatpush1.bf16.msra.mxu0 %v3607
    %3927 = vmatprep.subr.bf16.mxu0 %v3604
    %3928 = vmatpush1.bf16.msra.mxu0 %v3603
    %3929 = vmatprep.subr.bf16.mxu0 %v3600
    %3930 = vmatpush1.bf16.msra.mxu0 %v3599
    %3931 = vmatprep.subr.bf16.mxu0 %v3596
    %3932 = vmatpush1.bf16.msra.mxu0 %v3595
    %3933 = vmatprep.subr.bf16.mxu0 %v3592
    %3934 = vmatpush1.bf16.msra.mxu0 %v3591
    %3935 = vmatprep.subr.bf16.mxu0 %v3588
    %3936 = vmatpush1.bf16.msra.mxu0 %v3587
    %3937 = vmatprep.subr.bf16.mxu0 %v3584
    %3938 = vmatpush1.bf16.msra.mxu0 %v3583
    %3939 = vmatprep.subr.bf16.mxu0 %v3644
    %3940 = vmatpush2.bf16.msra.mxu0 %v3643
    %3941 = vmatprep.subr.bf16.mxu0 %v3640
    %3942 = vmatpush2.bf16.msra.mxu0 %v3639
    %3943 = vmatprep.subr.bf16.mxu0 %v3636
    %3944 = vmatpush2.bf16.msra.mxu0 %v3635
    %3945 = vmatprep.subr.bf16.mxu0 %v3632
    %3946 = vmatpush2.bf16.msra.mxu0 %v3631
    %3947 = vmatprep.subr.bf16.mxu0 %v3628
    %3948 = vmatpush2.bf16.msra.mxu0 %v3627
    %3949 = vmatprep.subr.bf16.mxu0 %v3624
    %3950 = vmatpush2.bf16.msra.mxu0 %v3623
    %3951 = vmatprep.subr.bf16.mxu0 %v3620
    %3952 = vmatpush2.bf16.msra.mxu0 %v3619
    %3953 = vmatprep.subr.bf16.mxu0 %v3616
    %3954 = vmatpush2.bf16.msra.mxu0 %v3615
    %3955 = vmatprep.mubr.bf16.mxu0 %v3044
    %3956 = vmatmul.mubr.bf16.gmra.mxu0 %v3043
    %v3957 = vpop.f32.mrf.mxu0
    %v3958 = vadd.f32 %v3188, %v3957
    %v3959 = vpop.f32.mrf.mxu0
    %v3960 = vadd.f32 %v3192, %v3959
    %v3961 = vpop.f32.mrf.mxu0
    %v3962 = vadd.f32 %v3188, %v3961
    %v3963 = vpop.f32.mrf.mxu0
    %v3964 = vadd.f32 %v3192, %v3963
    %3965 = vdwg.mxu0
    %3966 = vmatprep.subr.bf16.mxu0 %v3676
    %3967 = vmatpush1.bf16.msra.mxu0 %v3675
    %3968 = vmatprep.subr.bf16.mxu0 %v3672
    %3969 = vmatpush1.bf16.msra.mxu0 %v3671
    %3970 = vmatprep.subr.bf16.mxu0 %v3668
    %3971 = vmatpush1.bf16.msra.mxu0 %v3667
    %3972 = vmatprep.subr.bf16.mxu0 %v3664
    %3973 = vmatpush1.bf16.msra.mxu0 %v3663
    %3974 = vmatprep.subr.bf16.mxu0 %v3660
    %3975 = vmatpush1.bf16.msra.mxu0 %v3659
    %3976 = vmatprep.subr.bf16.mxu0 %v3656
    %3977 = vmatpush1.bf16.msra.mxu0 %v3655
    %3978 = vmatprep.subr.bf16.mxu0 %v3652
    %3979 = vmatpush1.bf16.msra.mxu0 %v3651
    %3980 = vmatprep.subr.bf16.mxu0 %v3648
    %3981 = vmatpush1.bf16.msra.mxu0 %v3647
    %3982 = vmatprep.subr.bf16.mxu0 %v3708
    %3983 = vmatpush2.bf16.msra.mxu0 %v3707
    %3984 = vmatprep.subr.bf16.mxu0 %v3704
    %3985 = vmatpush2.bf16.msra.mxu0 %v3703
    %3986 = vmatprep.subr.bf16.mxu0 %v3700
    %3987 = vmatpush2.bf16.msra.mxu0 %v3699
    %3988 = vmatprep.subr.bf16.mxu0 %v3696
    %3989 = vmatpush2.bf16.msra.mxu0 %v3695
    %3990 = vmatprep.subr.bf16.mxu0 %v3692
    %3991 = vmatpush2.bf16.msra.mxu0 %v3691
    %3992 = vmatprep.subr.bf16.mxu0 %v3688
    %3993 = vmatpush2.bf16.msra.mxu0 %v3687
    %3994 = vmatprep.subr.bf16.mxu0 %v3684
    %3995 = vmatpush2.bf16.msra.mxu0 %v3683
    %3996 = vmatprep.subr.bf16.mxu0 %v3680
    %3997 = vmatpush2.bf16.msra.mxu0 %v3679
    %3998 = vmatprep.mubr.bf16.mxu0 %v3046
    %3999 = vmatmul.mubr.bf16.gmra.mxu0 %v3045
    %v4000 = vpop.f32.mrf.mxu0
    %v4001 = vadd.f32 %v3958, %v4000
    %v4002 = vpop.f32.mrf.mxu0
    %v4003 = vadd.f32 %v3960, %v4002
    %v4004 = vpop.f32.mrf.mxu0
    %v4005 = vadd.f32 %v3962, %v4004
    %v4006 = vpop.f32.mrf.mxu0
    %v4007 = vadd.f32 %v3964, %v4006
    %4008 = vdwg.mxu0
    %v4009 = vmax.f32 %v3915, 0.0
    %v4010 = vmax.f32 %v3917, 0.0
    %v4011 = vmax.f32 %v4001, 0.0
    %v4012 = vmax.f32 %v4003, 0.0
    %v4013 = vmax.f32 %v3919, 0.0
    %v4014 = vmax.f32 %v3921, 0.0
    %v4015 = vmax.f32 %v4005, 0.0
    %v4016 = vmax.f32 %v4007, 0.0
    %4017 = vst [vmem:[#allocation13] sm:$0xff] %v4009
    %4018 = vst [vmem:[#allocation13 + $0x8] sm:$0xff] %v4010
    %4019 = vst [vmem:[#allocation13 + $0x10] sm:$0xff] %v4011
    %4020 = vst [vmem:[#allocation13 + $0x18] sm:$0xff] %v4012
    %4021 = vst [vmem:[#allocation13 + $0x20] sm:$0xff] %v4013
    %4022 = vst [vmem:[#allocation13 + $0x28] sm:$0xff] %v4014
    %4023 = vst [vmem:[#allocation13 + $0x30] sm:$0xff] %v4015
    %4024 = vst [vmem:[#allocation13 + $0x38] sm:$0xff] %v4016
    // Predicated region
    $region62: #{tpu_custom_call.1} parent=1 // pred_check
      _
    $region63: #{tpu_custom_call.1} parent=1 // pred_check_branch
      %4026 = sbr.rel (0) target = $region65
    $region64: #{tpu_custom_call.1} parent=1 // pred_region
      %s4028 = ssub.s32 1024, 1024
      %4029 = vsyncadd [#allocation4], %s4028
      %s4030 = sshll.u32 [#allocation13], 4
      %s4031 = int_to_ptr.vmem [resolvable:$true] %s4030
      %4036 = dma.vmem_to_hbm [thread:$0]  %s4031, 1024, %s9, [#allocation4], 512, 512, 32
    $region65: #{tpu_custom_call.1} parent=1 // pred_fallthru
      _
    // Predicated region
    $region66: #{tpu_custom_call.1} parent=1 // pred_check
      _
    $region67: #{tpu_custom_call.1} parent=1 // pred_check_branch
      %4038 = sbr.rel (0) target = $region69
    $region68: #{tpu_custom_call.1} parent=1 // pred_region
      %4039 = dma.done [#allocation4], 1024
    $region69: #{tpu_custom_call.1} parent=1 // pred_fallthru
      _
    %4040 = vsyncpa [#allocation3], 1
    %4041 = vsyncpa [#allocation6], 1
    %4042 = vsyncpa [#allocation9], 1
    %4043 = vsyncpa [#allocation12], 1
    %4044 = vsyncpa [#allocation4], 1

</llo_original>
